<compile_context>
chip_gen: v7x
topology: tpu7x:2x2x1
jax: 0.10.0
libtpu: 0.0.40
codegen_flags: <defaults>
</compile_context>

<pallas_src>
import functools
import math

import jax
import jax.numpy as jnp
from jax.experimental import pallas as pl
from jax.experimental.pallas import tpu as pltpu


# ----------------------------- small helpers (traced inside kernels) --------

def _gelu_exact(x):
    # matches torch.nn.GELU() default (erf-based, not tanh approximation)
    return 0.5 * x * (1.0 + jax.lax.erf(x * (1.0 / math.sqrt(2.0))))


def _layer_norm(x, gamma, beta, eps):
    mu = jnp.mean(x, axis=-1, keepdims=True)
    var = jnp.mean((x - mu) ** 2, axis=-1, keepdims=True)
    return (x - mu) * jax.lax.rsqrt(var + eps) * gamma + beta


def _round_up(a, m):
    return (a + m - 1) // m * m


def _vmem_capacity_bytes():
    try:
        return int(pltpu.get_tpu_info().vmem_capacity_bytes)
    except Exception:
        return 64 * 1024 * 1024          # assume the smallest (v7x per-TC) budget


def _vmem_limit_bytes():
    cap = _vmem_capacity_bytes()
    # leave headroom for compiler-internal scratch / output double-buffers
    return int(min(cap - 8 * 1024 * 1024, 100 * 1024 * 1024))


def _big_vmem():
    return _vmem_capacity_bytes() >= 96 * 1024 * 1024


def _const_spec(shape, *, single_buffer):
    """BlockSpec for weights that are identical at every grid step."""
    idx = lambda *_: (0,) * len(shape)
    if single_buffer:
        # constant blocks never change -> single-buffer, halves their VMEM cost
        return pl.BlockSpec(shape, idx, pipeline_mode=pl.Buffered(1))
    return pl.BlockSpec(shape, idx)


# ----------------------------- Pallas kernels -------------------------------

def encoder_layer_kernel(x_ref, mask_ref,
                         wq_ref, bq_ref, wk_ref, bk_ref, wv_ref, bv_ref,
                         wo_ref, bo_ref, ln1g_ref, ln1b_ref,
                         w1_ref, b1_ref, w2_ref, b2_ref,
                         ln2g_ref, ln2b_ref,
                         o_ref):
    """One post-LN transformer encoder layer (single head).

    Block holds G batch elements: projections run on the flattened [G*S, H]
    slab (big MXU tiles); attention uses flash-style KV tiling with an online
    softmax; the FFN is tiled over the intermediate dim.
    """
    g, s, h = x_ref.shape
    f_total = w1_ref.shape[1]
    rows = g * s

    x = x_ref[...].reshape(rows, h)               # fp32 [G*S, H]
    mask = mask_ref[...]                           # fp32 [G, 1, S] (1.0 attend)
    x_bf = x.astype(jnp.bfloat16)

    q = jnp.dot(x_bf, wq_ref[...], preferred_element_type=jnp.float32) + bq_ref[...]
    k = jnp.dot(x_bf, wk_ref[...], preferred_element_type=jnp.float32) + bk_ref[...]
    v = jnp.dot(x_bf, wv_ref[...], preferred_element_type=jnp.float32) + bv_ref[...]
    q3 = q.reshape(g, s, h).astype(jnp.bfloat16)
    k3 = k.reshape(g, s, h).astype(jnp.bfloat16)
    v3 = v.reshape(g, s, h).astype(jnp.bfloat16)

    # flash-style KV tiling: peak live score block is [G, S, kv_t], not [G,S,S]
    kv_t = 256 if (s % 256 == 0) else s
    scale = 1.0 / math.sqrt(h)
    m_i = jnp.full((g, s, 1), -jnp.inf, jnp.float32)
    l_i = jnp.zeros((g, s, 1), jnp.float32)
    acc = jnp.zeros((g, s, h), jnp.float32)
    for j in range(s // kv_t):
        lo, hi = j * kv_t, (j + 1) * kv_t
        # batched contraction of last dims -> no k.T relayout through the XLU
        sc = jnp.einsum("gqd,gkd->gqk", q3, k3[:, lo:hi, :],
                        preferred_element_type=jnp.float32)
        sc = sc * scale + (mask[:, :, lo:hi] - 1.0) * 1e4
        m_new = jnp.maximum(m_i, jnp.max(sc, axis=-1, keepdims=True))
        alpha = jnp.exp(m_i - m_new)
        p = jnp.exp(sc - m_new)
        l_i = alpha * l_i + jnp.sum(p, axis=-1, keepdims=True)
        acc = alpha * acc + jnp.einsum("gqk,gkd->gqd", p.astype(jnp.bfloat16),
                                       v3[:, lo:hi, :],
                                       preferred_element_type=jnp.float32)
        m_i = m_new
    ctx = (acc * pl.reciprocal(l_i, approx=True)).reshape(rows, h)

    attn = jnp.dot(ctx.astype(jnp.bfloat16), wo_ref[...],
                   preferred_element_type=jnp.float32) + bo_ref[...]
    h1 = _layer_norm(x + attn, ln1g_ref[...], ln1b_ref[...], 1e-12)
    h1_bf = h1.astype(jnp.bfloat16)

    # FFN tiled over the intermediate dim: live GELU intermediate is [rows, tf]
    tf = 256 if (f_total % 256 == 0) else f_total
    ff = jnp.zeros((rows, h), jnp.float32)
    for j in range(f_total // tf):
        lo, hi = j * tf, (j + 1) * tf
        a = _gelu_exact(jnp.dot(h1_bf, w1_ref[:, lo:hi],
                                preferred_element_type=jnp.float32)
                        + b1_ref[:, lo:hi])
        ff = ff + jnp.dot(a.astype(jnp.bfloat16), w2_ref[lo:hi, :],
                          preferred_element_type=jnp.float32)
    ff = ff + b2_ref[...]

    out = _layer_norm(h1 + ff, ln2g_ref[...], ln2b_ref[...], 1e-12)
    o_ref[...] = out.reshape(g, s, h)


def mlm_head_ce_kernel(x_ref, labels_ref,
                       w1_ref, b1_ref, lng_ref, lnb_ref,
                       w2_ref, b2_ref,
                       logits_ref, ce_ref,
                       h_sc, m_sc, l_sc, tgt_sc):
    """mlm_head = Linear -> GELU -> LayerNorm -> Linear, tiled over
    (row tiles, vocab tiles) with an online logsumexp over V.  The per-row
    masked CE (ignore_index=-100) is written as a tiny (TN,1) output on the
    last vocab step; the mean over valid tokens is taken outside the kernel."""
    v = pl.program_id(1)
    tv = logits_ref.shape[1]

    @pl.when(v == 0)
    def _():
        # head transform is independent of the vocab tile: compute once per
        # row tile and keep it (bf16) in VMEM scratch for every V step.
        x = x_ref[...]
        hh = jnp.dot(x.astype(jnp.bfloat16), w1_ref[...],
                     preferred_element_type=jnp.float32) + b1_ref[...]
        hh = _gelu_exact(hh)
        # nn.LayerNorm default eps=1e-5 (the head builds a plain nn.LayerNorm)
        hh = _layer_norm(hh, lng_ref[...], lnb_ref[...], 1e-5)
        h_sc[...] = hh.astype(jnp.bfloat16)
        m_sc[...] = jnp.full(m_sc.shape, -jnp.inf, m_sc.dtype)
        l_sc[...] = jnp.zeros_like(l_sc)
        tgt_sc[...] = jnp.zeros_like(tgt_sc)

    logits = jnp.dot(h_sc[...], w2_ref[...],
                     preferred_element_type=jnp.float32) + b2_ref[...]
    logits_ref[...] = logits.astype(logits_ref.dtype)   # bf16, lane-dense store

    labels = labels_ref[...]                              # [TN, 1] int32
    n = logits.shape[0]
    cls = v * tv + jax.lax.broadcasted_iota(jnp.int32, (n, tv), 1)
    tgt_sc[...] += jnp.sum(jnp.where(cls == labels, logits, 0.0),
                           axis=-1, keepdims=True)
    m_new = jnp.maximum(m_sc[...], jnp.max(logits, axis=-1, keepdims=True))
    l_sc[...] = (l_sc[...] * jnp.exp(m_sc[...] - m_new)
                 + jnp.sum(jnp.exp(logits - m_new), axis=-1, keepdims=True))
    m_sc[...] = m_new

    @pl.when(v == pl.num_programs(1) - 1)
    def _():
        valid = (labels != -100).astype(jnp.float32)
        lse = m_sc[...] + jnp.log(l_sc[...])
        ce_ref[...] = (lse - tgt_sc[...]) * valid


# ----------------------------- wrappers --------------------------------------

def run_encoder_layer(x, mask, p, *, rows_per_tile=None):
    B, S, H = x.shape
    F = p["w1"].shape[1]
    if rows_per_tile is None:
        # bigger row slabs on the 128 MiB-VMEM parts (v5e/v6e), 256 on v7x
        rows_per_tile = 512 if _big_vmem() else 256
    # cap G at B//2 so the parallel grid has >= 2 steps (both v7x TensorCores)
    g_cap = B // 2 if B >= 2 else 1
    G = max(1, min(g_cap, rows_per_tile // max(S, 1)))
    while B % G != 0:
        G -= 1

    flops = 2 * B * S * H * (4 * H + 2 * F) + 4 * B * S * S * H
    bytes_accessed = (8 * B * S * H                      # x in (f32) + out (f32)
                      + 2 * (4 * H * H + 2 * H * F)      # bf16 weights
                      + 4 * B * S)                       # mask
    transcendentals = B * S * S + B * S * F

    args = (x, mask,
            p["wq"], p["bq"], p["wk"], p["bk"], p["wv"], p["bv"],
            p["wo"], p["bo"], p["ln1_g"], p["ln1_b"],
            p["w1"], p["b1"], p["w2"], p["b2"],
            p["ln2_g"], p["ln2_b"])

    def build(single_buffer):
        const = functools.partial(_const_spec, single_buffer=single_buffer)
        return pl.pallas_call(
            encoder_layer_kernel,
            out_shape=jax.ShapeDtypeStruct((B, S, H), jnp.float32),
            grid=(B // G,),
            in_specs=[
                pl.BlockSpec((G, S, H), lambda b: (b, 0, 0)),
                pl.BlockSpec((G, 1, S), lambda b: (b, 0, 0)),
                const((H, H)), const((1, H)),      # wq, bq
                const((H, H)), const((1, H)),      # wk, bk
                const((H, H)), const((1, H)),      # wv, bv
                const((H, H)), const((1, H)),      # wo, bo
                const((1, H)), const((1, H)),      # ln1 gamma, beta
                const((H, F)), const((1, F)),      # ffn w1, b1
                const((F, H)), const((1, H)),      # ffn w2, b2
                const((1, H)), const((1, H)),      # ln2 gamma, beta
            ],
            out_specs=pl.BlockSpec((G, S, H), lambda b: (b, 0, 0)),
            compiler_params=pltpu.CompilerParams(
                dimension_semantics=("parallel",),
                vmem_limit_bytes=_vmem_limit_bytes()),
            cost_estimate=pl.CostEstimate(flops=flops,
                                          bytes_accessed=bytes_accessed,
                                          transcendentals=transcendentals),
        )

    try:
        return build(True)(*args)
    except Exception:
        # fall back to default double-buffered weights if Buffered(1) is
        # rejected by this jax/Mosaic version
        return build(False)(*args)


def run_mlm_head_and_ce(x_flat, labels_flat, p):
    """Tiled over (rows of B*S) x (vocab); returns (bf16 logits[N, V], loss)."""
    N, H = x_flat.shape
    V = p["head_w2"].shape[1]

    big = _big_vmem()
    TN = 512 if big else 256
    if N < 2 * TN:
        # small inputs: still >= 2 parallel row-tile grid steps, rows % 8 == 0
        TN = max(8, _round_up(N, 16) // 2)
    N_pad = _round_up(N, TN)
    if N_pad != N:
        x_flat = jnp.pad(x_flat, ((0, N_pad - N), (0, 0)))
        labels_pad = jnp.pad(labels_flat, (0, N_pad - N), constant_values=-100)
    else:
        labels_pad = labels_flat
    labels2d = labels_pad.reshape(N_pad, 1).astype(jnp.int32)

    # vocab tile for the online-logsumexp loop
    # TODO(synk): mask padded vocab columns for V not divisible by 128.
    if big and V % 512 == 0:
        TV = 512
    elif V % 256 == 0:
        TV = 256
    elif V % 128 == 0:
        TV = 128
    else:
        TV = V
    NT, NV = N_pad // TN, V // TV

    flops = 2 * N_pad * H * H + 2 * N_pad * H * V
    bytes_accessed = (4 * N_pad * H + 2 * (H * H + H * V)
                      + 2 * N_pad * V + 8 * N_pad)
    transcendentals = N_pad * H + N_pad * V

    args = (x_flat, labels2d,
            p["head_w1"], p["head_b1"], p["head_ln_g"], p["head_ln_b"],
            p["head_w2"], p["head_b2"])

    def build(single_buffer):
        const = functools.partial(_const_spec, single_buffer=single_buffer)
        return pl.pallas_call(
            mlm_head_ce_kernel,
            out_shape=(jax.ShapeDtypeStruct((N_pad, V), jnp.bfloat16),
                       jax.ShapeDtypeStruct((N_pad, 1), jnp.float32)),
            grid=(NT, NV),
            in_specs=[
                pl.BlockSpec((TN, H), lambda i, v: (i, 0)),
                pl.BlockSpec((TN, 1), lambda i, v: (i, 0)),
                const((H, H)), const((1, H)),              # head linear1
                const((1, H)), const((1, H)),              # head LN gamma, beta
                pl.BlockSpec((H, TV), lambda i, v: (0, v)),  # head_w2 (varies / v)
                pl.BlockSpec((1, TV), lambda i, v: (0, v)),  # head_b2
            ],
            out_specs=(pl.BlockSpec((TN, TV), lambda i, v: (i, v)),
                       pl.BlockSpec((TN, 1), lambda i, v: (i, 0))),
            scratch_shapes=[pltpu.VMEM((TN, H), jnp.bfloat16),   # head transform
                            pltpu.VMEM((TN, 1), jnp.float32),    # running max
                            pltpu.VMEM((TN, 1), jnp.float32),    # running sumexp
                            pltpu.VMEM((TN, 1), jnp.float32)],   # target logit
            compiler_params=pltpu.CompilerParams(
                dimension_semantics=("parallel", "arbitrary"),
                vmem_limit_bytes=_vmem_limit_bytes()),
            cost_estimate=pl.CostEstimate(flops=flops,
                                          bytes_accessed=bytes_accessed,
                                          transcendentals=transcendentals),
        )

    try:
        logits, ce_rows = build(True)(*args)
    except Exception:
        logits, ce_rows = build(False)(*args)

    num_valid = jnp.sum((labels_flat != -100).astype(jnp.float32))
    # mean over non-ignored tokens; 0/0 -> NaN matches torch CrossEntropyLoss
    loss = jnp.sum(ce_rows) / num_valid
    return logits[:N], loss


def canine_for_masked_lm_forward(params, input_ids, attention_mask, labels=None):
    """Mirrors CanineForMaskedLM.forward: backbone -> mlm_head -> masked CE."""
    B, S = input_ids.shape
    H = params["emb"].shape[1]

    # char embedding lookup (glue; CANINE's hash-bucket embedding sum is part
    # of the backbone TODO above)
    x = jnp.take(params["emb"], input_ids, axis=0).astype(jnp.float32)   # [B,S,H]
    mask = attention_mask.astype(jnp.float32).reshape(B, 1, S)

    sequence_output = run_encoder_layer(x, mask, params)                  # [B,S,H]

    if labels is not None:
        labels_flat = labels.reshape(-1).astype(jnp.int32)
    else:
        labels_flat = jnp.full((B * S,), -100, jnp.int32)

    logits_flat, loss = run_mlm_head_and_ce(
        sequence_output.reshape(B * S, H), labels_flat, params)
    V = logits_flat.shape[-1]
    prediction_scores = logits_flat.reshape(B, S, V)   # bf16 (perf: halves writeback)

    return (loss if labels is not None else None), prediction_scores


# ----------------------------- parameter init --------------------------------

def init_params(key, char_vocab, hidden, ffn, vocab):
    ks = jax.random.split(key, 12)
    bf = jnp.bfloat16
    # matmul weights stored bf16 once (no per-forward fp32->bf16 casts)
    nw = lambda k, shape: (0.02 * jax.random.normal(k, shape)).astype(bf)
    z = lambda shape: jnp.zeros(shape, jnp.float32)
    o = lambda shape: jnp.ones(shape, jnp.float32)
    return {
        # backbone stand-in
        "emb": (0.02 * jax.random.normal(ks[0], (char_vocab, hidden))).astype(jnp.float32),
        "wq": nw(ks[1], (hidden, hidden)), "bq": z((1, hidden)),
        "wk": nw(ks[2], (hidden, hidden)), "bk": z((1, hidden)),
        "wv": nw(ks[3], (hidden, hidden)), "bv": z((1, hidden)),
        "wo": nw(ks[4], (hidden, hidden)), "bo": z((1, hidden)),
        "ln1_g": o((1, hidden)), "ln1_b": z((1, hidden)),
        "w1": nw(ks[5], (hidden, ffn)), "b1": z((1, ffn)),
        "w2": nw(ks[6], (ffn, hidden)), "b2": z((1, hidden)),
        "ln2_g": o((1, hidden)), "ln2_b": z((1, hidden)),
        # mlm_head = Linear -> GELU -> LayerNorm -> Linear (init per _init_weights)
        "head_w1": nw(ks[7], (hidden, hidden)), "head_b1": z((1, hidden)),
        "head_ln_g": o((1, hidden)), "head_ln_b": z((1, hidden)),
        "head_w2": nw(ks[8], (hidden, vocab)), "head_b2": z((1, vocab)),
    }


# ----------------------------- main -------------------------------------------

if __name__ == "__main__":
    # lane-aligned demo sizes: hidden / ffn / vocab are multiples of 128
    B, S, H, F, V = 2, 8, 128, 512, 256   # V plays config.max_position_embeddings
    CHAR_VOCAB = 256

    key = jax.random.PRNGKey(0)
    kp, ki, kl = jax.random.split(key, 3)

    params = init_params(kp, CHAR_VOCAB, H, F, V)
    input_ids = jax.random.randint(ki, (B, S), 0, CHAR_VOCAB, dtype=jnp.int32)
    attention_mask = jnp.ones((B, S), jnp.int32)
    labels = jax.random.randint(kl, (B, S), 0, V, dtype=jnp.int32)
    labels = labels.at[0, 0].set(-100)   # exercise ignore_index=-100 path

    loss, logits = canine_for_masked_lm_forward(params, input_ids,
                                                attention_mask, labels)
    jax.block_until_ready((loss, logits))

    assert logits.shape == (B, S, V)
    assert jnp.isfinite(loss)
    print("KERNEL_OK")
</pallas_src>

<mosaic_0001>
module attributes {stable_mosaic.version = 11 : i64} {
  func.func @encoder_layer_kernel(%arg0: i32, %arg1: memref<1x8x128xf32, #tpu.memory_space<vmem>>, %arg2: memref<1x1x8xf32, #tpu.memory_space<vmem>>, %arg3: memref<128x128xbf16, #tpu.memory_space<vmem>>, %arg4: memref<1x128xf32, #tpu.memory_space<vmem>>, %arg5: memref<128x128xbf16, #tpu.memory_space<vmem>>, %arg6: memref<1x128xf32, #tpu.memory_space<vmem>>, %arg7: memref<128x128xbf16, #tpu.memory_space<vmem>>, %arg8: memref<1x128xf32, #tpu.memory_space<vmem>>, %arg9: memref<128x128xbf16, #tpu.memory_space<vmem>>, %arg10: memref<1x128xf32, #tpu.memory_space<vmem>>, %arg11: memref<1x128xf32, #tpu.memory_space<vmem>>, %arg12: memref<1x128xf32, #tpu.memory_space<vmem>>, %arg13: memref<128x512xbf16, #tpu.memory_space<vmem>>, %arg14: memref<1x512xf32, #tpu.memory_space<vmem>>, %arg15: memref<512x128xbf16, #tpu.memory_space<vmem>>, %arg16: memref<1x128xf32, #tpu.memory_space<vmem>>, %arg17: memref<1x128xf32, #tpu.memory_space<vmem>>, %arg18: memref<1x128xf32, #tpu.memory_space<vmem>>, %arg19: memref<1x8x128xf32, #tpu.memory_space<vmem>>) attributes {dimension_semantics = [#tpu.dimension_semantics<parallel>], iteration_bounds = array<i64: 2>, scalar_prefetch = 0 : i64, scratch_operands = 0 : i64, tpu.core_type = #tpu.core_type<tc>, window_params = [{transform_indices = @transform_0, window_bounds = array<i64: 1, 8, 128>}, {transform_indices = @transform_1, window_bounds = array<i64: 1, 1, 8>}, {pipeline_mode = #tpu.pipeline_mode<synchronous>, transform_indices = @transform_2, window_bounds = array<i64: 128, 128>}, {pipeline_mode = #tpu.pipeline_mode<synchronous>, transform_indices = @transform_3, window_bounds = array<i64: 1, 128>}, {pipeline_mode = #tpu.pipeline_mode<synchronous>, transform_indices = @transform_4, window_bounds = array<i64: 128, 128>}, {pipeline_mode = #tpu.pipeline_mode<synchronous>, transform_indices = @transform_5, window_bounds = array<i64: 1, 128>}, {pipeline_mode = #tpu.pipeline_mode<synchronous>, transform_indices = @transform_6, window_bounds = array<i64: 128, 128>}, {pipeline_mode = #tpu.pipeline_mode<synchronous>, transform_indices = @transform_7, window_bounds = array<i64: 1, 128>}, {pipeline_mode = #tpu.pipeline_mode<synchronous>, transform_indices = @transform_8, window_bounds = array<i64: 128, 128>}, {pipeline_mode = #tpu.pipeline_mode<synchronous>, transform_indices = @transform_9, window_bounds = array<i64: 1, 128>}, {pipeline_mode = #tpu.pipeline_mode<synchronous>, transform_indices = @transform_10, window_bounds = array<i64: 1, 128>}, {pipeline_mode = #tpu.pipeline_mode<synchronous>, transform_indices = @transform_11, window_bounds = array<i64: 1, 128>}, {pipeline_mode = #tpu.pipeline_mode<synchronous>, transform_indices = @transform_12, window_bounds = array<i64: 128, 512>}, {pipeline_mode = #tpu.pipeline_mode<synchronous>, transform_indices = @transform_13, window_bounds = array<i64: 1, 512>}, {pipeline_mode = #tpu.pipeline_mode<synchronous>, transform_indices = @transform_14, window_bounds = array<i64: 512, 128>}, {pipeline_mode = #tpu.pipeline_mode<synchronous>, transform_indices = @transform_15, window_bounds = array<i64: 1, 128>}, {pipeline_mode = #tpu.pipeline_mode<synchronous>, transform_indices = @transform_16, window_bounds = array<i64: 1, 128>}, {pipeline_mode = #tpu.pipeline_mode<synchronous>, transform_indices = @transform_17, window_bounds = array<i64: 1, 128>}, {transform_indices = @transform_18, window_bounds = array<i64: 1, 8, 128>}]} {
    %c0 = arith.constant 0 : index
    %c0_0 = arith.constant 0 : index
    %c0_1 = arith.constant 0 : index
    %0 = vector.load %arg1[%c0, %c0_0, %c0_1] : memref<1x8x128xf32, #tpu.memory_space<vmem>>, vector<1x8x128xf32>
    %1 = vector.shape_cast %0 : vector<1x8x128xf32> to vector<8x128xf32>
    %c0_2 = arith.constant 0 : index
    %c0_3 = arith.constant 0 : index
    %c0_4 = arith.constant 0 : index
    %2 = vector.load %arg2[%c0_2, %c0_3, %c0_4] : memref<1x1x8xf32, #tpu.memory_space<vmem>>, vector<1x1x8xf32>
    %3 = arith.truncf %1 : vector<8x128xf32> to vector<8x128xbf16>
    %c0_5 = arith.constant 0 : index
    %c0_6 = arith.constant 0 : index
    %4 = vector.load %arg3[%c0_5, %c0_6] : memref<128x128xbf16, #tpu.memory_space<vmem>>, vector<128x128xbf16>
    %cst = arith.constant dense<0.000000e+00> : vector<8x128xf32>
    %5 = tpu.matmul %3, %4, %cst {dimension_numbers = #tpu.dot_dimension_numbers<[1], [0], [0], [1], [0, 0, 1, 1], [], []>} : vector<8x128xbf16>, vector<128x128xbf16>, vector<8x128xf32> -> vector<8x128xf32>
    %c0_7 = arith.constant 0 : index
    %c0_8 = arith.constant 0 : index
    %6 = vector.load %arg4[%c0_7, %c0_8] : memref<1x128xf32, #tpu.memory_space<vmem>>, vector<1x128xf32>
    %7 = vector.broadcast %6 : vector<1x128xf32> to vector<8x128xf32>
    %8 = arith.addf %5, %7 : vector<8x128xf32>
    %c0_9 = arith.constant 0 : index
    %c0_10 = arith.constant 0 : index
    %9 = vector.load %arg5[%c0_9, %c0_10] : memref<128x128xbf16, #tpu.memory_space<vmem>>, vector<128x128xbf16>
    %cst_11 = arith.constant dense<0.000000e+00> : vector<8x128xf32>
    %10 = tpu.matmul %3, %9, %cst_11 {dimension_numbers = #tpu.dot_dimension_numbers<[1], [0], [0], [1], [0, 0, 1, 1], [], []>} : vector<8x128xbf16>, vector<128x128xbf16>, vector<8x128xf32> -> vector<8x128xf32>
    %c0_12 = arith.constant 0 : index
    %c0_13 = arith.constant 0 : index
    %11 = vector.load %arg6[%c0_12, %c0_13] : memref<1x128xf32, #tpu.memory_space<vmem>>, vector<1x128xf32>
    %12 = vector.broadcast %11 : vector<1x128xf32> to vector<8x128xf32>
    %13 = arith.addf %10, %12 : vector<8x128xf32>
    %c0_14 = arith.constant 0 : index
    %c0_15 = arith.constant 0 : index
    %14 = vector.load %arg7[%c0_14, %c0_15] : memref<128x128xbf16, #tpu.memory_space<vmem>>, vector<128x128xbf16>
    %cst_16 = arith.constant dense<0.000000e+00> : vector<8x128xf32>
    %15 = tpu.matmul %3, %14, %cst_16 {dimension_numbers = #tpu.dot_dimension_numbers<[1], [0], [0], [1], [0, 0, 1, 1], [], []>} : vector<8x128xbf16>, vector<128x128xbf16>, vector<8x128xf32> -> vector<8x128xf32>
    %c0_17 = arith.constant 0 : index
    %c0_18 = arith.constant 0 : index
    %16 = vector.load %arg8[%c0_17, %c0_18] : memref<1x128xf32, #tpu.memory_space<vmem>>, vector<1x128xf32>
    %17 = vector.broadcast %16 : vector<1x128xf32> to vector<8x128xf32>
    %18 = arith.addf %15, %17 : vector<8x128xf32>
    %19 = vector.shape_cast %8 : vector<8x128xf32> to vector<1x8x128xf32>
    %20 = arith.truncf %19 : vector<1x8x128xf32> to vector<1x8x128xbf16>
    %21 = vector.shape_cast %13 : vector<8x128xf32> to vector<1x8x128xf32>
    %22 = arith.truncf %21 : vector<1x8x128xf32> to vector<1x8x128xbf16>
    %23 = vector.shape_cast %18 : vector<8x128xf32> to vector<1x8x128xf32>
    %24 = arith.truncf %23 : vector<1x8x128xf32> to vector<1x8x128xbf16>
    %cst_19 = arith.constant 0xFF800000 : f32
    %25 = vector.broadcast %cst_19 : f32 to vector<1x8x1xf32>
    %cst_20 = arith.constant 0.000000e+00 : f32
    %26 = vector.broadcast %cst_20 : f32 to vector<1x8x1xf32>
    %cst_21 = arith.constant 0.000000e+00 : f32
    %27 = vector.broadcast %cst_21 : f32 to vector<1x8x128xf32>
    "tpu.trace_start"() <{level = 10 : i32, message = "gqd,gkd->gqk"}> : () -> ()
    %cst_22 = arith.constant dense<0.000000e+00> : vector<1x8x8xf32>
    %28 = tpu.matmul %20, %22, %cst_22 {dimension_numbers = #tpu.dot_dimension_numbers<[2], [2], [1], [1], [0, 0, 0, 1, 1, 1], [0], [0]>} : vector<1x8x128xbf16>, vector<1x8x128xbf16>, vector<1x8x8xf32> -> vector<1x8x8xf32>
    "tpu.trace_stop"() : () -> ()
    %cst_23 = arith.constant 0.0883883461 : f32
    %29 = vector.broadcast %cst_23 : f32 to vector<1x8x8xf32>
    %30 = arith.mulf %28, %29 : vector<1x8x8xf32>
    %cst_24 = arith.constant 1.000000e+00 : f32
    %31 = vector.broadcast %cst_24 : f32 to vector<1x1x8xf32>
    %32 = arith.subf %2, %31 : vector<1x1x8xf32>
    %cst_25 = arith.constant 1.000000e+04 : f32
    %33 = vector.broadcast %cst_25 : f32 to vector<1x1x8xf32>
    %34 = arith.mulf %32, %33 : vector<1x1x8xf32>
    %35 = vector.broadcast %34 : vector<1x1x8xf32> to vector<1x8x8xf32>
    %36 = arith.addf %30, %35 : vector<1x8x8xf32>
    %cst_26 = arith.constant dense<0xFF800000> : vector<1x8xf32>
    %37 = vector.multi_reduction <maximumf>, %36, %cst_26 [2] : vector<1x8x8xf32> to vector<1x8xf32>
    %38 = vector.shape_cast %37 : vector<1x8xf32> to vector<1x8x1xf32>
    %39 = arith.maximumf %25, %38 : vector<1x8x1xf32>
    %40 = arith.subf %25, %39 : vector<1x8x1xf32>
    %41 = math.exp %40 : vector<1x8x1xf32>
    %42 = vector.broadcast %39 : vector<1x8x1xf32> to vector<1x8x8xf32>
    %43 = arith.subf %36, %42 : vector<1x8x8xf32>
    %44 = math.exp %43 : vector<1x8x8xf32>
    %45 = arith.mulf %41, %26 : vector<1x8x1xf32>
    %cst_27 = arith.constant dense<0.000000e+00> : vector<1x8xf32>
    %46 = vector.multi_reduction <add>, %44, %cst_27 [2] : vector<1x8x8xf32> to vector<1x8xf32>
    %47 = vector.shape_cast %46 : vector<1x8xf32> to vector<1x8x1xf32>
    %48 = arith.addf %45, %47 : vector<1x8x1xf32>
    %49 = vector.broadcast %41 : vector<1x8x1xf32> to vector<1x8x128xf32>
    %50 = arith.mulf %49, %27 : vector<1x8x128xf32>
    %51 = arith.truncf %44 : vector<1x8x8xf32> to vector<1x8x8xbf16>
    "tpu.trace_start"() <{level = 10 : i32, message = "gqk,gkd->gqd"}> : () -> ()
    %cst_28 = arith.constant dense<0.000000e+00> : vector<1x8x128xf32>
    %52 = tpu.matmul %51, %24, %cst_28 {dimension_numbers = #tpu.dot_dimension_numbers<[2], [1], [1], [2], [0, 0, 0, 1, 1, 2], [0], [0]>} : vector<1x8x8xbf16>, vector<1x8x128xbf16>, vector<1x8x128xf32> -> vector<1x8x128xf32>
    "tpu.trace_stop"() : () -> ()
    %53 = arith.addf %50, %52 : vector<1x8x128xf32>
    %54 = tpu.reciprocal %48 {approx = true} : vector<1x8x1xf32> -> vector<1x8x1xf32>
    %55 = vector.broadcast %54 : vector<1x8x1xf32> to vector<1x8x128xf32>
    %56 = arith.mulf %53, %55 : vector<1x8x128xf32>
    %57 = vector.shape_cast %56 : vector<1x8x128xf32> to vector<8x128xf32>
    %58 = arith.truncf %57 : vector<8x128xf32> to vector<8x128xbf16>
    %c0_29 = arith.constant 0 : index
    %c0_30 = arith.constant 0 : index
    %59 = vector.load %arg9[%c0_29, %c0_30] : memref<128x128xbf16, #tpu.memory_space<vmem>>, vector<128x128xbf16>
    %cst_31 = arith.constant dense<0.000000e+00> : vector<8x128xf32>
    %60 = tpu.matmul %58, %59, %cst_31 {dimension_numbers = #tpu.dot_dimension_numbers<[1], [0], [0], [1], [0, 0, 1, 1], [], []>} : vector<8x128xbf16>, vector<128x128xbf16>, vector<8x128xf32> -> vector<8x128xf32>
    %c0_32 = arith.constant 0 : index
    %c0_33 = arith.constant 0 : index
    %61 = vector.load %arg10[%c0_32, %c0_33] : memref<1x128xf32, #tpu.memory_space<vmem>>, vector<1x128xf32>
    %62 = vector.broadcast %61 : vector<1x128xf32> to vector<8x128xf32>
    %63 = arith.addf %60, %62 : vector<8x128xf32>
    %64 = arith.addf %1, %63 : vector<8x128xf32>
    %c0_34 = arith.constant 0 : index
    %c0_35 = arith.constant 0 : index
    %65 = vector.load %arg11[%c0_34, %c0_35] : memref<1x128xf32, #tpu.memory_space<vmem>>, vector<1x128xf32>
    %c0_36 = arith.constant 0 : index
    %c0_37 = arith.constant 0 : index
    %66 = vector.load %arg12[%c0_36, %c0_37] : memref<1x128xf32, #tpu.memory_space<vmem>>, vector<1x128xf32>
    %cst_38 = arith.constant dense<0.000000e+00> : vector<8xf32>
    %67 = vector.multi_reduction <add>, %64, %cst_38 [1] : vector<8x128xf32> to vector<8xf32>
    %68 = vector.shape_cast %67 : vector<8xf32> to vector<8x1xf32>
    %cst_39 = arith.constant 1.280000e+02 : f32
    %69 = vector.broadcast %cst_39 : f32 to vector<8x1xf32>
    %70 = arith.divf %68, %69 : vector<8x1xf32>
    %71 = vector.broadcast %70 : vector<8x1xf32> to vector<8x128xf32>
    %72 = arith.subf %64, %71 : vector<8x128xf32>
    %73 = arith.mulf %72, %72 : vector<8x128xf32>
    %cst_40 = arith.constant dense<0.000000e+00> : vector<8xf32>
    %74 = vector.multi_reduction <add>, %73, %cst_40 [1] : vector<8x128xf32> to vector<8xf32>
    %75 = vector.shape_cast %74 : vector<8xf32> to vector<8x1xf32>
    %cst_41 = arith.constant 1.280000e+02 : f32
    %76 = vector.broadcast %cst_41 : f32 to vector<8x1xf32>
    %77 = arith.divf %75, %76 : vector<8x1xf32>
    %78 = vector.broadcast %70 : vector<8x1xf32> to vector<8x128xf32>
    %79 = arith.subf %64, %78 : vector<8x128xf32>
    %cst_42 = arith.constant 9.99999996E-13 : f32
    %80 = vector.broadcast %cst_42 : f32 to vector<8x1xf32>
    %81 = arith.addf %77, %80 : vector<8x1xf32>
    %82 = math.rsqrt %81 : vector<8x1xf32>
    %83 = vector.broadcast %82 : vector<8x1xf32> to vector<8x128xf32>
    %84 = arith.mulf %79, %83 : vector<8x128xf32>
    %85 = vector.broadcast %65 : vector<1x128xf32> to vector<8x128xf32>
    %86 = arith.mulf %84, %85 : vector<8x128xf32>
    %87 = vector.broadcast %66 : vector<1x128xf32> to vector<8x128xf32>
    %88 = arith.addf %86, %87 : vector<8x128xf32>
    %89 = arith.truncf %88 : vector<8x128xf32> to vector<8x128xbf16>
    %cst_43 = arith.constant 0.000000e+00 : f32
    %90 = vector.broadcast %cst_43 : f32 to vector<8x128xf32>
    %c0_44 = arith.constant 0 : index
    %c0_45 = arith.constant 0 : index
    %91 = vector.load %arg13[%c0_44, %c0_45] : memref<128x512xbf16, #tpu.memory_space<vmem>>, vector<128x256xbf16>
    %cst_46 = arith.constant dense<0.000000e+00> : vector<8x256xf32>
    %92 = tpu.matmul %89, %91, %cst_46 {dimension_numbers = #tpu.dot_dimension_numbers<[1], [0], [0], [1], [0, 0, 1, 1], [], []>} : vector<8x128xbf16>, vector<128x256xbf16>, vector<8x256xf32> -> vector<8x256xf32>
    %c0_47 = arith.constant 0 : index
    %c0_48 = arith.constant 0 : index
    %93 = vector.load %arg14[%c0_47, %c0_48] : memref<1x512xf32, #tpu.memory_space<vmem>>, vector<1x256xf32>
    %94 = vector.broadcast %93 : vector<1x256xf32> to vector<8x256xf32>
    %95 = arith.addf %92, %94 : vector<8x256xf32>
    %cst_49 = arith.constant 5.000000e-01 : f32
    %96 = vector.broadcast %cst_49 : f32 to vector<8x256xf32>
    %97 = arith.mulf %96, %95 : vector<8x256xf32>
    %cst_50 = arith.constant 0.707106769 : f32
    %98 = vector.broadcast %cst_50 : f32 to vector<8x256xf32>
    %99 = arith.mulf %95, %98 : vector<8x256xf32>
    %100 = math.erf %99 : vector<8x256xf32>
    %cst_51 = arith.constant 1.000000e+00 : f32
    %101 = vector.broadcast %cst_51 : f32 to vector<8x256xf32>
    %102 = arith.addf %101, %100 : vector<8x256xf32>
    %103 = arith.mulf %97, %102 : vector<8x256xf32>
    %104 = arith.truncf %103 : vector<8x256xf32> to vector<8x256xbf16>
    %c0_52 = arith.constant 0 : index
    %c0_53 = arith.constant 0 : index
    %105 = vector.load %arg15[%c0_52, %c0_53] : memref<512x128xbf16, #tpu.memory_space<vmem>>, vector<256x128xbf16>
    %cst_54 = arith.constant dense<0.000000e+00> : vector<8x128xf32>
    %106 = tpu.matmul %104, %105, %cst_54 {dimension_numbers = #tpu.dot_dimension_numbers<[1], [0], [0], [1], [0, 0, 1, 1], [], []>} : vector<8x256xbf16>, vector<256x128xbf16>, vector<8x128xf32> -> vector<8x128xf32>
    %107 = arith.addf %90, %106 : vector<8x128xf32>
    %c0_55 = arith.constant 0 : index
    %c256 = arith.constant 256 : index
    %108 = vector.load %arg13[%c0_55, %c256] : memref<128x512xbf16, #tpu.memory_space<vmem>>, vector<128x256xbf16>
    %cst_56 = arith.constant dense<0.000000e+00> : vector<8x256xf32>
    %109 = tpu.matmul %89, %108, %cst_56 {dimension_numbers = #tpu.dot_dimension_numbers<[1], [0], [0], [1], [0, 0, 1, 1], [], []>} : vector<8x128xbf16>, vector<128x256xbf16>, vector<8x256xf32> -> vector<8x256xf32>
    %c0_57 = arith.constant 0 : index
    %c256_58 = arith.constant 256 : index
    %110 = vector.load %arg14[%c0_57, %c256_58] : memref<1x512xf32, #tpu.memory_space<vmem>>, vector<1x256xf32>
    %111 = vector.broadcast %110 : vector<1x256xf32> to vector<8x256xf32>
    %112 = arith.addf %109, %111 : vector<8x256xf32>
    %cst_59 = arith.constant 5.000000e-01 : f32
    %113 = vector.broadcast %cst_59 : f32 to vector<8x256xf32>
    %114 = arith.mulf %113, %112 : vector<8x256xf32>
    %cst_60 = arith.constant 0.707106769 : f32
    %115 = vector.broadcast %cst_60 : f32 to vector<8x256xf32>
    %116 = arith.mulf %112, %115 : vector<8x256xf32>
    %117 = math.erf %116 : vector<8x256xf32>
    %cst_61 = arith.constant 1.000000e+00 : f32
    %118 = vector.broadcast %cst_61 : f32 to vector<8x256xf32>
    %119 = arith.addf %118, %117 : vector<8x256xf32>
    %120 = arith.mulf %114, %119 : vector<8x256xf32>
    %121 = arith.truncf %120 : vector<8x256xf32> to vector<8x256xbf16>
    %c256_62 = arith.constant 256 : index
    %c0_63 = arith.constant 0 : index
    %122 = vector.load %arg15[%c256_62, %c0_63] : memref<512x128xbf16, #tpu.memory_space<vmem>>, vector<256x128xbf16>
    %cst_64 = arith.constant dense<0.000000e+00> : vector<8x128xf32>
    %123 = tpu.matmul %121, %122, %cst_64 {dimension_numbers = #tpu.dot_dimension_numbers<[1], [0], [0], [1], [0, 0, 1, 1], [], []>} : vector<8x256xbf16>, vector<256x128xbf16>, vector<8x128xf32> -> vector<8x128xf32>
    %124 = arith.addf %107, %123 : vector<8x128xf32>
    %c0_65 = arith.constant 0 : index
    %c0_66 = arith.constant 0 : index
    %125 = vector.load %arg16[%c0_65, %c0_66] : memref<1x128xf32, #tpu.memory_space<vmem>>, vector<1x128xf32>
    %126 = vector.broadcast %125 : vector<1x128xf32> to vector<8x128xf32>
    %127 = arith.addf %124, %126 : vector<8x128xf32>
    %128 = arith.addf %88, %127 : vector<8x128xf32>
    %c0_67 = arith.constant 0 : index
    %c0_68 = arith.constant 0 : index
    %129 = vector.load %arg17[%c0_67, %c0_68] : memref<1x128xf32, #tpu.memory_space<vmem>>, vector<1x128xf32>
    %c0_69 = arith.constant 0 : index
    %c0_70 = arith.constant 0 : index
    %130 = vector.load %arg18[%c0_69, %c0_70] : memref<1x128xf32, #tpu.memory_space<vmem>>, vector<1x128xf32>
    %cst_71 = arith.constant dense<0.000000e+00> : vector<8xf32>
    %131 = vector.multi_reduction <add>, %128, %cst_71 [1] : vector<8x128xf32> to vector<8xf32>
    %132 = vector.shape_cast %131 : vector<8xf32> to vector<8x1xf32>
    %cst_72 = arith.constant 1.280000e+02 : f32
    %133 = vector.broadcast %cst_72 : f32 to vector<8x1xf32>
    %134 = arith.divf %132, %133 : vector<8x1xf32>
    %135 = vector.broadcast %134 : vector<8x1xf32> to vector<8x128xf32>
    %136 = arith.subf %128, %135 : vector<8x128xf32>
    %137 = arith.mulf %136, %136 : vector<8x128xf32>
    %cst_73 = arith.constant dense<0.000000e+00> : vector<8xf32>
    %138 = vector.multi_reduction <add>, %137, %cst_73 [1] : vector<8x128xf32> to vector<8xf32>
    %139 = vector.shape_cast %138 : vector<8xf32> to vector<8x1xf32>
    %cst_74 = arith.constant 1.280000e+02 : f32
    %140 = vector.broadcast %cst_74 : f32 to vector<8x1xf32>
    %141 = arith.divf %139, %140 : vector<8x1xf32>
    %142 = vector.broadcast %134 : vector<8x1xf32> to vector<8x128xf32>
    %143 = arith.subf %128, %142 : vector<8x128xf32>
    %cst_75 = arith.constant 9.99999996E-13 : f32
    %144 = vector.broadcast %cst_75 : f32 to vector<8x1xf32>
    %145 = arith.addf %141, %144 : vector<8x1xf32>
    %146 = math.rsqrt %145 : vector<8x1xf32>
    %147 = vector.broadcast %146 : vector<8x1xf32> to vector<8x128xf32>
    %148 = arith.mulf %143, %147 : vector<8x128xf32>
    %149 = vector.broadcast %129 : vector<1x128xf32> to vector<8x128xf32>
    %150 = arith.mulf %148, %149 : vector<8x128xf32>
    %151 = vector.broadcast %130 : vector<1x128xf32> to vector<8x128xf32>
    %152 = arith.addf %150, %151 : vector<8x128xf32>
    %153 = vector.shape_cast %152 : vector<8x128xf32> to vector<1x8x128xf32>
    %c0_76 = arith.constant 0 : index
    %c0_77 = arith.constant 0 : index
    %c0_78 = arith.constant 0 : index
    %154 = vector.load %arg19[%c0_76, %c0_77, %c0_78] : memref<1x8x128xf32, #tpu.memory_space<vmem>>, vector<1x8x128xf32>
    tpu.vector_store %arg19[%c0_76, %c0_77, %c0_78], %153 {strides = array<i32>} : memref<1x8x128xf32, #tpu.memory_space<vmem>>, vector<1x8x128xf32>,
    return
  }
  func.func @transform_0(%arg0: i32) -> (i32, i32, i32) {
    %c0_i32 = arith.constant 0 : i32
    %c0_i32_0 = arith.constant 0 : i32
    %c0_i32_1 = arith.constant 0 : i32
    return %arg0, %c0_i32, %c0_i32_0 : i32, i32, i32
  }
  func.func @transform_1(%arg0: i32) -> (i32, i32, i32) {
    %c0_i32 = arith.constant 0 : i32
    %c0_i32_0 = arith.constant 0 : i32
    %c0_i32_1 = arith.constant 0 : i32
    return %arg0, %c0_i32, %c0_i32_0 : i32, i32, i32
  }
  func.func @transform_2(%arg0: i32) -> (i32, i32) {
    %c0_i32 = arith.constant 0 : i32
    %c0_i32_0 = arith.constant 0 : i32
    %c0_i32_1 = arith.constant 0 : i32
    return %c0_i32, %c0_i32_0 : i32, i32
  }
  func.func @transform_3(%arg0: i32) -> (i32, i32) {
    %c0_i32 = arith.constant 0 : i32
    %c0_i32_0 = arith.constant 0 : i32
    %c0_i32_1 = arith.constant 0 : i32
    return %c0_i32, %c0_i32_0 : i32, i32
  }
  func.func @transform_4(%arg0: i32) -> (i32, i32) {
    %c0_i32 = arith.constant 0 : i32
    %c0_i32_0 = arith.constant 0 : i32
    %c0_i32_1 = arith.constant 0 : i32
    return %c0_i32, %c0_i32_0 : i32, i32
  }
  func.func @transform_5(%arg0: i32) -> (i32, i32) {
    %c0_i32 = arith.constant 0 : i32
    %c0_i32_0 = arith.constant 0 : i32
    %c0_i32_1 = arith.constant 0 : i32
    return %c0_i32, %c0_i32_0 : i32, i32
  }
  func.func @transform_6(%arg0: i32) -> (i32, i32) {
    %c0_i32 = arith.constant 0 : i32
    %c0_i32_0 = arith.constant 0 : i32
    %c0_i32_1 = arith.constant 0 : i32
    return %c0_i32, %c0_i32_0 : i32, i32
  }
  func.func @transform_7(%arg0: i32) -> (i32, i32) {
    %c0_i32 = arith.constant 0 : i32
    %c0_i32_0 = arith.constant 0 : i32
    %c0_i32_1 = arith.constant 0 : i32
    return %c0_i32, %c0_i32_0 : i32, i32
  }
  func.func @transform_8(%arg0: i32) -> (i32, i32) {
    %c0_i32 = arith.constant 0 : i32
    %c0_i32_0 = arith.constant 0 : i32
    %c0_i32_1 = arith.constant 0 : i32
    return %c0_i32, %c0_i32_0 : i32, i32
  }
  func.func @transform_9(%arg0: i32) -> (i32, i32) {
    %c0_i32 = arith.constant 0 : i32
    %c0_i32_0 = arith.constant 0 : i32
    %c0_i32_1 = arith.constant 0 : i32
    return %c0_i32, %c0_i32_0 : i32, i32
  }
  func.func @transform_10(%arg0: i32) -> (i32, i32) {
    %c0_i32 = arith.constant 0 : i32
    %c0_i32_0 = arith.constant 0 : i32
    %c0_i32_1 = arith.constant 0 : i32
    return %c0_i32, %c0_i32_0 : i32, i32
  }
  func.func @transform_11(%arg0: i32) -> (i32, i32) {
    %c0_i32 = arith.constant 0 : i32
    %c0_i32_0 = arith.constant 0 : i32
    %c0_i32_1 = arith.constant 0 : i32
    return %c0_i32, %c0_i32_0 : i32, i32
  }
  func.func @transform_12(%arg0: i32) -> (i32, i32) {
    %c0_i32 = arith.constant 0 : i32
    %c0_i32_0 = arith.constant 0 : i32
    %c0_i32_1 = arith.constant 0 : i32
    return %c0_i32, %c0_i32_0 : i32, i32
  }
  func.func @transform_13(%arg0: i32) -> (i32, i32) {
    %c0_i32 = arith.constant 0 : i32
    %c0_i32_0 = arith.constant 0 : i32
    %c0_i32_1 = arith.constant 0 : i32
    return %c0_i32, %c0_i32_0 : i32, i32
  }
  func.func @transform_14(%arg0: i32) -> (i32, i32) {
    %c0_i32 = arith.constant 0 : i32
    %c0_i32_0 = arith.constant 0 : i32
    %c0_i32_1 = arith.constant 0 : i32
    return %c0_i32, %c0_i32_0 : i32, i32
  }
  func.func @transform_15(%arg0: i32) -> (i32, i32) {
    %c0_i32 = arith.constant 0 : i32
    %c0_i32_0 = arith.constant 0 : i32
    %c0_i32_1 = arith.constant 0 : i32
    return %c0_i32, %c0_i32_0 : i32, i32
  }
  func.func @transform_16(%arg0: i32) -> (i32, i32) {
    %c0_i32 = arith.constant 0 : i32
    %c0_i32_0 = arith.constant 0 : i32
    %c0_i32_1 = arith.constant 0 : i32
    return %c0_i32, %c0_i32_0 : i32, i32
  }
  func.func @transform_17(%arg0: i32) -> (i32, i32) {
    %c0_i32 = arith.constant 0 : i32
    %c0_i32_0 = arith.constant 0 : i32
    %c0_i32_1 = arith.constant 0 : i32
    return %c0_i32, %c0_i32_0 : i32, i32
  }
  func.func @transform_18(%arg0: i32) -> (i32, i32, i32) {
    %c0_i32 = arith.constant 0 : i32
    %c0_i32_0 = arith.constant 0 : i32
    %c0_i32_1 = arith.constant 0 : i32
    return %arg0, %c0_i32, %c0_i32_0 : i32, i32, i32
  }
}

module attributes {stable_mosaic.version = 11 : i64} {
  func.func @encoder_layer_kernel(%arg0: i32, %arg1: memref<1x8x128xf32, #tpu.memory_space<vmem>>, %arg2: memref<1x1x8xf32, #tpu.memory_space<vmem>>, %arg3: memref<128x128xbf16, #tpu.memory_space<vmem>>, %arg4: memref<1x128xf32, #tpu.memory_space<vmem>>, %arg5: memref<128x128xbf16, #tpu.memory_space<vmem>>, %arg6: memref<1x128xf32, #tpu.memory_space<vmem>>, %arg7: memref<128x128xbf16, #tpu.memory_space<vmem>>, %arg8: memref<1x128xf32, #tpu.memory_space<vmem>>, %arg9: memref<128x128xbf16, #tpu.memory_space<vmem>>, %arg10: memref<1x128xf32, #tpu.memory_space<vmem>>, %arg11: memref<1x128xf32, #tpu.memory_space<vmem>>, %arg12: memref<1x128xf32, #tpu.memory_space<vmem>>, %arg13: memref<128x512xbf16, #tpu.memory_space<vmem>>, %arg14: memref<1x512xf32, #tpu.memory_space<vmem>>, %arg15: memref<512x128xbf16, #tpu.memory_space<vmem>>, %arg16: memref<1x128xf32, #tpu.memory_space<vmem>>, %arg17: memref<1x128xf32, #tpu.memory_space<vmem>>, %arg18: memref<1x128xf32, #tpu.memory_space<vmem>>, %arg19: memref<1x8x128xf32, #tpu.memory_space<vmem>>) attributes {dimension_semantics = [#tpu.dimension_semantics<parallel>], iteration_bounds = array<i64: 2>, scalar_prefetch = 0 : i64, scratch_operands = 0 : i64, tpu.core_type = #tpu.core_type<tc>, window_params = [{transform_indices = @transform_0, window_bounds = array<i64: 1, 8, 128>}, {transform_indices = @transform_1, window_bounds = array<i64: 1, 1, 8>}, {pipeline_mode = #tpu.pipeline_mode<synchronous>, transform_indices = @transform_2, window_bounds = array<i64: 128, 128>}, {pipeline_mode = #tpu.pipeline_mode<synchronous>, transform_indices = @transform_3, window_bounds = array<i64: 1, 128>}, {pipeline_mode = #tpu.pipeline_mode<synchronous>, transform_indices = @transform_4, window_bounds = array<i64: 128, 128>}, {pipeline_mode = #tpu.pipeline_mode<synchronous>, transform_indices = @transform_5, window_bounds = array<i64: 1, 128>}, {pipeline_mode = #tpu.pipeline_mode<synchronous>, transform_indices = @transform_6, window_bounds = array<i64: 128, 128>}, {pipeline_mode = #tpu.pipeline_mode<synchronous>, transform_indices = @transform_7, window_bounds = array<i64: 1, 128>}, {pipeline_mode = #tpu.pipeline_mode<synchronous>, transform_indices = @transform_8, window_bounds = array<i64: 128, 128>}, {pipeline_mode = #tpu.pipeline_mode<synchronous>, transform_indices = @transform_9, window_bounds = array<i64: 1, 128>}, {pipeline_mode = #tpu.pipeline_mode<synchronous>, transform_indices = @transform_10, window_bounds = array<i64: 1, 128>}, {pipeline_mode = #tpu.pipeline_mode<synchronous>, transform_indices = @transform_11, window_bounds = array<i64: 1, 128>}, {pipeline_mode = #tpu.pipeline_mode<synchronous>, transform_indices = @transform_12, window_bounds = array<i64: 128, 512>}, {pipeline_mode = #tpu.pipeline_mode<synchronous>, transform_indices = @transform_13, window_bounds = array<i64: 1, 512>}, {pipeline_mode = #tpu.pipeline_mode<synchronous>, transform_indices = @transform_14, window_bounds = array<i64: 512, 128>}, {pipeline_mode = #tpu.pipeline_mode<synchronous>, transform_indices = @transform_15, window_bounds = array<i64: 1, 128>}, {pipeline_mode = #tpu.pipeline_mode<synchronous>, transform_indices = @transform_16, window_bounds = array<i64: 1, 128>}, {pipeline_mode = #tpu.pipeline_mode<synchronous>, transform_indices = @transform_17, window_bounds = array<i64: 1, 128>}, {transform_indices = @transform_18, window_bounds = array<i64: 1, 8, 128>}]} {
    %c0 = arith.constant 0 : index
    %c0_0 = arith.constant 0 : index
    %c0_1 = arith.constant 0 : index
    %0 = vector.load %arg1[%c0, %c0_0, %c0_1] : memref<1x8x128xf32, #tpu.memory_space<vmem>>, vector<1x8x128xf32>
    %1 = vector.shape_cast %0 : vector<1x8x128xf32> to vector<8x128xf32>
    %c0_2 = arith.constant 0 : index
    %c0_3 = arith.constant 0 : index
    %c0_4 = arith.constant 0 : index
    %2 = vector.load %arg2[%c0_2, %c0_3, %c0_4] : memref<1x1x8xf32, #tpu.memory_space<vmem>>, vector<1x1x8xf32>
    %3 = arith.truncf %1 : vector<8x128xf32> to vector<8x128xbf16>
    %c0_5 = arith.constant 0 : index
    %c0_6 = arith.constant 0 : index
    %4 = vector.load %arg3[%c0_5, %c0_6] : memref<128x128xbf16, #tpu.memory_space<vmem>>, vector<128x128xbf16>
    %cst = arith.constant dense<0.000000e+00> : vector<8x128xf32>
    %5 = tpu.matmul %3, %4, %cst {dimension_numbers = #tpu.dot_dimension_numbers<[1], [0], [0], [1], [0, 0, 1, 1], [], []>} : vector<8x128xbf16>, vector<128x128xbf16>, vector<8x128xf32> -> vector<8x128xf32>
    %c0_7 = arith.constant 0 : index
    %c0_8 = arith.constant 0 : index
    %6 = vector.load %arg4[%c0_7, %c0_8] : memref<1x128xf32, #tpu.memory_space<vmem>>, vector<1x128xf32>
    %7 = vector.broadcast %6 : vector<1x128xf32> to vector<8x128xf32>
    %8 = arith.addf %5, %7 : vector<8x128xf32>
    %c0_9 = arith.constant 0 : index
    %c0_10 = arith.constant 0 : index
    %9 = vector.load %arg5[%c0_9, %c0_10] : memref<128x128xbf16, #tpu.memory_space<vmem>>, vector<128x128xbf16>
    %cst_11 = arith.constant dense<0.000000e+00> : vector<8x128xf32>
    %10 = tpu.matmul %3, %9, %cst_11 {dimension_numbers = #tpu.dot_dimension_numbers<[1], [0], [0], [1], [0, 0, 1, 1], [], []>} : vector<8x128xbf16>, vector<128x128xbf16>, vector<8x128xf32> -> vector<8x128xf32>
    %c0_12 = arith.constant 0 : index
    %c0_13 = arith.constant 0 : index
    %11 = vector.load %arg6[%c0_12, %c0_13] : memref<1x128xf32, #tpu.memory_space<vmem>>, vector<1x128xf32>
    %12 = vector.broadcast %11 : vector<1x128xf32> to vector<8x128xf32>
    %13 = arith.addf %10, %12 : vector<8x128xf32>
    %c0_14 = arith.constant 0 : index
    %c0_15 = arith.constant 0 : index
    %14 = vector.load %arg7[%c0_14, %c0_15] : memref<128x128xbf16, #tpu.memory_space<vmem>>, vector<128x128xbf16>
    %cst_16 = arith.constant dense<0.000000e+00> : vector<8x128xf32>
    %15 = tpu.matmul %3, %14, %cst_16 {dimension_numbers = #tpu.dot_dimension_numbers<[1], [0], [0], [1], [0, 0, 1, 1], [], []>} : vector<8x128xbf16>, vector<128x128xbf16>, vector<8x128xf32> -> vector<8x128xf32>
    %c0_17 = arith.constant 0 : index
    %c0_18 = arith.constant 0 : index
    %16 = vector.load %arg8[%c0_17, %c0_18] : memref<1x128xf32, #tpu.memory_space<vmem>>, vector<1x128xf32>
    %17 = vector.broadcast %16 : vector<1x128xf32> to vector<8x128xf32>
    %18 = arith.addf %15, %17 : vector<8x128xf32>
    %19 = vector.shape_cast %8 : vector<8x128xf32> to vector<1x8x128xf32>
    %20 = arith.truncf %19 : vector<1x8x128xf32> to vector<1x8x128xbf16>
    %21 = vector.shape_cast %13 : vector<8x128xf32> to vector<1x8x128xf32>
    %22 = arith.truncf %21 : vector<1x8x128xf32> to vector<1x8x128xbf16>
    %23 = vector.shape_cast %18 : vector<8x128xf32> to vector<1x8x128xf32>
    %24 = arith.truncf %23 : vector<1x8x128xf32> to vector<1x8x128xbf16>
    %cst_19 = arith.constant 0xFF800000 : f32
    %25 = vector.broadcast %cst_19 : f32 to vector<1x8x1xf32>
    %cst_20 = arith.constant 0.000000e+00 : f32
    %26 = vector.broadcast %cst_20 : f32 to vector<1x8x1xf32>
    %cst_21 = arith.constant 0.000000e+00 : f32
    %27 = vector.broadcast %cst_21 : f32 to vector<1x8x128xf32>
    "tpu.trace_start"() <{level = 10 : i32, message = "gqd,gkd->gqk"}> : () -> ()
    %cst_22 = arith.constant dense<0.000000e+00> : vector<1x8x8xf32>
    %28 = tpu.matmul %20, %22, %cst_22 {dimension_numbers = #tpu.dot_dimension_numbers<[2], [2], [1], [1], [0, 0, 0, 1, 1, 1], [0], [0]>} : vector<1x8x128xbf16>, vector<1x8x128xbf16>, vector<1x8x8xf32> -> vector<1x8x8xf32>
    "tpu.trace_stop"() : () -> ()
    %cst_23 = arith.constant 0.0883883461 : f32
    %29 = vector.broadcast %cst_23 : f32 to vector<1x8x8xf32>
    %30 = arith.mulf %28, %29 : vector<1x8x8xf32>
    %cst_24 = arith.constant 1.000000e+00 : f32
    %31 = vector.broadcast %cst_24 : f32 to vector<1x1x8xf32>
    %32 = arith.subf %2, %31 : vector<1x1x8xf32>
    %cst_25 = arith.constant 1.000000e+04 : f32
    %33 = vector.broadcast %cst_25 : f32 to vector<1x1x8xf32>
    %34 = arith.mulf %32, %33 : vector<1x1x8xf32>
    %35 = vector.broadcast %34 : vector<1x1x8xf32> to vector<1x8x8xf32>
    %36 = arith.addf %30, %35 : vector<1x8x8xf32>
    %cst_26 = arith.constant dense<0xFF800000> : vector<1x8xf32>
    %37 = vector.multi_reduction <maximumf>, %36, %cst_26 [2] : vector<1x8x8xf32> to vector<1x8xf32>
    %38 = vector.shape_cast %37 : vector<1x8xf32> to vector<1x8x1xf32>
    %39 = arith.maximumf %25, %38 : vector<1x8x1xf32>
    %40 = arith.subf %25, %39 : vector<1x8x1xf32>
    %41 = math.exp %40 : vector<1x8x1xf32>
    %42 = vector.broadcast %39 : vector<1x8x1xf32> to vector<1x8x8xf32>
    %43 = arith.subf %36, %42 : vector<1x8x8xf32>
    %44 = math.exp %43 : vector<1x8x8xf32>
    %45 = arith.mulf %41, %26 : vector<1x8x1xf32>
    %cst_27 = arith.constant dense<0.000000e+00> : vector<1x8xf32>
    %46 = vector.multi_reduction <add>, %44, %cst_27 [2] : vector<1x8x8xf32> to vector<1x8xf32>
    %47 = vector.shape_cast %46 : vector<1x8xf32> to vector<1x8x1xf32>
    %48 = arith.addf %45, %47 : vector<1x8x1xf32>
    %49 = vector.broadcast %41 : vector<1x8x1xf32> to vector<1x8x128xf32>
    %50 = arith.mulf %49, %27 : vector<1x8x128xf32>
    %51 = arith.truncf %44 : vector<1x8x8xf32> to vector<1x8x8xbf16>
    "tpu.trace_start"() <{level = 10 : i32, message = "gqk,gkd->gqd"}> : () -> ()
    %cst_28 = arith.constant dense<0.000000e+00> : vector<1x8x128xf32>
    %52 = tpu.matmul %51, %24, %cst_28 {dimension_numbers = #tpu.dot_dimension_numbers<[2], [1], [1], [2], [0, 0, 0, 1, 1, 2], [0], [0]>} : vector<1x8x8xbf16>, vector<1x8x128xbf16>, vector<1x8x128xf32> -> vector<1x8x128xf32>
    "tpu.trace_stop"() : () -> ()
    %53 = arith.addf %50, %52 : vector<1x8x128xf32>
    %54 = tpu.reciprocal %48 {approx = true} : vector<1x8x1xf32> -> vector<1x8x1xf32>
    %55 = vector.broadcast %54 : vector<1x8x1xf32> to vector<1x8x128xf32>
    %56 = arith.mulf %53, %55 : vector<1x8x128xf32>
    %57 = vector.shape_cast %56 : vector<1x8x128xf32> to vector<8x128xf32>
    %58 = arith.truncf %57 : vector<8x128xf32> to vector<8x128xbf16>
    %c0_29 = arith.constant 0 : index
    %c0_30 = arith.constant 0 : index
    %59 = vector.load %arg9[%c0_29, %c0_30] : memref<128x128xbf16, #tpu.memory_space<vmem>>, vector<128x128xbf16>
    %cst_31 = arith.constant dense<0.000000e+00> : vector<8x128xf32>
    %60 = tpu.matmul %58, %59, %cst_31 {dimension_numbers = #tpu.dot_dimension_numbers<[1], [0], [0], [1], [0, 0, 1, 1], [], []>} : vector<8x128xbf16>, vector<128x128xbf16>, vector<8x128xf32> -> vector<8x128xf32>
    %c0_32 = arith.constant 0 : index
    %c0_33 = arith.constant 0 : index
    %61 = vector.load %arg10[%c0_32, %c0_33] : memref<1x128xf32, #tpu.memory_space<vmem>>, vector<1x128xf32>
    %62 = vector.broadcast %61 : vector<1x128xf32> to vector<8x128xf32>
    %63 = arith.addf %60, %62 : vector<8x128xf32>
    %64 = arith.addf %1, %63 : vector<8x128xf32>
    %c0_34 = arith.constant 0 : index
    %c0_35 = arith.constant 0 : index
    %65 = vector.load %arg11[%c0_34, %c0_35] : memref<1x128xf32, #tpu.memory_space<vmem>>, vector<1x128xf32>
    %c0_36 = arith.constant 0 : index
    %c0_37 = arith.constant 0 : index
    %66 = vector.load %arg12[%c0_36, %c0_37] : memref<1x128xf32, #tpu.memory_space<vmem>>, vector<1x128xf32>
    %cst_38 = arith.constant dense<0.000000e+00> : vector<8xf32>
    %67 = vector.multi_reduction <add>, %64, %cst_38 [1] : vector<8x128xf32> to vector<8xf32>
    %68 = vector.shape_cast %67 : vector<8xf32> to vector<8x1xf32>
    %cst_39 = arith.constant 1.280000e+02 : f32
    %69 = vector.broadcast %cst_39 : f32 to vector<8x1xf32>
    %70 = arith.divf %68, %69 : vector<8x1xf32>
    %71 = vector.broadcast %70 : vector<8x1xf32> to vector<8x128xf32>
    %72 = arith.subf %64, %71 : vector<8x128xf32>
    %73 = arith.mulf %72, %72 : vector<8x128xf32>
    %cst_40 = arith.constant dense<0.000000e+00> : vector<8xf32>
    %74 = vector.multi_reduction <add>, %73, %cst_40 [1] : vector<8x128xf32> to vector<8xf32>
    %75 = vector.shape_cast %74 : vector<8xf32> to vector<8x1xf32>
    %cst_41 = arith.constant 1.280000e+02 : f32
    %76 = vector.broadcast %cst_41 : f32 to vector<8x1xf32>
    %77 = arith.divf %75, %76 : vector<8x1xf32>
    %78 = vector.broadcast %70 : vector<8x1xf32> to vector<8x128xf32>
    %79 = arith.subf %64, %78 : vector<8x128xf32>
    %cst_42 = arith.constant 9.99999996E-13 : f32
    %80 = vector.broadcast %cst_42 : f32 to vector<8x1xf32>
    %81 = arith.addf %77, %80 : vector<8x1xf32>
    %82 = math.rsqrt %81 : vector<8x1xf32>
    %83 = vector.broadcast %82 : vector<8x1xf32> to vector<8x128xf32>
    %84 = arith.mulf %79, %83 : vector<8x128xf32>
    %85 = vector.broadcast %65 : vector<1x128xf32> to vector<8x128xf32>
    %86 = arith.mulf %84, %85 : vector<8x128xf32>
    %87 = vector.broadcast %66 : vector<1x128xf32> to vector<8x128xf32>
    %88 = arith.addf %86, %87 : vector<8x128xf32>
    %89 = arith.truncf %88 : vector<8x128xf32> to vector<8x128xbf16>
    %cst_43 = arith.constant 0.000000e+00 : f32
    %90 = vector.broadcast %cst_43 : f32 to vector<8x128xf32>
    %c0_44 = arith.constant 0 : index
    %c0_45 = arith.constant 0 : index
    %91 = vector.load %arg13[%c0_44, %c0_45] : memref<128x512xbf16, #tpu.memory_space<vmem>>, vector<128x256xbf16>
    %cst_46 = arith.constant dense<0.000000e+00> : vector<8x256xf32>
    %92 = tpu.matmul %89, %91, %cst_46 {dimension_numbers = #tpu.dot_dimension_numbers<[1], [0], [0], [1], [0, 0, 1, 1], [], []>} : vector<8x128xbf16>, vector<128x256xbf16>, vector<8x256xf32> -> vector<8x256xf32>
    %c0_47 = arith.constant 0 : index
    %c0_48 = arith.constant 0 : index
    %93 = vector.load %arg14[%c0_47, %c0_48] : memref<1x512xf32, #tpu.memory_space<vmem>>, vector<1x256xf32>
    %94 = vector.broadcast %93 : vector<1x256xf32> to vector<8x256xf32>
    %95 = arith.addf %92, %94 : vector<8x256xf32>
    %cst_49 = arith.constant 5.000000e-01 : f32
    %96 = vector.broadcast %cst_49 : f32 to vector<8x256xf32>
    %97 = arith.mulf %96, %95 : vector<8x256xf32>
    %cst_50 = arith.constant 0.707106769 : f32
    %98 = vector.broadcast %cst_50 : f32 to vector<8x256xf32>
    %99 = arith.mulf %95, %98 : vector<8x256xf32>
    %100 = math.erf %99 : vector<8x256xf32>
    %cst_51 = arith.constant 1.000000e+00 : f32
    %101 = vector.broadcast %cst_51 : f32 to vector<8x256xf32>
    %102 = arith.addf %101, %100 : vector<8x256xf32>
    %103 = arith.mulf %97, %102 : vector<8x256xf32>
    %104 = arith.truncf %103 : vector<8x256xf32> to vector<8x256xbf16>
    %c0_52 = arith.constant 0 : index
    %c0_53 = arith.constant 0 : index
    %105 = vector.load %arg15[%c0_52, %c0_53] : memref<512x128xbf16, #tpu.memory_space<vmem>>, vector<256x128xbf16>
    %cst_54 = arith.constant dense<0.000000e+00> : vector<8x128xf32>
    %106 = tpu.matmul %104, %105, %cst_54 {dimension_numbers = #tpu.dot_dimension_numbers<[1], [0], [0], [1], [0, 0, 1, 1], [], []>} : vector<8x256xbf16>, vector<256x128xbf16>, vector<8x128xf32> -> vector<8x128xf32>
    %107 = arith.addf %90, %106 : vector<8x128xf32>
    %c0_55 = arith.constant 0 : index
    %c256 = arith.constant 256 : index
    %108 = vector.load %arg13[%c0_55, %c256] : memref<128x512xbf16, #tpu.memory_space<vmem>>, vector<128x256xbf16>
    %cst_56 = arith.constant dense<0.000000e+00> : vector<8x256xf32>
    %109 = tpu.matmul %89, %108, %cst_56 {dimension_numbers = #tpu.dot_dimension_numbers<[1], [0], [0], [1], [0, 0, 1, 1], [], []>} : vector<8x128xbf16>, vector<128x256xbf16>, vector<8x256xf32> -> vector<8x256xf32>
    %c0_57 = arith.constant 0 : index
    %c256_58 = arith.constant 256 : index
    %110 = vector.load %arg14[%c0_57, %c256_58] : memref<1x512xf32, #tpu.memory_space<vmem>>, vector<1x256xf32>
    %111 = vector.broadcast %110 : vector<1x256xf32> to vector<8x256xf32>
    %112 = arith.addf %109, %111 : vector<8x256xf32>
    %cst_59 = arith.constant 5.000000e-01 : f32
    %113 = vector.broadcast %cst_59 : f32 to vector<8x256xf32>
    %114 = arith.mulf %113, %112 : vector<8x256xf32>
    %cst_60 = arith.constant 0.707106769 : f32
    %115 = vector.broadcast %cst_60 : f32 to vector<8x256xf32>
    %116 = arith.mulf %112, %115 : vector<8x256xf32>
    %117 = math.erf %116 : vector<8x256xf32>
    %cst_61 = arith.constant 1.000000e+00 : f32
    %118 = vector.broadcast %cst_61 : f32 to vector<8x256xf32>
    %119 = arith.addf %118, %117 : vector<8x256xf32>
    %120 = arith.mulf %114, %119 : vector<8x256xf32>
    %121 = arith.truncf %120 : vector<8x256xf32> to vector<8x256xbf16>
    %c256_62 = arith.constant 256 : index
    %c0_63 = arith.constant 0 : index
    %122 = vector.load %arg15[%c256_62, %c0_63] : memref<512x128xbf16, #tpu.memory_space<vmem>>, vector<256x128xbf16>
    %cst_64 = arith.constant dense<0.000000e+00> : vector<8x128xf32>
    %123 = tpu.matmul %121, %122, %cst_64 {dimension_numbers = #tpu.dot_dimension_numbers<[1], [0], [0], [1], [0, 0, 1, 1], [], []>} : vector<8x256xbf16>, vector<256x128xbf16>, vector<8x128xf32> -> vector<8x128xf32>
    %124 = arith.addf %107, %123 : vector<8x128xf32>
    %c0_65 = arith.constant 0 : index
    %c0_66 = arith.constant 0 : index
    %125 = vector.load %arg16[%c0_65, %c0_66] : memref<1x128xf32, #tpu.memory_space<vmem>>, vector<1x128xf32>
    %126 = vector.broadcast %125 : vector<1x128xf32> to vector<8x128xf32>
    %127 = arith.addf %124, %126 : vector<8x128xf32>
    %128 = arith.addf %88, %127 : vector<8x128xf32>
    %c0_67 = arith.constant 0 : index
    %c0_68 = arith.constant 0 : index
    %129 = vector.load %arg17[%c0_67, %c0_68] : memref<1x128xf32, #tpu.memory_space<vmem>>, vector<1x128xf32>
    %c0_69 = arith.constant 0 : index
    %c0_70 = arith.constant 0 : index
    %130 = vector.load %arg18[%c0_69, %c0_70] : memref<1x128xf32, #tpu.memory_space<vmem>>, vector<1x128xf32>
    %cst_71 = arith.constant dense<0.000000e+00> : vector<8xf32>
    %131 = vector.multi_reduction <add>, %128, %cst_71 [1] : vector<8x128xf32> to vector<8xf32>
    %132 = vector.shape_cast %131 : vector<8xf32> to vector<8x1xf32>
    %cst_72 = arith.constant 1.280000e+02 : f32
    %133 = vector.broadcast %cst_72 : f32 to vector<8x1xf32>
    %134 = arith.divf %132, %133 : vector<8x1xf32>
    %135 = vector.broadcast %134 : vector<8x1xf32> to vector<8x128xf32>
    %136 = arith.subf %128, %135 : vector<8x128xf32>
    %137 = arith.mulf %136, %136 : vector<8x128xf32>
    %cst_73 = arith.constant dense<0.000000e+00> : vector<8xf32>
    %138 = vector.multi_reduction <add>, %137, %cst_73 [1] : vector<8x128xf32> to vector<8xf32>
    %139 = vector.shape_cast %138 : vector<8xf32> to vector<8x1xf32>
    %cst_74 = arith.constant 1.280000e+02 : f32
    %140 = vector.broadcast %cst_74 : f32 to vector<8x1xf32>
    %141 = arith.divf %139, %140 : vector<8x1xf32>
    %142 = vector.broadcast %134 : vector<8x1xf32> to vector<8x128xf32>
    %143 = arith.subf %128, %142 : vector<8x128xf32>
    %cst_75 = arith.constant 9.99999996E-13 : f32
    %144 = vector.broadcast %cst_75 : f32 to vector<8x1xf32>
    %145 = arith.addf %141, %144 : vector<8x1xf32>
    %146 = math.rsqrt %145 : vector<8x1xf32>
    %147 = vector.broadcast %146 : vector<8x1xf32> to vector<8x128xf32>
    %148 = arith.mulf %143, %147 : vector<8x128xf32>
    %149 = vector.broadcast %129 : vector<1x128xf32> to vector<8x128xf32>
    %150 = arith.mulf %148, %149 : vector<8x128xf32>
    %151 = vector.broadcast %130 : vector<1x128xf32> to vector<8x128xf32>
    %152 = arith.addf %150, %151 : vector<8x128xf32>
    %153 = vector.shape_cast %152 : vector<8x128xf32> to vector<1x8x128xf32>
    %c0_76 = arith.constant 0 : index
    %c0_77 = arith.constant 0 : index
    %c0_78 = arith.constant 0 : index
    %154 = vector.load %arg19[%c0_76, %c0_77, %c0_78] : memref<1x8x128xf32, #tpu.memory_space<vmem>>, vector<1x8x128xf32>
    tpu.vector_store %arg19[%c0_76, %c0_77, %c0_78], %153 {strides = array<i32>} : memref<1x8x128xf32, #tpu.memory_space<vmem>>, vector<1x8x128xf32>,
    return
  }
  func.func @transform_0(%arg0: i32) -> (i32, i32, i32) {
    %c0_i32 = arith.constant 0 : i32
    %c0_i32_0 = arith.constant 0 : i32
    %c0_i32_1 = arith.constant 0 : i32
    return %arg0, %c0_i32, %c0_i32_0 : i32, i32, i32
  }
  func.func @transform_1(%arg0: i32) -> (i32, i32, i32) {
    %c0_i32 = arith.constant 0 : i32
    %c0_i32_0 = arith.constant 0 : i32
    %c0_i32_1 = arith.constant 0 : i32
    return %arg0, %c0_i32, %c0_i32_0 : i32, i32, i32
  }
  func.func @transform_2(%arg0: i32) -> (i32, i32) {
    %c0_i32 = arith.constant 0 : i32
    %c0_i32_0 = arith.constant 0 : i32
    %c0_i32_1 = arith.constant 0 : i32
    return %c0_i32, %c0_i32_0 : i32, i32
  }
  func.func @transform_3(%arg0: i32) -> (i32, i32) {
    %c0_i32 = arith.constant 0 : i32
    %c0_i32_0 = arith.constant 0 : i32
    %c0_i32_1 = arith.constant 0 : i32
    return %c0_i32, %c0_i32_0 : i32, i32
  }
  func.func @transform_4(%arg0: i32) -> (i32, i32) {
    %c0_i32 = arith.constant 0 : i32
    %c0_i32_0 = arith.constant 0 : i32
    %c0_i32_1 = arith.constant 0 : i32
    return %c0_i32, %c0_i32_0 : i32, i32
  }
  func.func @transform_5(%arg0: i32) -> (i32, i32) {
    %c0_i32 = arith.constant 0 : i32
    %c0_i32_0 = arith.constant 0 : i32
    %c0_i32_1 = arith.constant 0 : i32
    return %c0_i32, %c0_i32_0 : i32, i32
  }
  func.func @transform_6(%arg0: i32) -> (i32, i32) {
    %c0_i32 = arith.constant 0 : i32
    %c0_i32_0 = arith.constant 0 : i32
    %c0_i32_1 = arith.constant 0 : i32
    return %c0_i32, %c0_i32_0 : i32, i32
  }
  func.func @transform_7(%arg0: i32) -> (i32, i32) {
    %c0_i32 = arith.constant 0 : i32
    %c0_i32_0 = arith.constant 0 : i32
    %c0_i32_1 = arith.constant 0 : i32
    return %c0_i32, %c0_i32_0 : i32, i32
  }
  func.func @transform_8(%arg0: i32) -> (i32, i32) {
    %c0_i32 = arith.constant 0 : i32
    %c0_i32_0 = arith.constant 0 : i32
    %c0_i32_1 = arith.constant 0 : i32
    return %c0_i32, %c0_i32_0 : i32, i32
  }
  func.func @transform_9(%arg0: i32) -> (i32, i32) {
    %c0_i32 = arith.constant 0 : i32
    %c0_i32_0 = arith.constant 0 : i32
    %c0_i32_1 = arith.constant 0 : i32
    return %c0_i32, %c0_i32_0 : i32, i32
  }
  func.func @transform_10(%arg0: i32) -> (i32, i32) {
    %c0_i32 = arith.constant 0 : i32
    %c0_i32_0 = arith.constant 0 : i32
    %c0_i32_1 = arith.constant 0 : i32
    return %c0_i32, %c0_i32_0 : i32, i32
  }
  func.func @transform_11(%arg0: i32) -> (i32, i32) {
    %c0_i32 = arith.constant 0 : i32
    %c0_i32_0 = arith.constant 0 : i32
    %c0_i32_1 = arith.constant 0 : i32
    return %c0_i32, %c0_i32_0 : i32, i32
  }
  func.func @transform_12(%arg0: i32) -> (i32, i32) {
    %c0_i32 = arith.constant 0 : i32
    %c0_i32_0 = arith.constant 0 : i32
    %c0_i32_1 = arith.constant 0 : i32
    return %c0_i32, %c0_i32_0 : i32, i32
  }
  func.func @transform_13(%arg0: i32) -> (i32, i32) {
    %c0_i32 = arith.constant 0 : i32
    %c0_i32_0 = arith.constant 0 : i32
    %c0_i32_1 = arith.constant 0 : i32
    return %c0_i32, %c0_i32_0 : i32, i32
  }
  func.func @transform_14(%arg0: i32) -> (i32, i32) {
    %c0_i32 = arith.constant 0 : i32
    %c0_i32_0 = arith.constant 0 : i32
    %c0_i32_1 = arith.constant 0 : i32
    return %c0_i32, %c0_i32_0 : i32, i32
  }
  func.func @transform_15(%arg0: i32) -> (i32, i32) {
    %c0_i32 = arith.constant 0 : i32
    %c0_i32_0 = arith.constant 0 : i32
    %c0_i32_1 = arith.constant 0 : i32
    return %c0_i32, %c0_i32_0 : i32, i32
  }
  func.func @transform_16(%arg0: i32) -> (i32, i32) {
    %c0_i32 = arith.constant 0 : i32
    %c0_i32_0 = arith.constant 0 : i32
    %c0_i32_1 = arith.constant 0 : i32
    return %c0_i32, %c0_i32_0 : i32, i32
  }
  func.func @transform_17(%arg0: i32) -> (i32, i32) {
    %c0_i32 = arith.constant 0 : i32
    %c0_i32_0 = arith.constant 0 : i32
    %c0_i32_1 = arith.constant 0 : i32
    return %c0_i32, %c0_i32_0 : i32, i32
  }
  func.func @transform_18(%arg0: i32) -> (i32, i32, i32) {
    %c0_i32 = arith.constant 0 : i32
    %c0_i32_0 = arith.constant 0 : i32
    %c0_i32_1 = arith.constant 0 : i32
    return %arg0, %c0_i32, %c0_i32_0 : i32, i32, i32
  }
}

</mosaic_0001>

<llo_original>
// kernel: tpu_custom_call.1
$region0: #{tpu_custom_call.1}
  #allocation0 [shape = 'u32[]', space=smem, size = 0x4, offset = 0x4, fixed_abs, tag = 'smem constant byte address 0x4 - core index']
  #allocation1 [shape = 'u32[144,128]{1,0:T(1,128)}', space=vmem, size = 0x12000, scoped, tag = 'internal scratch']
  %s0 = inlined_call_operand.hbm [shape: f32[2,8,128], index: 0, kind: input, shape index: {}]
  %s1 = inlined_call_operand.vmem [shape: f32[2,1,8], index: 1, kind: input, shape index: {}]
  %s2 = inlined_call_operand.hbm [shape: bf16[128,128], index: 2, kind: input, shape index: {}]
  %s3 = inlined_call_operand.vmem [shape: f32[1,128], index: 3, kind: input, shape index: {}]
  %s4 = inlined_call_operand.hbm [shape: bf16[128,128], index: 4, kind: input, shape index: {}]
  %s5 = inlined_call_operand.vmem [shape: f32[1,128], index: 5, kind: input, shape index: {}]
  %s6 = inlined_call_operand.hbm [shape: bf16[128,128], index: 6, kind: input, shape index: {}]
  %s7 = inlined_call_operand.vmem [shape: f32[1,128], index: 7, kind: input, shape index: {}]
  %s8 = inlined_call_operand.hbm [shape: bf16[128,128], index: 8, kind: input, shape index: {}]
  %s9 = inlined_call_operand.vmem [shape: f32[1,128], index: 9, kind: input, shape index: {}]
  %s10 = inlined_call_operand.vmem [shape: f32[1,128], index: 10, kind: input, shape index: {}]
  %s11 = inlined_call_operand.vmem [shape: f32[1,128], index: 11, kind: input, shape index: {}]
  %s12 = inlined_call_operand.hbm [shape: bf16[128,512], index: 12, kind: input, shape index: {}]
  %s13 = inlined_call_operand.vmem [shape: f32[1,512], index: 13, kind: input, shape index: {}]
  %s14 = inlined_call_operand.hbm [shape: bf16[512,128], index: 14, kind: input, shape index: {}]
  %s15 = inlined_call_operand.vmem [shape: f32[1,128], index: 15, kind: input, shape index: {}]
  %s16 = inlined_call_operand.vmem [shape: f32[1,128], index: 16, kind: input, shape index: {}]
  %s17 = inlined_call_operand.vmem [shape: f32[1,128], index: 17, kind: input, shape index: {}]
  %s18 = inlined_call_operand.hbm [shape: f32[2,8,128], index: 18, kind: output, shape index: {}]
  %s19 = sld [smem:[#allocation0]]
  $region133: #{tpu_custom_call.1} parent=0
    _
  %s21 = ssub.s32 1, %s19
  %s22 = scalar_select 0, %s21, %s19
  $region1: #{tpu_custom_call.1} parent=0
    #allocation2 [shape = 'u8[8192]{0}', space=vmem, size = 0x2000, scoped, tag = 'input window, operand 0']
    #allocation3 [shape = 's32[2]{0}', space=sflag, size = 0x8, scoped, tag = 'scoped memory for tpu_custom_call.1']
    #allocation4 [shape = 's32[2]{0}', space=sflag, size = 0x8, scoped, tag = 'scoped memory for tpu_custom_call.1']
    #allocation5 [shape = 'u8[32768]{0}', space=vmem, size = 0x8000, scoped, tag = 'input window, operand 2, single buffered']
    #allocation6 [shape = 's32[1]{0}', space=sflag, size = 0x4, scoped, tag = 'scoped memory for tpu_custom_call.1']
    #allocation7 [shape = 'u8[32768]{0}', space=vmem, size = 0x8000, scoped, tag = 'input window, operand 4, single buffered']
    #allocation8 [shape = 'u8[32768]{0}', space=vmem, size = 0x8000, scoped, tag = 'input window, operand 6, single buffered']
    #allocation9 [shape = 's32[1]{0}', space=sflag, size = 0x4, scoped, tag = 'scoped memory for tpu_custom_call.1']
    #allocation10 [shape = 'u8[32768]{0}', space=vmem, size = 0x8000, scoped, tag = 'input window, operand 8, single buffered']
    #allocation11 [shape = 'u8[131072]{0}', space=vmem, size = 0x20000, scoped, tag = 'input window, operand 12, single buffered']
    #allocation12 [shape = 's32[1]{0}', space=sflag, size = 0x4, scoped, tag = 'scoped memory for tpu_custom_call.1']
    #allocation13 [shape = 'u8[131072]{0}', space=vmem, size = 0x20000, scoped, tag = 'input window, operand 14, single buffered']
    #allocation14 [shape = 'u8[8192]{0}', space=vmem, size = 0x2000, scoped, tag = 'output window, operand 0']
    %23 = vsyncpa [#allocation3], 0
    %s24 = scalar_lea.sflag [#allocation3], 1
    %25 = vsyncpa %s24, 0
    %26 = vsyncpa [#allocation6], 0
    %27 = vsyncpa [#allocation9], 0
    %28 = vsyncpa [#allocation12], 0
    %29 = vsyncpa [#allocation4], 0
    %s30 = scalar_lea.sflag [#allocation4], 1
    %31 = vsyncpa %s30, 0
    loop: start=0, step=1, limit=4
    $region2: #{tpu_custom_call.1} parent=1 // loop_pre_header
      _
    $region3: #{tpu_custom_call.1} parent=1 // loop_header
      %s33 = sphi 0, %s37
      %p34 = scmp.ge.s32.totalorder %s33, 4
      %s43 = sphi 0, %s45
      %s46 = sphi 0, %s43
      %s47 = sphi 0, %s46
      %s63 = sphi 0, %s47
      %s69 = sphi 0, %s71
      %s72 = sphi 0, %s69
      %s73 = sphi 0, %s72
      %s89 = sphi 0, %s73
      %s93 = sphi 0, %s93
      %s95 = sphi 0, %s93
      %s96 = sphi 0, %s95
      %s110 = sphi 0, %s96
      %s114 = sphi 0, %s114
      %s116 = sphi 0, %s114
      %s117 = sphi 0, %s116
      %s131 = sphi 0, %s117
      %s135 = sphi 0, %s135
      %s137 = sphi 0, %s135
      %s138 = sphi 0, %s137
      %s152 = sphi 0, %s138
      %s156 = sphi 0, %s156
      %s158 = sphi 0, %s156
      %s159 = sphi 0, %s158
      %s173 = sphi 0, %s159
      %s177 = sphi 0, %s177
      %s179 = sphi 0, %s177
      %s180 = sphi 0, %s179
      %s194 = sphi 0, %s180
      %s198 = sphi 0, %s198
      %s200 = sphi 0, %s198
      %s201 = sphi 0, %s200
      %s215 = sphi 0, %s201
      %s219 = sphi 0, %s219
      %s221 = sphi 0, %s219
      %s222 = sphi 0, %s221
      %s236 = sphi 0, %s222
      %s240 = sphi 0, %s240
      %s242 = sphi 0, %s240
      %s243 = sphi 0, %s242
      %s257 = sphi 0, %s243
      %s261 = sphi 0, %s261
      %s263 = sphi 0, %s261
      %s264 = sphi 0, %s263
      %s278 = sphi 0, %s264
      %s282 = sphi 0, %s282
      %s284 = sphi 0, %s282
      %s285 = sphi 0, %s284
      %s299 = sphi 0, %s285
      %s303 = sphi 0, %s303
      %s305 = sphi 0, %s303
      %s306 = sphi 0, %s305
      %s320 = sphi 0, %s306
      %s324 = sphi 0, %s324
      %s326 = sphi 0, %s324
      %s327 = sphi 0, %s326
      %s341 = sphi 0, %s327
      %s345 = sphi 0, %s345
      %s347 = sphi 0, %s345
      %s348 = sphi 0, %s347
      %s362 = sphi 0, %s348
      %s366 = sphi 0, %s366
      %s368 = sphi 0, %s366
      %s369 = sphi 0, %s368
      %s383 = sphi 0, %s369
      %s387 = sphi 0, %s387
      %s389 = sphi 0, %s387
      %s390 = sphi 0, %s389
      %s404 = sphi 0, %s390
      %s408 = sphi 0, %s408
      %s410 = sphi 0, %s408
      %s411 = sphi 0, %s410
      %s425 = sphi 0, %s411
      %s431 = sphi 0, %s433
      %s434 = sphi 0, %s431
      %s435 = sphi 0, %s434
      %s451 = sphi 0, %s435
    $region4: #{tpu_custom_call.1} parent=1 // loop_header_branch
      %36 = sbr.rel (%p34) target = $region8
    $region5: #{tpu_custom_call.1} parent=1 // loop_body
      %s38 = ssub.s32 %s33, 1
      %s39 = ssub.s32 %s33, 2
      %s40 = sadd.s32 %s33, 1
      %s41 = ssub.s32 %s33, %s40
      %p42 = scmp.eq.s32.totalorder %s41, 0
      %s44 = sadd.s32 %s43, 1
      %s45 = scalar_select %p42, %s43, %s44
      %p48 = pneg %p42
      %p49 = scmp.eq.s32.totalorder %s33, 1
      %p50 = por %p48, %p49
      %p51 = scmp.ne.s32.totalorder %s43, %s46
      %p52 = scmp.eq.s32.totalorder %s33, 0
      %p53 = por %p51, %p52
      %p54 = scmp.ne.s32.totalorder %s43, %s46
      %p55 = scmp.eq.s32.totalorder %s38, 1
      %p56 = por %p54, %p55
      %p57 = scmp.ne.s32.totalorder %s46, %s47
      %p58 = scmp.eq.s32.totalorder %s38, 0
      %p59 = por %p57, %p58
      %p60 = scmp.ne.s32.totalorder %s46, %s47
      %p61 = scmp.eq.s32.totalorder %s39, 1
      %p62 = por %p60, %p61
      %p64 = scmp.ne.s32.totalorder %s47, %s63
      %p65 = scmp.eq.s32.totalorder %s39, 0
      %p66 = por %p64, %p65
      %s67 = ssub.s32 %s33, %s40
      %p68 = scmp.eq.s32.totalorder %s67, 0
      %s70 = sadd.s32 %s69, 1
      %s71 = scalar_select %p68, %s69, %s70
      %p74 = pneg %p68
      %p75 = scmp.eq.s32.totalorder %s33, 1
      %p76 = por %p74, %p75
      %p77 = scmp.ne.s32.totalorder %s69, %s72
      %p78 = scmp.eq.s32.totalorder %s33, 0
      %p79 = por %p77, %p78
      %p80 = scmp.ne.s32.totalorder %s69, %s72
      %p81 = scmp.eq.s32.totalorder %s38, 1
      %p82 = por %p80, %p81
      %p83 = scmp.ne.s32.totalorder %s72, %s73
      %p84 = scmp.eq.s32.totalorder %s38, 0
      %p85 = por %p83, %p84
      %p86 = scmp.ne.s32.totalorder %s72, %s73
      %p87 = scmp.eq.s32.totalorder %s39, 1
      %p88 = por %p86, %p87
      %p90 = scmp.ne.s32.totalorder %s73, %s89
      %p91 = scmp.eq.s32.totalorder %s39, 0
      %p92 = por %p90, %p91
      %s94 = sadd.s32 %s93, 1
      %p97 = scmp.eq.s32.totalorder %s33, 1
      %p98 = scmp.ne.s32.totalorder %s93, %s95
      %p99 = scmp.eq.s32.totalorder %s33, 0
      %p100 = por %p98, %p99
      %p101 = scmp.ne.s32.totalorder %s93, %s95
      %p102 = scmp.eq.s32.totalorder %s38, 1
      %p103 = por %p101, %p102
      %p104 = scmp.ne.s32.totalorder %s95, %s96
      %p105 = scmp.eq.s32.totalorder %s38, 0
      %p106 = por %p104, %p105
      %p107 = scmp.ne.s32.totalorder %s95, %s96
      %p108 = scmp.eq.s32.totalorder %s39, 1
      %p109 = por %p107, %p108
      %p111 = scmp.ne.s32.totalorder %s96, %s110
      %p112 = scmp.eq.s32.totalorder %s39, 0
      %p113 = por %p111, %p112
      %s115 = sadd.s32 %s114, 1
      %p118 = scmp.eq.s32.totalorder %s33, 1
      %p119 = scmp.ne.s32.totalorder %s114, %s116
      %p120 = scmp.eq.s32.totalorder %s33, 0
      %p121 = por %p119, %p120
      %p122 = scmp.ne.s32.totalorder %s114, %s116
      %p123 = scmp.eq.s32.totalorder %s38, 1
      %p124 = por %p122, %p123
      %p125 = scmp.ne.s32.totalorder %s116, %s117
      %p126 = scmp.eq.s32.totalorder %s38, 0
      %p127 = por %p125, %p126
      %p128 = scmp.ne.s32.totalorder %s116, %s117
      %p129 = scmp.eq.s32.totalorder %s39, 1
      %p130 = por %p128, %p129
      %p132 = scmp.ne.s32.totalorder %s117, %s131
      %p133 = scmp.eq.s32.totalorder %s39, 0
      %p134 = por %p132, %p133
      %s136 = sadd.s32 %s135, 1
      %p139 = scmp.eq.s32.totalorder %s33, 1
      %p140 = scmp.ne.s32.totalorder %s135, %s137
      %p141 = scmp.eq.s32.totalorder %s33, 0
      %p142 = por %p140, %p141
      %p143 = scmp.ne.s32.totalorder %s135, %s137
      %p144 = scmp.eq.s32.totalorder %s38, 1
      %p145 = por %p143, %p144
      %p146 = scmp.ne.s32.totalorder %s137, %s138
      %p147 = scmp.eq.s32.totalorder %s38, 0
      %p148 = por %p146, %p147
      %p149 = scmp.ne.s32.totalorder %s137, %s138
      %p150 = scmp.eq.s32.totalorder %s39, 1
      %p151 = por %p149, %p150
      %p153 = scmp.ne.s32.totalorder %s138, %s152
      %p154 = scmp.eq.s32.totalorder %s39, 0
      %p155 = por %p153, %p154
      %s157 = sadd.s32 %s156, 1
      %p160 = scmp.eq.s32.totalorder %s33, 1
      %p161 = scmp.ne.s32.totalorder %s156, %s158
      %p162 = scmp.eq.s32.totalorder %s33, 0
      %p163 = por %p161, %p162
      %p164 = scmp.ne.s32.totalorder %s156, %s158
      %p165 = scmp.eq.s32.totalorder %s38, 1
      %p166 = por %p164, %p165
      %p167 = scmp.ne.s32.totalorder %s158, %s159
      %p168 = scmp.eq.s32.totalorder %s38, 0
      %p169 = por %p167, %p168
      %p170 = scmp.ne.s32.totalorder %s158, %s159
      %p171 = scmp.eq.s32.totalorder %s39, 1
      %p172 = por %p170, %p171
      %p174 = scmp.ne.s32.totalorder %s159, %s173
      %p175 = scmp.eq.s32.totalorder %s39, 0
      %p176 = por %p174, %p175
      %s178 = sadd.s32 %s177, 1
      %p181 = scmp.eq.s32.totalorder %s33, 1
      %p182 = scmp.ne.s32.totalorder %s177, %s179
      %p183 = scmp.eq.s32.totalorder %s33, 0
      %p184 = por %p182, %p183
      %p185 = scmp.ne.s32.totalorder %s177, %s179
      %p186 = scmp.eq.s32.totalorder %s38, 1
      %p187 = por %p185, %p186
      %p188 = scmp.ne.s32.totalorder %s179, %s180
      %p189 = scmp.eq.s32.totalorder %s38, 0
      %p190 = por %p188, %p189
      %p191 = scmp.ne.s32.totalorder %s179, %s180
      %p192 = scmp.eq.s32.totalorder %s39, 1
      %p193 = por %p191, %p192
      %p195 = scmp.ne.s32.totalorder %s180, %s194
      %p196 = scmp.eq.s32.totalorder %s39, 0
      %p197 = por %p195, %p196
      %s199 = sadd.s32 %s198, 1
      %p202 = scmp.eq.s32.totalorder %s33, 1
      %p203 = scmp.ne.s32.totalorder %s198, %s200
      %p204 = scmp.eq.s32.totalorder %s33, 0
      %p205 = por %p203, %p204
      %p206 = scmp.ne.s32.totalorder %s198, %s200
      %p207 = scmp.eq.s32.totalorder %s38, 1
      %p208 = por %p206, %p207
      %p209 = scmp.ne.s32.totalorder %s200, %s201
      %p210 = scmp.eq.s32.totalorder %s38, 0
      %p211 = por %p209, %p210
      %p212 = scmp.ne.s32.totalorder %s200, %s201
      %p213 = scmp.eq.s32.totalorder %s39, 1
      %p214 = por %p212, %p213
      %p216 = scmp.ne.s32.totalorder %s201, %s215
      %p217 = scmp.eq.s32.totalorder %s39, 0
      %p218 = por %p216, %p217
      %s220 = sadd.s32 %s219, 1
      %p223 = scmp.eq.s32.totalorder %s33, 1
      %p224 = scmp.ne.s32.totalorder %s219, %s221
      %p225 = scmp.eq.s32.totalorder %s33, 0
      %p226 = por %p224, %p225
      %p227 = scmp.ne.s32.totalorder %s219, %s221
      %p228 = scmp.eq.s32.totalorder %s38, 1
      %p229 = por %p227, %p228
      %p230 = scmp.ne.s32.totalorder %s221, %s222
      %p231 = scmp.eq.s32.totalorder %s38, 0
      %p232 = por %p230, %p231
      %p233 = scmp.ne.s32.totalorder %s221, %s222
      %p234 = scmp.eq.s32.totalorder %s39, 1
      %p235 = por %p233, %p234
      %p237 = scmp.ne.s32.totalorder %s222, %s236
      %p238 = scmp.eq.s32.totalorder %s39, 0
      %p239 = por %p237, %p238
      %s241 = sadd.s32 %s240, 1
      %p244 = scmp.eq.s32.totalorder %s33, 1
      %p245 = scmp.ne.s32.totalorder %s240, %s242
      %p246 = scmp.eq.s32.totalorder %s33, 0
      %p247 = por %p245, %p246
      %p248 = scmp.ne.s32.totalorder %s240, %s242
      %p249 = scmp.eq.s32.totalorder %s38, 1
      %p250 = por %p248, %p249
      %p251 = scmp.ne.s32.totalorder %s242, %s243
      %p252 = scmp.eq.s32.totalorder %s38, 0
      %p253 = por %p251, %p252
      %p254 = scmp.ne.s32.totalorder %s242, %s243
      %p255 = scmp.eq.s32.totalorder %s39, 1
      %p256 = por %p254, %p255
      %p258 = scmp.ne.s32.totalorder %s243, %s257
      %p259 = scmp.eq.s32.totalorder %s39, 0
      %p260 = por %p258, %p259
      %s262 = sadd.s32 %s261, 1
      %p265 = scmp.eq.s32.totalorder %s33, 1
      %p266 = scmp.ne.s32.totalorder %s261, %s263
      %p267 = scmp.eq.s32.totalorder %s33, 0
      %p268 = por %p266, %p267
      %p269 = scmp.ne.s32.totalorder %s261, %s263
      %p270 = scmp.eq.s32.totalorder %s38, 1
      %p271 = por %p269, %p270
      %p272 = scmp.ne.s32.totalorder %s263, %s264
      %p273 = scmp.eq.s32.totalorder %s38, 0
      %p274 = por %p272, %p273
      %p275 = scmp.ne.s32.totalorder %s263, %s264
      %p276 = scmp.eq.s32.totalorder %s39, 1
      %p277 = por %p275, %p276
      %p279 = scmp.ne.s32.totalorder %s264, %s278
      %p280 = scmp.eq.s32.totalorder %s39, 0
      %p281 = por %p279, %p280
      %s283 = sadd.s32 %s282, 1
      %p286 = scmp.eq.s32.totalorder %s33, 1
      %p287 = scmp.ne.s32.totalorder %s282, %s284
      %p288 = scmp.eq.s32.totalorder %s33, 0
      %p289 = por %p287, %p288
      %p290 = scmp.ne.s32.totalorder %s282, %s284
      %p291 = scmp.eq.s32.totalorder %s38, 1
      %p292 = por %p290, %p291
      %p293 = scmp.ne.s32.totalorder %s284, %s285
      %p294 = scmp.eq.s32.totalorder %s38, 0
      %p295 = por %p293, %p294
      %p296 = scmp.ne.s32.totalorder %s284, %s285
      %p297 = scmp.eq.s32.totalorder %s39, 1
      %p298 = por %p296, %p297
      %p300 = scmp.ne.s32.totalorder %s285, %s299
      %p301 = scmp.eq.s32.totalorder %s39, 0
      %p302 = por %p300, %p301
      %s304 = sadd.s32 %s303, 1
      %p307 = scmp.eq.s32.totalorder %s33, 1
      %p308 = scmp.ne.s32.totalorder %s303, %s305
      %p309 = scmp.eq.s32.totalorder %s33, 0
      %p310 = por %p308, %p309
      %p311 = scmp.ne.s32.totalorder %s303, %s305
      %p312 = scmp.eq.s32.totalorder %s38, 1
      %p313 = por %p311, %p312
      %p314 = scmp.ne.s32.totalorder %s305, %s306
      %p315 = scmp.eq.s32.totalorder %s38, 0
      %p316 = por %p314, %p315
      %p317 = scmp.ne.s32.totalorder %s305, %s306
      %p318 = scmp.eq.s32.totalorder %s39, 1
      %p319 = por %p317, %p318
      %p321 = scmp.ne.s32.totalorder %s306, %s320
      %p322 = scmp.eq.s32.totalorder %s39, 0
      %p323 = por %p321, %p322
      %s325 = sadd.s32 %s324, 1
      %p328 = scmp.eq.s32.totalorder %s33, 1
      %p329 = scmp.ne.s32.totalorder %s324, %s326
      %p330 = scmp.eq.s32.totalorder %s33, 0
      %p331 = por %p329, %p330
      %p332 = scmp.ne.s32.totalorder %s324, %s326
      %p333 = scmp.eq.s32.totalorder %s38, 1
      %p334 = por %p332, %p333
      %p335 = scmp.ne.s32.totalorder %s326, %s327
      %p336 = scmp.eq.s32.totalorder %s38, 0
      %p337 = por %p335, %p336
      %p338 = scmp.ne.s32.totalorder %s326, %s327
      %p339 = scmp.eq.s32.totalorder %s39, 1
      %p340 = por %p338, %p339
      %p342 = scmp.ne.s32.totalorder %s327, %s341
      %p343 = scmp.eq.s32.totalorder %s39, 0
      %p344 = por %p342, %p343
      %s346 = sadd.s32 %s345, 1
      %p349 = scmp.eq.s32.totalorder %s33, 1
      %p350 = scmp.ne.s32.totalorder %s345, %s347
      %p351 = scmp.eq.s32.totalorder %s33, 0
      %p352 = por %p350, %p351
      %p353 = scmp.ne.s32.totalorder %s345, %s347
      %p354 = scmp.eq.s32.totalorder %s38, 1
      %p355 = por %p353, %p354
      %p356 = scmp.ne.s32.totalorder %s347, %s348
      %p357 = scmp.eq.s32.totalorder %s38, 0
      %p358 = por %p356, %p357
      %p359 = scmp.ne.s32.totalorder %s347, %s348
      %p360 = scmp.eq.s32.totalorder %s39, 1
      %p361 = por %p359, %p360
      %p363 = scmp.ne.s32.totalorder %s348, %s362
      %p364 = scmp.eq.s32.totalorder %s39, 0
      %p365 = por %p363, %p364
      %s367 = sadd.s32 %s366, 1
      %p370 = scmp.eq.s32.totalorder %s33, 1
      %p371 = scmp.ne.s32.totalorder %s366, %s368
      %p372 = scmp.eq.s32.totalorder %s33, 0
      %p373 = por %p371, %p372
      %p374 = scmp.ne.s32.totalorder %s366, %s368
      %p375 = scmp.eq.s32.totalorder %s38, 1
      %p376 = por %p374, %p375
      %p377 = scmp.ne.s32.totalorder %s368, %s369
      %p378 = scmp.eq.s32.totalorder %s38, 0
      %p379 = por %p377, %p378
      %p380 = scmp.ne.s32.totalorder %s368, %s369
      %p381 = scmp.eq.s32.totalorder %s39, 1
      %p382 = por %p380, %p381
      %p384 = scmp.ne.s32.totalorder %s369, %s383
      %p385 = scmp.eq.s32.totalorder %s39, 0
      %p386 = por %p384, %p385
      %s388 = sadd.s32 %s387, 1
      %p391 = scmp.eq.s32.totalorder %s33, 1
      %p392 = scmp.ne.s32.totalorder %s387, %s389
      %p393 = scmp.eq.s32.totalorder %s33, 0
      %p394 = por %p392, %p393
      %p395 = scmp.ne.s32.totalorder %s387, %s389
      %p396 = scmp.eq.s32.totalorder %s38, 1
      %p397 = por %p395, %p396
      %p398 = scmp.ne.s32.totalorder %s389, %s390
      %p399 = scmp.eq.s32.totalorder %s38, 0
      %p400 = por %p398, %p399
      %p401 = scmp.ne.s32.totalorder %s389, %s390
      %p402 = scmp.eq.s32.totalorder %s39, 1
      %p403 = por %p401, %p402
      %p405 = scmp.ne.s32.totalorder %s390, %s404
      %p406 = scmp.eq.s32.totalorder %s39, 0
      %p407 = por %p405, %p406
      %s409 = sadd.s32 %s408, 1
      %p412 = scmp.eq.s32.totalorder %s33, 1
      %p413 = scmp.ne.s32.totalorder %s408, %s410
      %p414 = scmp.eq.s32.totalorder %s33, 0
      %p415 = por %p413, %p414
      %p416 = scmp.ne.s32.totalorder %s408, %s410
      %p417 = scmp.eq.s32.totalorder %s38, 1
      %p418 = por %p416, %p417
      %p419 = scmp.ne.s32.totalorder %s410, %s411
      %p420 = scmp.eq.s32.totalorder %s38, 0
      %p421 = por %p419, %p420
      %p422 = scmp.ne.s32.totalorder %s410, %s411
      %p423 = scmp.eq.s32.totalorder %s39, 1
      %p424 = por %p422, %p423
      %p426 = scmp.ne.s32.totalorder %s411, %s425
      %p427 = scmp.eq.s32.totalorder %s39, 0
      %p428 = por %p426, %p427
      %s429 = ssub.s32 %s33, %s40
      %p430 = scmp.eq.s32.totalorder %s429, 0
      %s432 = sadd.s32 %s431, 1
      %s433 = scalar_select %p430, %s431, %s432
      %p436 = pneg %p430
      %p437 = scmp.eq.s32.totalorder %s33, 1
      %p438 = por %p436, %p437
      %p439 = scmp.ne.s32.totalorder %s431, %s434
      %p440 = scmp.eq.s32.totalorder %s33, 0
      %p441 = por %p439, %p440
      %p442 = scmp.ne.s32.totalorder %s431, %s434
      %p443 = scmp.eq.s32.totalorder %s38, 1
      %p444 = por %p442, %p443
      %p445 = scmp.ne.s32.totalorder %s434, %s435
      %p446 = scmp.eq.s32.totalorder %s38, 0
      %p447 = por %p445, %p446
      %p448 = scmp.ne.s32.totalorder %s434, %s435
      %p449 = scmp.eq.s32.totalorder %s39, 1
      %p450 = por %p448, %p449
      %p452 = scmp.ne.s32.totalorder %s435, %s451
      %p453 = scmp.eq.s32.totalorder %s39, 0
      %p454 = por %p452, %p453
      %p455 = scmp.le.s32.totalorder 1, %s33
      %p456 = scmp.lt.s32.totalorder %s33, 3
      %p457 = pnand %p455, %p456
      %p458 = pneg %p457
      // Predicated region
      $region9: #{tpu_custom_call.1} parent=5 // pred_check
        _
      $region10: #{tpu_custom_call.1} parent=5 // pred_check_branch
        %460 = sbr.rel (%p457) target = $region12
      $region11: #{tpu_custom_call.1} parent=5 // pred_region
        %s461 = ssub.s32 %s33, 1
        // Predicated region
        $region13: #{tpu_custom_call.1} parent=11 // pred_check
          %p462 = pneg %p106
        $region14: #{tpu_custom_call.1} parent=11 // pred_check_branch
          %464 = sbr.rel (%p462) target = $region16
        $region15: #{tpu_custom_call.1} parent=11 // pred_region
          %s466 = ssub.s32 1024, 1024
          %467 = vsyncadd [#allocation6], %s466
          %s468 = sshll.u32 [#allocation5], 4
          %s469 = int_to_ptr.vmem [resolvable:$true] %s468
          %474 = dma.hbm_to_vmem [thread:$0]  %s2, 1024, %s469, [#allocation6], 64, 64, 4
        $region16: #{tpu_custom_call.1} parent=11 // pred_fallthru
          _
        // Predicated region
        $region17: #{tpu_custom_call.1} parent=11 // pred_check
          %p475 = pneg %p127
        $region18: #{tpu_custom_call.1} parent=11 // pred_check_branch
          %477 = sbr.rel (%p475) target = $region20
        $region19: #{tpu_custom_call.1} parent=11 // pred_region
          _
        $region20: #{tpu_custom_call.1} parent=11 // pred_fallthru
          _
        // Predicated region
        $region21: #{tpu_custom_call.1} parent=11 // pred_check
          %p478 = pneg %p148
        $region22: #{tpu_custom_call.1} parent=11 // pred_check_branch
          %480 = sbr.rel (%p478) target = $region24
        $region23: #{tpu_custom_call.1} parent=11 // pred_region
          %s482 = ssub.s32 1024, 1024
          %483 = vsyncadd [#allocation6], %s482
          %s484 = sshll.u32 [#allocation7], 4
          %s485 = int_to_ptr.vmem [resolvable:$true] %s484
          %490 = dma.hbm_to_vmem [thread:$0]  %s4, 1024, %s485, [#allocation6], 64, 64, 4
        $region24: #{tpu_custom_call.1} parent=11 // pred_fallthru
          _
        // Predicated region
        $region25: #{tpu_custom_call.1} parent=11 // pred_check
          %p491 = pneg %p169
        $region26: #{tpu_custom_call.1} parent=11 // pred_check_branch
          %493 = sbr.rel (%p491) target = $region28
        $region27: #{tpu_custom_call.1} parent=11 // pred_region
          _
        $region28: #{tpu_custom_call.1} parent=11 // pred_fallthru
          _
        // Predicated region
        $region29: #{tpu_custom_call.1} parent=11 // pred_check
          %p494 = pneg %p190
        $region30: #{tpu_custom_call.1} parent=11 // pred_check_branch
          %496 = sbr.rel (%p494) target = $region32
        $region31: #{tpu_custom_call.1} parent=11 // pred_region
          %s498 = ssub.s32 1024, 1024
          %499 = vsyncadd [#allocation9], %s498
          %s500 = sshll.u32 [#allocation8], 4
          %s501 = int_to_ptr.vmem [resolvable:$true] %s500
          %506 = dma.hbm_to_vmem [thread:$0]  %s6, 1024, %s501, [#allocation9], 64, 64, 4
        $region32: #{tpu_custom_call.1} parent=11 // pred_fallthru
          _
        // Predicated region
        $region33: #{tpu_custom_call.1} parent=11 // pred_check
          %p507 = pneg %p211
        $region34: #{tpu_custom_call.1} parent=11 // pred_check_branch
          %509 = sbr.rel (%p507) target = $region36
        $region35: #{tpu_custom_call.1} parent=11 // pred_region
          _
        $region36: #{tpu_custom_call.1} parent=11 // pred_fallthru
          _
        // Predicated region
        $region37: #{tpu_custom_call.1} parent=11 // pred_check
          %p510 = pneg %p232
        $region38: #{tpu_custom_call.1} parent=11 // pred_check_branch
          %512 = sbr.rel (%p510) target = $region40
        $region39: #{tpu_custom_call.1} parent=11 // pred_region
          %s514 = ssub.s32 1024, 1024
          %515 = vsyncadd [#allocation9], %s514
          %s516 = sshll.u32 [#allocation10], 4
          %s517 = int_to_ptr.vmem [resolvable:$true] %s516
          %522 = dma.hbm_to_vmem [thread:$0]  %s8, 1024, %s517, [#allocation9], 64, 64, 4
        $region40: #{tpu_custom_call.1} parent=11 // pred_fallthru
          _
        // Predicated region
        $region41: #{tpu_custom_call.1} parent=11 // pred_check
          %p523 = pneg %p253
        $region42: #{tpu_custom_call.1} parent=11 // pred_check_branch
          %525 = sbr.rel (%p523) target = $region44
        $region43: #{tpu_custom_call.1} parent=11 // pred_region
          _
        $region44: #{tpu_custom_call.1} parent=11 // pred_fallthru
          _
        // Predicated region
        $region45: #{tpu_custom_call.1} parent=11 // pred_check
          %p526 = pneg %p274
        $region46: #{tpu_custom_call.1} parent=11 // pred_check_branch
          %528 = sbr.rel (%p526) target = $region48
        $region47: #{tpu_custom_call.1} parent=11 // pred_region
          _
        $region48: #{tpu_custom_call.1} parent=11 // pred_fallthru
          _
        // Predicated region
        $region49: #{tpu_custom_call.1} parent=11 // pred_check
          %p529 = pneg %p295
        $region50: #{tpu_custom_call.1} parent=11 // pred_check_branch
          %531 = sbr.rel (%p529) target = $region52
        $region51: #{tpu_custom_call.1} parent=11 // pred_region
          _
        $region52: #{tpu_custom_call.1} parent=11 // pred_fallthru
          _
        // Predicated region
        $region53: #{tpu_custom_call.1} parent=11 // pred_check
          %p532 = pneg %p316
        $region54: #{tpu_custom_call.1} parent=11 // pred_check_branch
          %534 = sbr.rel (%p532) target = $region56
        $region55: #{tpu_custom_call.1} parent=11 // pred_region
          %s536 = ssub.s32 4096, 4096
          %537 = vsyncadd [#allocation12], %s536
          %s538 = sshll.u32 [#allocation11], 4
          %s539 = int_to_ptr.vmem [resolvable:$true] %s538
          %544 = dma.hbm_to_vmem [thread:$0]  %s12, 4096, %s539, [#allocation12], 256, 256, 16
        $region56: #{tpu_custom_call.1} parent=11 // pred_fallthru
          _
        // Predicated region
        $region57: #{tpu_custom_call.1} parent=11 // pred_check
          %p545 = pneg %p337
        $region58: #{tpu_custom_call.1} parent=11 // pred_check_branch
          %547 = sbr.rel (%p545) target = $region60
        $region59: #{tpu_custom_call.1} parent=11 // pred_region
          _
        $region60: #{tpu_custom_call.1} parent=11 // pred_fallthru
          _
        // Predicated region
        $region61: #{tpu_custom_call.1} parent=11 // pred_check
          %p548 = pneg %p358
        $region62: #{tpu_custom_call.1} parent=11 // pred_check_branch
          %550 = sbr.rel (%p548) target = $region64
        $region63: #{tpu_custom_call.1} parent=11 // pred_region
          %s552 = ssub.s32 4096, 4096
          %553 = vsyncadd [#allocation12], %s552
          %s554 = sshll.u32 [#allocation13], 4
          %s555 = int_to_ptr.vmem [resolvable:$true] %s554
          %560 = dma.hbm_to_vmem [thread:$0]  %s14, 4096, %s555, [#allocation12], 64, 64, 4
        $region64: #{tpu_custom_call.1} parent=11 // pred_fallthru
          _
        // Predicated region
        $region65: #{tpu_custom_call.1} parent=11 // pred_check
          %p561 = pneg %p379
        $region66: #{tpu_custom_call.1} parent=11 // pred_check_branch
          %563 = sbr.rel (%p561) target = $region68
        $region67: #{tpu_custom_call.1} parent=11 // pred_region
          _
        $region68: #{tpu_custom_call.1} parent=11 // pred_fallthru
          _
        // Predicated region
        $region69: #{tpu_custom_call.1} parent=11 // pred_check
          %p564 = pneg %p400
        $region70: #{tpu_custom_call.1} parent=11 // pred_check_branch
          %566 = sbr.rel (%p564) target = $region72
        $region71: #{tpu_custom_call.1} parent=11 // pred_region
          _
        $region72: #{tpu_custom_call.1} parent=11 // pred_fallthru
          _
        // Predicated region
        $region73: #{tpu_custom_call.1} parent=11 // pred_check
          %p567 = pneg %p421
        $region74: #{tpu_custom_call.1} parent=11 // pred_check_branch
          %569 = sbr.rel (%p567) target = $region76
        $region75: #{tpu_custom_call.1} parent=11 // pred_region
          _
        $region76: #{tpu_custom_call.1} parent=11 // pred_fallthru
          _
      $region12: #{tpu_custom_call.1} parent=5 // pred_fallthru
        _
      %p570 = scmp.lt.s32.totalorder %s33, 2
      // Predicated region
      $region77: #{tpu_custom_call.1} parent=5 // pred_check
        %p571 = pneg %p570
      $region78: #{tpu_custom_call.1} parent=5 // pred_check_branch
        %573 = sbr.rel (%p571) target = $region80
      $region79: #{tpu_custom_call.1} parent=5 // pred_region
        // Predicated region
        $region81: #{tpu_custom_call.1} parent=79 // pred_check
          %p574 = pneg %p53
        $region82: #{tpu_custom_call.1} parent=79 // pred_check_branch
          %576 = sbr.rel (%p574) target = $region84
        $region83: #{tpu_custom_call.1} parent=79 // pred_region
          %s577 = sand.u32 %s43, 1
          %s578 = scalar_lea.sflag [#allocation3], %s577
          %s579 = sand.u32 %s43, 1
          %s580 = smul.addr %s579, 8
          %s581 = scalar_lea.vmem [#allocation2], %s580
          %s583 = ssub.s32 128, 128
          %584 = vsyncadd %s578, %s583
          %s585 = smul.addr %s33, 128
          %s586 = scalar_lea.hbm %s0, %s585
          %s588 = sshll.u32 %s581, 4
          %s589 = int_to_ptr.vmem [resolvable:$true] %s588
          %591 = dma.hbm_to_vmem [thread:$0]  %s586, 128, %s589, %s578
        $region84: #{tpu_custom_call.1} parent=79 // pred_fallthru
          _
        // Predicated region
        $region85: #{tpu_custom_call.1} parent=79 // pred_check
          %p592 = pneg %p79
        $region86: #{tpu_custom_call.1} parent=79 // pred_check_branch
          %594 = sbr.rel (%p592) target = $region88
        $region87: #{tpu_custom_call.1} parent=79 // pred_region
          %p595 = scmp.lt.s32.totalorder %s33, 1
          %s596 = scalar_select %p595, %s33, 1
          %s597 = scalar_lea.vmem %s1, %s596
        $region88: #{tpu_custom_call.1} parent=79 // pred_fallthru
          _
      $region80: #{tpu_custom_call.1} parent=5 // pred_fallthru
        _
      %p598 = scmp.le.s32.totalorder 1, %s33
      %p599 = scmp.lt.s32.totalorder %s33, 3
      %p600 = pnand %p598, %p599
      %p601 = pneg %p600
      // Predicated region
      $region89: #{tpu_custom_call.1} parent=5 // pred_check
        _
      $region90: #{tpu_custom_call.1} parent=5 // pred_check_branch
        %603 = sbr.rel (%p600) target = $region92
      $region91: #{tpu_custom_call.1} parent=5 // pred_region
        %s604 = ssub.s32 %s33, 1
        %s605 = sand.u32 %s46, 1
        %s606 = scalar_lea.sflag [#allocation3], %s605
        %s607 = sand.u32 %s46, 1
        %s608 = smul.addr %s607, 8
        %s609 = scalar_lea.vmem [#allocation2], %s608
        // Predicated region
        $region93: #{tpu_custom_call.1} parent=91 // pred_check
          %p610 = pneg %p59
        $region94: #{tpu_custom_call.1} parent=91 // pred_check_branch
          %612 = sbr.rel (%p610) target = $region96
        $region95: #{tpu_custom_call.1} parent=91 // pred_region
          %613 = dma.done %s606, 128
        $region96: #{tpu_custom_call.1} parent=91 // pred_fallthru
          _
        // Predicated region
        $region97: #{tpu_custom_call.1} parent=91 // pred_check
          %p614 = pneg %p106
        $region98: #{tpu_custom_call.1} parent=91 // pred_check_branch
          %616 = sbr.rel (%p614) target = $region100
        $region99: #{tpu_custom_call.1} parent=91 // pred_region
          %617 = dma.done [#allocation6], 1024
        $region100: #{tpu_custom_call.1} parent=91 // pred_fallthru
          _
        // Predicated region
        $region101: #{tpu_custom_call.1} parent=91 // pred_check
          %p618 = pneg %p148
        $region102: #{tpu_custom_call.1} parent=91 // pred_check_branch
          %620 = sbr.rel (%p618) target = $region104
        $region103: #{tpu_custom_call.1} parent=91 // pred_region
          %621 = dma.done [#allocation6], 1024
        $region104: #{tpu_custom_call.1} parent=91 // pred_fallthru
          _
        // Predicated region
        $region105: #{tpu_custom_call.1} parent=91 // pred_check
          %p622 = pneg %p190
        $region106: #{tpu_custom_call.1} parent=91 // pred_check_branch
          %624 = sbr.rel (%p622) target = $region108
        $region107: #{tpu_custom_call.1} parent=91 // pred_region
          %625 = dma.done [#allocation9], 1024
        $region108: #{tpu_custom_call.1} parent=91 // pred_fallthru
          _
        // Predicated region
        $region109: #{tpu_custom_call.1} parent=91 // pred_check
          %p626 = pneg %p232
        $region110: #{tpu_custom_call.1} parent=91 // pred_check_branch
          %628 = sbr.rel (%p626) target = $region112
        $region111: #{tpu_custom_call.1} parent=91 // pred_region
          %629 = dma.done [#allocation9], 1024
        $region112: #{tpu_custom_call.1} parent=91 // pred_fallthru
          _
        // Predicated region
        $region113: #{tpu_custom_call.1} parent=91 // pred_check
          %p630 = pneg %p316
        $region114: #{tpu_custom_call.1} parent=91 // pred_check_branch
          %632 = sbr.rel (%p630) target = $region116
        $region115: #{tpu_custom_call.1} parent=91 // pred_region
          %633 = dma.done [#allocation12], 4096
        $region116: #{tpu_custom_call.1} parent=91 // pred_fallthru
          _
        // Predicated region
        $region117: #{tpu_custom_call.1} parent=91 // pred_check
          %p634 = pneg %p358
        $region118: #{tpu_custom_call.1} parent=91 // pred_check_branch
          %636 = sbr.rel (%p634) target = $region120
        $region119: #{tpu_custom_call.1} parent=91 // pred_region
          %637 = dma.done [#allocation12], 4096
        $region120: #{tpu_custom_call.1} parent=91 // pred_fallthru
          _
        %s638 = sand.u32 %s46, 1
        %s639 = scalar_lea.sflag [#allocation3], %s638
        %s640 = sand.u32 %s46, 1
        %s641 = smul.addr %s640, 8
        %s642 = scalar_lea.vmem [#allocation2], %s641
        %p643 = pneg %p59
        %p644 = pneg %p56
        %p645 = scmp.lt.s32.totalorder %s38, 1
        %s646 = scalar_select %p645, %s38, 1
        %s647 = scalar_lea.vmem %s1, %s646
        %p648 = pneg %p85
        %p649 = pneg %p82
        %p650 = pneg %p106
        %p651 = pneg %p103
        %p652 = pneg %p127
        %p653 = pneg %p124
        %p654 = pneg %p148
        %p655 = pneg %p145
        %p656 = pneg %p169
        %p657 = pneg %p166
        %p658 = pneg %p190
        %p659 = pneg %p187
        %p660 = pneg %p211
        %p661 = pneg %p208
        %p662 = pneg %p232
        %p663 = pneg %p229
        %p664 = pneg %p253
        %p665 = pneg %p250
        %p666 = pneg %p274
        %p667 = pneg %p271
        %p668 = pneg %p295
        %p669 = pneg %p292
        %p670 = pneg %p316
        %p671 = pneg %p313
        %p672 = pneg %p337
        %p673 = pneg %p334
        %p674 = pneg %p358
        %p675 = pneg %p355
        %p676 = pneg %p379
        %p677 = pneg %p376
        %p678 = pneg %p400
        %p679 = pneg %p397
        %p680 = pneg %p421
        %p681 = pneg %p418
        %p682 = pneg %p447
        %p683 = pneg %p444
        %s684 = sand.u32 %s434, 1
        %s685 = scalar_lea.sflag [#allocation4], %s684
        %s686 = sand.u32 %s434, 1
        %s687 = smul.addr %s686, 8
        %s688 = scalar_lea.vmem [#allocation14], %s687
        %p689 = scmp.lt.s32.totalorder %s38, 1
        %s690 = scalar_select %p689, %s38, 1
        %s691 = scalar_lea.vmem %s1, %s690
        %v693 = vld [vmem:[%s609] sm:$0xff]
        %v694 = vld [vmem:[%s691] sm:$0x1]
        %v695 = vpack.c.bf16 %v693, %v693
        %v696 = vld [vmem:[#allocation5] sm:$0xf]
        %v697 = vld [vmem:[#allocation5 + $0x4] sm:$0xf]
        %v698 = vld [vmem:[#allocation5 + $0x8] sm:$0xf]
        %v699 = vld [vmem:[#allocation5 + $0xc] sm:$0xf]
        %v700 = vld [vmem:[#allocation5 + $0x10] sm:$0xf]
        %v701 = vld [vmem:[#allocation5 + $0x14] sm:$0xf]
        %v702 = vld [vmem:[#allocation5 + $0x18] sm:$0xf]
        %v703 = vld [vmem:[#allocation5 + $0x1c] sm:$0xf]
        %v704 = vld [vmem:[#allocation5 + $0x20] sm:$0xf]
        %v705 = vld [vmem:[#allocation5 + $0x24] sm:$0xf]
        %v706 = vld [vmem:[#allocation5 + $0x28] sm:$0xf]
        %v707 = vld [vmem:[#allocation5 + $0x2c] sm:$0xf]
        %v708 = vld [vmem:[#allocation5 + $0x30] sm:$0xf]
        %v709 = vld [vmem:[#allocation5 + $0x34] sm:$0xf]
        %v710 = vld [vmem:[#allocation5 + $0x38] sm:$0xf]
        %v711 = vld [vmem:[#allocation5 + $0x3c] sm:$0xf]
        %v712 = vld [vmem:[%s3] sm:$0x1]
        %v714 = vlaneseq
        %v715 = vshrl.u32 %v714, 7
        %v716 = vsub.s32 0, %v715
        %v717 = vrot.slane %v712, %v716
        %v735 = vunpack.c.l.b16 %v696
        %v736 = vunpack.c.l.b16 %v697
        %v737 = vunpack.c.l.b16 %v698
        %v738 = vunpack.c.l.b16 %v699
        %v739 = vunpack.c.l.b16 %v700
        %v740 = vunpack.c.l.b16 %v701
        %v741 = vunpack.c.l.b16 %v702
        %v742 = vunpack.c.l.b16 %v703
        %v743 = vunpack.c.l.b16 %v704
        %v744 = vunpack.c.l.b16 %v705
        %v745 = vunpack.c.l.b16 %v706
        %v746 = vunpack.c.l.b16 %v707
        %v747 = vunpack.c.l.b16 %v708
        %v748 = vunpack.c.l.b16 %v709
        %v749 = vunpack.c.l.b16 %v710
        %v750 = vunpack.c.l.b16 %v711
        %v751 = vpack.c.b16 %v736, %v735
        %v752 = vpack.c.b16 %v738, %v737
        %v753 = vpack.c.b16 %v740, %v739
        %v754 = vpack.c.b16 %v742, %v741
        %v755 = vpack.c.b16 %v744, %v743
        %v756 = vpack.c.b16 %v746, %v745
        %v757 = vpack.c.b16 %v748, %v747
        %v758 = vpack.c.b16 %v750, %v749
        %767 = vmatprep.subr.bf16.mxu0 0
        %768 = vmatpush1.bf16.msra.mxu0 %v751
        %769 = vmatprep.subr.bf16.mxu0 0
        %770 = vmatpush1.bf16.msra.mxu0 %v752
        %771 = vmatprep.subr.bf16.mxu0 0
        %772 = vmatpush1.bf16.msra.mxu0 %v753
        %773 = vmatprep.subr.bf16.mxu0 0
        %774 = vmatpush1.bf16.msra.mxu0 %v754
        %775 = vmatprep.subr.bf16.mxu0 0
        %776 = vmatpush1.bf16.msra.mxu0 %v755
        %777 = vmatprep.subr.bf16.mxu0 0
        %778 = vmatpush1.bf16.msra.mxu0 %v756
        %779 = vmatprep.subr.bf16.mxu0 0
        %780 = vmatpush1.bf16.msra.mxu0 %v757
        %781 = vmatprep.subr.bf16.mxu0 0
        %782 = vmatpush1.bf16.msra.mxu0 %v758
        %783 = vmatprep.subr.bf16.mxu0 0
        %784 = vmatpush1.bf16.msra.mxu0 0
        %785 = vmatprep.subr.bf16.mxu0 0
        %786 = vmatpush1.bf16.msra.mxu0 0
        %787 = vmatprep.subr.bf16.mxu0 0
        %788 = vmatpush1.bf16.msra.mxu0 0
        %789 = vmatprep.subr.bf16.mxu0 0
        %790 = vmatpush1.bf16.msra.mxu0 0
        %791 = vmatprep.subr.bf16.mxu0 0
        %792 = vmatpush1.bf16.msra.mxu0 0
        %793 = vmatprep.subr.bf16.mxu0 0
        %794 = vmatpush1.bf16.msra.mxu0 0
        %795 = vmatprep.subr.bf16.mxu0 0
        %796 = vmatpush1.bf16.msra.mxu0 0
        %797 = vmatprep.subr.bf16.mxu0 0
        %798 = vmatpush1.bf16.msra.mxu0 0
        %799 = vmatprep.mubr.bf16.mxu0 0
        %800 = vmatmul.mubr.bf16.gmra.mrb[0].mxu0 %v695
        %v801 = vpop.f32.mrb[0].mxu0
        %v802 = vadd.f32 %v717, %v801
        %v803 = vpop.f32.mrb[0].mxu0
        %v804 = vpop.f32.mrb[0].mxu0
        %v805 = vpop.f32.mrb[0].mxu0
        %806 = vdwg.mxu0
        %v807 = vld [vmem:[#allocation7] sm:$0xf]
        %v808 = vld [vmem:[#allocation7 + $0x4] sm:$0xf]
        %v809 = vld [vmem:[#allocation7 + $0x8] sm:$0xf]
        %v810 = vld [vmem:[#allocation7 + $0xc] sm:$0xf]
        %v811 = vld [vmem:[#allocation7 + $0x10] sm:$0xf]
        %v812 = vld [vmem:[#allocation7 + $0x14] sm:$0xf]
        %v813 = vld [vmem:[#allocation7 + $0x18] sm:$0xf]
        %v814 = vld [vmem:[#allocation7 + $0x1c] sm:$0xf]
        %v815 = vld [vmem:[#allocation7 + $0x20] sm:$0xf]
        %v816 = vld [vmem:[#allocation7 + $0x24] sm:$0xf]
        %v817 = vld [vmem:[#allocation7 + $0x28] sm:$0xf]
        %v818 = vld [vmem:[#allocation7 + $0x2c] sm:$0xf]
        %v819 = vld [vmem:[#allocation7 + $0x30] sm:$0xf]
        %v820 = vld [vmem:[#allocation7 + $0x34] sm:$0xf]
        %v821 = vld [vmem:[#allocation7 + $0x38] sm:$0xf]
        %v822 = vld [vmem:[#allocation7 + $0x3c] sm:$0xf]
        %v823 = vld [vmem:[%s5] sm:$0x1]
        %v825 = vlaneseq
        %v826 = vshrl.u32 %v825, 7
        %v827 = vsub.s32 0, %v826
        %v828 = vrot.slane %v823, %v827
        %v846 = vunpack.c.l.b16 %v807
        %v847 = vunpack.c.l.b16 %v808
        %v848 = vunpack.c.l.b16 %v809
        %v849 = vunpack.c.l.b16 %v810
        %v850 = vunpack.c.l.b16 %v811
        %v851 = vunpack.c.l.b16 %v812
        %v852 = vunpack.c.l.b16 %v813
        %v853 = vunpack.c.l.b16 %v814
        %v854 = vunpack.c.l.b16 %v815
        %v855 = vunpack.c.l.b16 %v816
        %v856 = vunpack.c.l.b16 %v817
        %v857 = vunpack.c.l.b16 %v818
        %v858 = vunpack.c.l.b16 %v819
        %v859 = vunpack.c.l.b16 %v820
        %v860 = vunpack.c.l.b16 %v821
        %v861 = vunpack.c.l.b16 %v822
        %v862 = vpack.c.b16 %v847, %v846
        %v863 = vpack.c.b16 %v849, %v848
        %v864 = vpack.c.b16 %v851, %v850
        %v865 = vpack.c.b16 %v853, %v852
        %v866 = vpack.c.b16 %v855, %v854
        %v867 = vpack.c.b16 %v857, %v856
        %v868 = vpack.c.b16 %v859, %v858
        %v869 = vpack.c.b16 %v861, %v860
        %878 = vmatprep.subr.bf16.mxu0 0
        %879 = vmatpush1.bf16.msra.mxu0 %v862
        %880 = vmatprep.subr.bf16.mxu0 0
        %881 = vmatpush1.bf16.msra.mxu0 %v863
        %882 = vmatprep.subr.bf16.mxu0 0
        %883 = vmatpush1.bf16.msra.mxu0 %v864
        %884 = vmatprep.subr.bf16.mxu0 0
        %885 = vmatpush1.bf16.msra.mxu0 %v865
        %886 = vmatprep.subr.bf16.mxu0 0
        %887 = vmatpush1.bf16.msra.mxu0 %v866
        %888 = vmatprep.subr.bf16.mxu0 0
        %889 = vmatpush1.bf16.msra.mxu0 %v867
        %890 = vmatprep.subr.bf16.mxu0 0
        %891 = vmatpush1.bf16.msra.mxu0 %v868
        %892 = vmatprep.subr.bf16.mxu0 0
        %893 = vmatpush1.bf16.msra.mxu0 %v869
        %894 = vmatprep.subr.bf16.mxu0 0
        %895 = vmatpush1.bf16.msra.mxu0 0
        %896 = vmatprep.subr.bf16.mxu0 0
        %897 = vmatpush1.bf16.msra.mxu0 0
        %898 = vmatprep.subr.bf16.mxu0 0
        %899 = vmatpush1.bf16.msra.mxu0 0
        %900 = vmatprep.subr.bf16.mxu0 0
        %901 = vmatpush1.bf16.msra.mxu0 0
        %902 = vmatprep.subr.bf16.mxu0 0
        %903 = vmatpush1.bf16.msra.mxu0 0
        %904 = vmatprep.subr.bf16.mxu0 0
        %905 = vmatpush1.bf16.msra.mxu0 0
        %906 = vmatprep.subr.bf16.mxu0 0
        %907 = vmatpush1.bf16.msra.mxu0 0
        %908 = vmatprep.subr.bf16.mxu0 0
        %909 = vmatpush1.bf16.msra.mxu0 0
        %910 = vmatprep.mubr.bf16.mxu0 0
        %911 = vmatmul.mubr.bf16.gmra.mrb[0].mxu0 %v695
        %v912 = vpop.f32.mrb[0].mxu0
        %v913 = vadd.f32 %v828, %v912
        %v914 = vpop.f32.mrb[0].mxu0
        %v915 = vpop.f32.mrb[0].mxu0
        %v916 = vpop.f32.mrb[0].mxu0
        %917 = vdwg.mxu0
        %v918 = vld [vmem:[#allocation8] sm:$0xf]
        %v919 = vld [vmem:[#allocation8 + $0x4] sm:$0xf]
        %v920 = vld [vmem:[#allocation8 + $0x8] sm:$0xf]
        %v921 = vld [vmem:[#allocation8 + $0xc] sm:$0xf]
        %v922 = vld [vmem:[#allocation8 + $0x10] sm:$0xf]
        %v923 = vld [vmem:[#allocation8 + $0x14] sm:$0xf]
        %v924 = vld [vmem:[#allocation8 + $0x18] sm:$0xf]
        %v925 = vld [vmem:[#allocation8 + $0x1c] sm:$0xf]
        %v926 = vld [vmem:[#allocation8 + $0x20] sm:$0xf]
        %v927 = vld [vmem:[#allocation8 + $0x24] sm:$0xf]
        %v928 = vld [vmem:[#allocation8 + $0x28] sm:$0xf]
        %v929 = vld [vmem:[#allocation8 + $0x2c] sm:$0xf]
        %v930 = vld [vmem:[#allocation8 + $0x30] sm:$0xf]
        %v931 = vld [vmem:[#allocation8 + $0x34] sm:$0xf]
        %v932 = vld [vmem:[#allocation8 + $0x38] sm:$0xf]
        %v933 = vld [vmem:[#allocation8 + $0x3c] sm:$0xf]
        %v934 = vld [vmem:[%s7] sm:$0x1]
        %v936 = vlaneseq
        %v937 = vshrl.u32 %v936, 7
        %v938 = vsub.s32 0, %v937
        %v939 = vrot.slane %v934, %v938
        %v957 = vunpack.c.l.b16 %v918
        %v958 = vunpack.c.l.b16 %v919
        %v959 = vunpack.c.l.b16 %v920
        %v960 = vunpack.c.l.b16 %v921
        %v961 = vunpack.c.l.b16 %v922
        %v962 = vunpack.c.l.b16 %v923
        %v963 = vunpack.c.l.b16 %v924
        %v964 = vunpack.c.l.b16 %v925
        %v965 = vunpack.c.l.b16 %v926
        %v966 = vunpack.c.l.b16 %v927
        %v967 = vunpack.c.l.b16 %v928
        %v968 = vunpack.c.l.b16 %v929
        %v969 = vunpack.c.l.b16 %v930
        %v970 = vunpack.c.l.b16 %v931
        %v971 = vunpack.c.l.b16 %v932
        %v972 = vunpack.c.l.b16 %v933
        %v973 = vpack.c.b16 %v958, %v957
        %v974 = vpack.c.b16 %v960, %v959
        %v975 = vpack.c.b16 %v962, %v961
        %v976 = vpack.c.b16 %v964, %v963
        %v977 = vpack.c.b16 %v966, %v965
        %v978 = vpack.c.b16 %v968, %v967
        %v979 = vpack.c.b16 %v970, %v969
        %v980 = vpack.c.b16 %v972, %v971
        %989 = vmatprep.subr.bf16.mxu0 0
        %990 = vmatpush1.bf16.msra.mxu0 %v973
        %991 = vmatprep.subr.bf16.mxu0 0
        %992 = vmatpush1.bf16.msra.mxu0 %v974
        %993 = vmatprep.subr.bf16.mxu0 0
        %994 = vmatpush1.bf16.msra.mxu0 %v975
        %995 = vmatprep.subr.bf16.mxu0 0
        %996 = vmatpush1.bf16.msra.mxu0 %v976
        %997 = vmatprep.subr.bf16.mxu0 0
        %998 = vmatpush1.bf16.msra.mxu0 %v977
        %999 = vmatprep.subr.bf16.mxu0 0
        %1000 = vmatpush1.bf16.msra.mxu0 %v978
        %1001 = vmatprep.subr.bf16.mxu0 0
        %1002 = vmatpush1.bf16.msra.mxu0 %v979
        %1003 = vmatprep.subr.bf16.mxu0 0
        %1004 = vmatpush1.bf16.msra.mxu0 %v980
        %1005 = vmatprep.subr.bf16.mxu0 0
        %1006 = vmatpush1.bf16.msra.mxu0 0
        %1007 = vmatprep.subr.bf16.mxu0 0
        %1008 = vmatpush1.bf16.msra.mxu0 0
        %1009 = vmatprep.subr.bf16.mxu0 0
        %1010 = vmatpush1.bf16.msra.mxu0 0
        %1011 = vmatprep.subr.bf16.mxu0 0
        %1012 = vmatpush1.bf16.msra.mxu0 0
        %1013 = vmatprep.subr.bf16.mxu0 0
        %1014 = vmatpush1.bf16.msra.mxu0 0
        %1015 = vmatprep.subr.bf16.mxu0 0
        %1016 = vmatpush1.bf16.msra.mxu0 0
        %1017 = vmatprep.subr.bf16.mxu0 0
        %1018 = vmatpush1.bf16.msra.mxu0 0
        %1019 = vmatprep.subr.bf16.mxu0 0
        %1020 = vmatpush1.bf16.msra.mxu0 0
        %1021 = vmatprep.mubr.bf16.mxu0 0
        %1022 = vmatmul.mubr.bf16.gmra.mrb[0].mxu0 %v695
        %v1023 = vpop.f32.mrb[0].mxu0
        %v1024 = vadd.f32 %v939, %v1023
        %v1025 = vpop.f32.mrb[0].mxu0
        %v1026 = vpop.f32.mrb[0].mxu0
        %v1027 = vpop.f32.mrb[0].mxu0
        %1028 = vdwg.mxu0
        %v1029 = vpack.c.bf16 %v802, %v802
        %v1030 = vpack.c.bf16 %v913, %v913
        %v1031 = vpack.c.bf16 %v1024, %v1024
        %1032 = vmatprep.subr.bf16.mxu0 0
        %1033 = vmatpush1.bf16.xpose.msra.mxu0 %v1030
        %1034 = vmatprep.subr.bf16.mxu0 0
        %1035 = vmatpush1.bf16.xpose.msra.mxu0 0
        %1036 = vmatprep.subr.bf16.mxu0 0
        %1037 = vmatpush1.bf16.xpose.msra.mxu0 0
        %1038 = vmatprep.subr.bf16.mxu0 0
        %1039 = vmatpush1.bf16.xpose.msra.mxu0 0
        %1040 = vmatprep.subr.bf16.mxu0 0
        %1041 = vmatpush1.bf16.xpose.msra.mxu0 0
        %1042 = vmatprep.subr.bf16.mxu0 0
        %1043 = vmatpush1.bf16.xpose.msra.mxu0 0
        %1044 = vmatprep.subr.bf16.mxu0 0
        %1045 = vmatpush1.bf16.xpose.msra.mxu0 0
        %1046 = vmatprep.subr.bf16.mxu0 0
        %1047 = vmatpush1.bf16.xpose.msra.mxu0 0
        %1048 = vmatprep.subr.bf16.mxu0 0
        %1049 = vmatpush1.bf16.xpose.msra.mxu0 0
        %1050 = vmatprep.subr.bf16.mxu0 0
        %1051 = vmatpush1.bf16.xpose.msra.mxu0 0
        %1052 = vmatprep.subr.bf16.mxu0 0
        %1053 = vmatpush1.bf16.xpose.msra.mxu0 0
        %1054 = vmatprep.subr.bf16.mxu0 0
        %1055 = vmatpush1.bf16.xpose.msra.mxu0 0
        %1056 = vmatprep.subr.bf16.mxu0 0
        %1057 = vmatpush1.bf16.xpose.msra.mxu0 0
        %1058 = vmatprep.subr.bf16.mxu0 0
        %1059 = vmatpush1.bf16.xpose.msra.mxu0 0
        %1060 = vmatprep.subr.bf16.mxu0 0
        %1061 = vmatpush1.bf16.xpose.msra.mxu0 0
        %1062 = vmatprep.subr.bf16.mxu0 0
        %1063 = vmatpush1.bf16.xpose.msra.mxu0 0
        %1064 = vmatprep.mubr.bf16.mxu0 0
        %1065 = vmatmul.mubr.bf16.gmra.mrb[0].mxu0 %v1029
        %v1066 = vpop.f32.mrb[0].mxu0
        %v1067 = vadd.f32 0.0, %v1066
        %v1068 = vpop.f32.mrb[0].mxu0
        %v1069 = vpop.f32.mrb[0].mxu0
        %v1070 = vpop.f32.mrb[0].mxu0
        %1071 = vdwg.mxu0
        %v1072 = vmul.f32 %v1067, 0.088388346
        %v1073 = vsub.f32 %v694, 1.0
        %v1074 = vmul.f32 %v1073, 10000.0
        %v1076 = vlaneseq
        %v1077 = vshrl.u32 %v1076, 7
        %v1078 = vsub.s32 0, %v1077
        %v1079 = vrot.slane %v1074, %v1078
        %v1081 = vadd.f32 %v1072, %v1079
        %vm1082 = vcmask 64512
        %v1083 = vsel %vm1082, %v1081, -inf
        %1084 = vmax.xlane.f32.xlu0 %v1083
        %v1085 = vpop.xlane.xlu0 %1084
        %v1086 = vsub.f32 -inf, %v1085
        %v1087 = vmul.f32 %v1086, 1.442695
        %v1088 = vpow.pop %v1087
        %v1089 = vsub.f32 %v1081, %v1085
        %v1090 = vmul.f32 %v1089, 1.442695
        %v1091 = vpow.pop %v1090
        %v1092 = vmul.f32 %v1088, 0.0
        %v1093 = vsel %vm1082, %v1091, 0.0
        %1094 = vadd.xlane.f32.xlu0 %v1093
        %v1095 = vpop.xlane.xlu0 %1094
        %v1096 = vadd.f32 %v1092, %v1095
        %v1097 = vpack.c.bf16 %v1091, %v1091
        %v1099 = vsel %vm1082, %v1097, 0
        %vm1101 = vcmask 1043456
        %v1103 = vsel %vm1101, %v1031, 0
        %1105 = vmatprep.subr.bf16.mxu0 0
        %1106 = vmatpush1.bf16.msra.mxu0 %v1103
        %1107 = vmatprep.subr.bf16.mxu0 0
        %1108 = vmatpush1.bf16.msra.mxu0 0
        %1109 = vmatprep.subr.bf16.mxu0 0
        %1110 = vmatpush1.bf16.msra.mxu0 0
        %1111 = vmatprep.subr.bf16.mxu0 0
        %1112 = vmatpush1.bf16.msra.mxu0 0
        %1113 = vmatprep.subr.bf16.mxu0 0
        %1114 = vmatpush1.bf16.msra.mxu0 0
        %1115 = vmatprep.subr.bf16.mxu0 0
        %1116 = vmatpush1.bf16.msra.mxu0 0
        %1117 = vmatprep.subr.bf16.mxu0 0
        %1118 = vmatpush1.bf16.msra.mxu0 0
        %1119 = vmatprep.subr.bf16.mxu0 0
        %1120 = vmatpush1.bf16.msra.mxu0 0
        %1121 = vmatprep.subr.bf16.mxu0 0
        %1122 = vmatpush1.bf16.msra.mxu0 0
        %1123 = vmatprep.subr.bf16.mxu0 0
        %1124 = vmatpush1.bf16.msra.mxu0 0
        %1125 = vmatprep.subr.bf16.mxu0 0
        %1126 = vmatpush1.bf16.msra.mxu0 0
        %1127 = vmatprep.subr.bf16.mxu0 0
        %1128 = vmatpush1.bf16.msra.mxu0 0
        %1129 = vmatprep.subr.bf16.mxu0 0
        %1130 = vmatpush1.bf16.msra.mxu0 0
        %1131 = vmatprep.subr.bf16.mxu0 0
        %1132 = vmatpush1.bf16.msra.mxu0 0
        %1133 = vmatprep.subr.bf16.mxu0 0
        %1134 = vmatpush1.bf16.msra.mxu0 0
        %1135 = vmatprep.subr.bf16.mxu0 0
        %1136 = vmatpush1.bf16.msra.mxu0 0
        %1137 = vmatprep.mubr.bf16.mxu0 0
        %1138 = vmatmul.mubr.bf16.gmra.mrb[0].mxu0 %v1099
        %v1139 = vpop.f32.mrb[0].mxu0
        %v1140 = vadd.f32 0.0, %v1139
        %v1141 = vpop.f32.mrb[0].mxu0
        %v1142 = vpop.f32.mrb[0].mxu0
        %v1143 = vpop.f32.mrb[0].mxu0
        %1144 = vdwg.mxu0
        %v1145 = vadd.f32 %v1092, %v1140
        %v1146 = vrcp.pop %v1096
        %v1147 = vmul.f32 %v1145, %v1146
        %v1148 = vpack.c.bf16 %v1147, %v1147
        %v1149 = vld [vmem:[#allocation10] sm:$0xf]
        %v1150 = vld [vmem:[#allocation10 + $0x4] sm:$0xf]
        %v1151 = vld [vmem:[#allocation10 + $0x8] sm:$0xf]
        %v1152 = vld [vmem:[#allocation10 + $0xc] sm:$0xf]
        %v1153 = vld [vmem:[#allocation10 + $0x10] sm:$0xf]
        %v1154 = vld [vmem:[#allocation10 + $0x14] sm:$0xf]
        %v1155 = vld [vmem:[#allocation10 + $0x18] sm:$0xf]
        %v1156 = vld [vmem:[#allocation10 + $0x1c] sm:$0xf]
        %v1157 = vld [vmem:[#allocation10 + $0x20] sm:$0xf]
        %v1158 = vld [vmem:[#allocation10 + $0x24] sm:$0xf]
        %v1159 = vld [vmem:[#allocation10 + $0x28] sm:$0xf]
        %v1160 = vld [vmem:[#allocation10 + $0x2c] sm:$0xf]
        %v1161 = vld [vmem:[#allocation10 + $0x30] sm:$0xf]
        %v1162 = vld [vmem:[#allocation10 + $0x34] sm:$0xf]
        %v1163 = vld [vmem:[#allocation10 + $0x38] sm:$0xf]
        %v1164 = vld [vmem:[#allocation10 + $0x3c] sm:$0xf]
        %v1165 = vld [vmem:[%s9] sm:$0x1]
        %v1167 = vlaneseq
        %v1168 = vshrl.u32 %v1167, 7
        %v1169 = vsub.s32 0, %v1168
        %v1170 = vrot.slane %v1165, %v1169
        %v1188 = vunpack.c.l.b16 %v1149
        %v1189 = vunpack.c.l.b16 %v1150
        %v1190 = vunpack.c.l.b16 %v1151
        %v1191 = vunpack.c.l.b16 %v1152
        %v1192 = vunpack.c.l.b16 %v1153
        %v1193 = vunpack.c.l.b16 %v1154
        %v1194 = vunpack.c.l.b16 %v1155
        %v1195 = vunpack.c.l.b16 %v1156
        %v1196 = vunpack.c.l.b16 %v1157
        %v1197 = vunpack.c.l.b16 %v1158
        %v1198 = vunpack.c.l.b16 %v1159
        %v1199 = vunpack.c.l.b16 %v1160
        %v1200 = vunpack.c.l.b16 %v1161
        %v1201 = vunpack.c.l.b16 %v1162
        %v1202 = vunpack.c.l.b16 %v1163
        %v1203 = vunpack.c.l.b16 %v1164
        %v1204 = vpack.c.b16 %v1189, %v1188
        %v1205 = vpack.c.b16 %v1191, %v1190
        %v1206 = vpack.c.b16 %v1193, %v1192
        %v1207 = vpack.c.b16 %v1195, %v1194
        %v1208 = vpack.c.b16 %v1197, %v1196
        %v1209 = vpack.c.b16 %v1199, %v1198
        %v1210 = vpack.c.b16 %v1201, %v1200
        %v1211 = vpack.c.b16 %v1203, %v1202
        %1220 = vmatprep.subr.bf16.mxu0 0
        %1221 = vmatpush1.bf16.msra.mxu0 %v1204
        %1222 = vmatprep.subr.bf16.mxu0 0
        %1223 = vmatpush1.bf16.msra.mxu0 %v1205
        %1224 = vmatprep.subr.bf16.mxu0 0
        %1225 = vmatpush1.bf16.msra.mxu0 %v1206
        %1226 = vmatprep.subr.bf16.mxu0 0
        %1227 = vmatpush1.bf16.msra.mxu0 %v1207
        %1228 = vmatprep.subr.bf16.mxu0 0
        %1229 = vmatpush1.bf16.msra.mxu0 %v1208
        %1230 = vmatprep.subr.bf16.mxu0 0
        %1231 = vmatpush1.bf16.msra.mxu0 %v1209
        %1232 = vmatprep.subr.bf16.mxu0 0
        %1233 = vmatpush1.bf16.msra.mxu0 %v1210
        %1234 = vmatprep.subr.bf16.mxu0 0
        %1235 = vmatpush1.bf16.msra.mxu0 %v1211
        %1236 = vmatprep.subr.bf16.mxu0 0
        %1237 = vmatpush1.bf16.msra.mxu0 0
        %1238 = vmatprep.subr.bf16.mxu0 0
        %1239 = vmatpush1.bf16.msra.mxu0 0
        %1240 = vmatprep.subr.bf16.mxu0 0
        %1241 = vmatpush1.bf16.msra.mxu0 0
        %1242 = vmatprep.subr.bf16.mxu0 0
        %1243 = vmatpush1.bf16.msra.mxu0 0
        %1244 = vmatprep.subr.bf16.mxu0 0
        %1245 = vmatpush1.bf16.msra.mxu0 0
        %1246 = vmatprep.subr.bf16.mxu0 0
        %1247 = vmatpush1.bf16.msra.mxu0 0
        %1248 = vmatprep.subr.bf16.mxu0 0
        %1249 = vmatpush1.bf16.msra.mxu0 0
        %1250 = vmatprep.subr.bf16.mxu0 0
        %1251 = vmatpush1.bf16.msra.mxu0 0
        %1252 = vmatprep.mubr.bf16.mxu0 0
        %1253 = vmatmul.mubr.bf16.gmra.mrb[0].mxu0 %v1148
        %v1254 = vpop.f32.mrb[0].mxu0
        %v1255 = vadd.f32 %v1170, %v1254
        %v1256 = vpop.f32.mrb[0].mxu0
        %v1257 = vpop.f32.mrb[0].mxu0
        %v1258 = vpop.f32.mrb[0].mxu0
        %1259 = vdwg.mxu0
        %v1260 = vadd.f32 %v693, %v1255
        %v1261 = vld [vmem:[%s10] sm:$0x1]
        %v1262 = vld [vmem:[%s11] sm:$0x1]
        %1263 = vadd.xlane.f32.xlu0 %v1260
        %v1264 = vpop.xlane.xlu0 %1263
        %v1265 = vrcp.pop 128.0
        %v1266 = vmul.f32 %v1264, %v1265
        %v1267 = vsub.f32 %v1260, %v1266
        %v1268 = vmul.f32 %v1267, %v1267
        %1269 = vadd.xlane.f32.xlu0 %v1268
        %v1270 = vpop.xlane.xlu0 %1269
        %v1271 = vmul.f32 %v1270, %v1265
        %v1272 = vadd.f32 %v1271, 1e-12
        %v1273 = vrsqrt.pop %v1272
        %v1274 = vmul.f32 %v1267, %v1273
        %v1276 = vlaneseq
        %v1277 = vshrl.u32 %v1276, 7
        %v1278 = vsub.s32 0, %v1277
        %v1279 = vrot.slane %v1261, %v1278
        %v1281 = vmul.f32 %v1274, %v1279
        %v1283 = vlaneseq
        %v1284 = vshrl.u32 %v1283, 7
        %v1285 = vsub.s32 0, %v1284
        %v1286 = vrot.slane %v1262, %v1285
        %v1288 = vadd.f32 %v1281, %v1286
        %v1289 = vpack.c.bf16 %v1288, %v1288
        %v1290 = vld [vmem:[#allocation11] sm:$0xff]
        %v1291 = vld [vmem:[#allocation11 + $0x10] sm:$0xff]
        %v1292 = vld [vmem:[#allocation11 + $0x20] sm:$0xff]
        %v1293 = vld [vmem:[#allocation11 + $0x30] sm:$0xff]
        %v1294 = vld [vmem:[#allocation11 + $0x40] sm:$0xff]
        %v1295 = vld [vmem:[#allocation11 + $0x50] sm:$0xff]
        %v1296 = vld [vmem:[#allocation11 + $0x60] sm:$0xff]
        %v1297 = vld [vmem:[#allocation11 + $0x70] sm:$0xff]
        %v1298 = vld [vmem:[#allocation11 + $0x80] sm:$0xff]
        %v1299 = vld [vmem:[#allocation11 + $0x90] sm:$0xff]
        %v1300 = vld [vmem:[#allocation11 + $0xa0] sm:$0xff]
        %v1301 = vld [vmem:[#allocation11 + $0xb0] sm:$0xff]
        %v1302 = vld [vmem:[#allocation11 + $0xc0] sm:$0xff]
        %v1303 = vld [vmem:[#allocation11 + $0xd0] sm:$0xff]
        %v1304 = vld [vmem:[#allocation11 + $0xe0] sm:$0xff]
        %v1305 = vld [vmem:[#allocation11 + $0xf0] sm:$0xff]
        %v1306 = vld [vmem:[%s13] sm:$0x3]
        %v1308 = vlaneseq
        %v1309 = vshrl.u32 %v1308, 7
        %v1310 = vsub.s32 0, %v1309
        %v1311 = vrot.slane %v1306, %v1310
        %v1312 = vlaneseq
        %v1313 = vshrl.u32 %v1312, 7
        %v1314 = vsub.s32 1, %v1313
        %v1315 = vrot.slane %v1306, %v1314
        %v1334 = vunpack.c.l.b16 %v1290
        %v1335 = vunpack.c.h.b16 %v1290
        %v1336 = vunpack.c.l.b16 %v1291
        %v1337 = vunpack.c.h.b16 %v1291
        %v1338 = vunpack.c.l.b16 %v1292
        %v1339 = vunpack.c.h.b16 %v1292
        %v1340 = vunpack.c.l.b16 %v1293
        %v1341 = vunpack.c.h.b16 %v1293
        %v1342 = vunpack.c.l.b16 %v1294
        %v1343 = vunpack.c.h.b16 %v1294
        %v1344 = vunpack.c.l.b16 %v1295
        %v1345 = vunpack.c.h.b16 %v1295
        %v1346 = vunpack.c.l.b16 %v1296
        %v1347 = vunpack.c.h.b16 %v1296
        %v1348 = vunpack.c.l.b16 %v1297
        %v1349 = vunpack.c.h.b16 %v1297
        %v1350 = vunpack.c.l.b16 %v1298
        %v1351 = vunpack.c.h.b16 %v1298
        %v1352 = vunpack.c.l.b16 %v1299
        %v1353 = vunpack.c.h.b16 %v1299
        %v1354 = vunpack.c.l.b16 %v1300
        %v1355 = vunpack.c.h.b16 %v1300
        %v1356 = vunpack.c.l.b16 %v1301
        %v1357 = vunpack.c.h.b16 %v1301
        %v1358 = vunpack.c.l.b16 %v1302
        %v1359 = vunpack.c.h.b16 %v1302
        %v1360 = vunpack.c.l.b16 %v1303
        %v1361 = vunpack.c.h.b16 %v1303
        %v1362 = vunpack.c.l.b16 %v1304
        %v1363 = vunpack.c.h.b16 %v1304
        %v1364 = vunpack.c.l.b16 %v1305
        %v1365 = vunpack.c.h.b16 %v1305
        %v1366 = vpack.c.b16 %v1336, %v1334
        %v1367 = vpack.c.b16 %v1337, %v1335
        %v1368 = vpack.c.b16 %v1340, %v1338
        %v1369 = vpack.c.b16 %v1341, %v1339
        %v1370 = vpack.c.b16 %v1344, %v1342
        %v1371 = vpack.c.b16 %v1345, %v1343
        %v1372 = vpack.c.b16 %v1348, %v1346
        %v1373 = vpack.c.b16 %v1349, %v1347
        %v1374 = vpack.c.b16 %v1352, %v1350
        %v1375 = vpack.c.b16 %v1353, %v1351
        %v1376 = vpack.c.b16 %v1356, %v1354
        %v1377 = vpack.c.b16 %v1357, %v1355
        %v1378 = vpack.c.b16 %v1360, %v1358
        %v1379 = vpack.c.b16 %v1361, %v1359
        %v1380 = vpack.c.b16 %v1364, %v1362
        %v1381 = vpack.c.b16 %v1365, %v1363
        %1398 = vmatprep.subr.bf16.mxu0 %v1367
        %1399 = vmatpush1.bf16.msra.mxu0 %v1366
        %1400 = vmatprep.subr.bf16.mxu0 %v1369
        %1401 = vmatpush1.bf16.msra.mxu0 %v1368
        %1402 = vmatprep.subr.bf16.mxu0 %v1371
        %1403 = vmatpush1.bf16.msra.mxu0 %v1370
        %1404 = vmatprep.subr.bf16.mxu0 %v1373
        %1405 = vmatpush1.bf16.msra.mxu0 %v1372
        %1406 = vmatprep.subr.bf16.mxu0 %v1375
        %1407 = vmatpush1.bf16.msra.mxu0 %v1374
        %1408 = vmatprep.subr.bf16.mxu0 %v1377
        %1409 = vmatpush1.bf16.msra.mxu0 %v1376
        %1410 = vmatprep.subr.bf16.mxu0 %v1379
        %1411 = vmatpush1.bf16.msra.mxu0 %v1378
        %1412 = vmatprep.subr.bf16.mxu0 %v1381
        %1413 = vmatpush1.bf16.msra.mxu0 %v1380
        %1414 = vmatprep.subr.bf16.mxu0 0
        %1415 = vmatpush1.bf16.msra.mxu0 0
        %1416 = vmatprep.subr.bf16.mxu0 0
        %1417 = vmatpush1.bf16.msra.mxu0 0
        %1418 = vmatprep.subr.bf16.mxu0 0
        %1419 = vmatpush1.bf16.msra.mxu0 0
        %1420 = vmatprep.subr.bf16.mxu0 0
        %1421 = vmatpush1.bf16.msra.mxu0 0
        %1422 = vmatprep.subr.bf16.mxu0 0
        %1423 = vmatpush1.bf16.msra.mxu0 0
        %1424 = vmatprep.subr.bf16.mxu0 0
        %1425 = vmatpush1.bf16.msra.mxu0 0
        %1426 = vmatprep.subr.bf16.mxu0 0
        %1427 = vmatpush1.bf16.msra.mxu0 0
        %1428 = vmatprep.subr.bf16.mxu0 0
        %1429 = vmatpush1.bf16.msra.mxu0 0
        %1430 = vmatprep.mubr.bf16.mxu0 0
        %1431 = vmatmul.mubr.bf16.gmra.mrb[0].mxu0 %v1289
        %v1432 = vpop.f32.mrb[0].mxu0
        %v1433 = vadd.f32 %v1311, %v1432
        %v1434 = vpop.f32.mrb[0].mxu0
        %v1435 = vadd.f32 %v1315, %v1434
        %v1436 = vpop.f32.mrb[0].mxu0
        %v1437 = vpop.f32.mrb[0].mxu0
        %1438 = vdwg.mxu0
        %v1439 = vmul.f32 %v1433, 0.5
        %v1440 = vmul.f32 %v1435, 0.5
        %v1441 = vmul.f32 %v1433, 0.70710677
        %v1442 = vmul.f32 %v1435, 0.70710677
        %v1443 = verf.f32.pop %v1441
        %v1444 = verf.f32.pop %v1442
        %v1445 = vadd.f32 %v1443, 1.0
        %v1446 = vadd.f32 %v1444, 1.0
        %v1447 = vmul.f32 %v1439, %v1445
        %v1448 = vmul.f32 %v1440, %v1446
        %v1449 = vpack.c.bf16 %v1447, %v1447
        %v1450 = vpack.c.bf16 %v1448, %v1448
        %v1451 = vld [vmem:[#allocation13] sm:$0xf]
        %v1452 = vld [vmem:[#allocation13 + $0x4] sm:$0xf]
        %v1453 = vld [vmem:[#allocation13 + $0x8] sm:$0xf]
        %v1454 = vld [vmem:[#allocation13 + $0xc] sm:$0xf]
        %v1455 = vld [vmem:[#allocation13 + $0x10] sm:$0xf]
        %v1456 = vld [vmem:[#allocation13 + $0x14] sm:$0xf]
        %v1457 = vld [vmem:[#allocation13 + $0x18] sm:$0xf]
        %v1458 = vld [vmem:[#allocation13 + $0x1c] sm:$0xf]
        %v1459 = vld [vmem:[#allocation13 + $0x20] sm:$0xf]
        %v1460 = vld [vmem:[#allocation13 + $0x24] sm:$0xf]
        %v1461 = vld [vmem:[#allocation13 + $0x28] sm:$0xf]
        %v1462 = vld [vmem:[#allocation13 + $0x2c] sm:$0xf]
        %v1463 = vld [vmem:[#allocation13 + $0x30] sm:$0xf]
        %v1464 = vld [vmem:[#allocation13 + $0x34] sm:$0xf]
        %v1465 = vld [vmem:[#allocation13 + $0x38] sm:$0xf]
        %v1466 = vld [vmem:[#allocation13 + $0x3c] sm:$0xf]
        %v1467 = vld [vmem:[#allocation13 + $0x40] sm:$0xf]
        %v1468 = vld [vmem:[#allocation13 + $0x44] sm:$0xf]
        %v1469 = vld [vmem:[#allocation13 + $0x48] sm:$0xf]
        %v1470 = vld [vmem:[#allocation13 + $0x4c] sm:$0xf]
        %v1471 = vld [vmem:[#allocation13 + $0x50] sm:$0xf]
        %v1472 = vld [vmem:[#allocation13 + $0x54] sm:$0xf]
        %v1473 = vld [vmem:[#allocation13 + $0x58] sm:$0xf]
        %v1474 = vld [vmem:[#allocation13 + $0x5c] sm:$0xf]
        %v1475 = vld [vmem:[#allocation13 + $0x60] sm:$0xf]
        %v1476 = vld [vmem:[#allocation13 + $0x64] sm:$0xf]
        %v1477 = vld [vmem:[#allocation13 + $0x68] sm:$0xf]
        %v1478 = vld [vmem:[#allocation13 + $0x6c] sm:$0xf]
        %v1479 = vld [vmem:[#allocation13 + $0x70] sm:$0xf]
        %v1480 = vld [vmem:[#allocation13 + $0x74] sm:$0xf]
        %v1481 = vld [vmem:[#allocation13 + $0x78] sm:$0xf]
        %v1482 = vld [vmem:[#allocation13 + $0x7c] sm:$0xf]
        %v1483 = vld [vmem:[#allocation11 + $0x8] sm:$0xff]
        %v1484 = vld [vmem:[#allocation11 + $0x18] sm:$0xff]
        %v1485 = vld [vmem:[#allocation11 + $0x28] sm:$0xff]
        %v1486 = vld [vmem:[#allocation11 + $0x38] sm:$0xff]
        %v1487 = vld [vmem:[#allocation11 + $0x48] sm:$0xff]
        %v1488 = vld [vmem:[#allocation11 + $0x58] sm:$0xff]
        %v1489 = vld [vmem:[#allocation11 + $0x68] sm:$0xff]
        %v1490 = vld [vmem:[#allocation11 + $0x78] sm:$0xff]
        %v1491 = vld [vmem:[#allocation11 + $0x88] sm:$0xff]
        %v1492 = vld [vmem:[#allocation11 + $0x98] sm:$0xff]
        %v1493 = vld [vmem:[#allocation11 + $0xa8] sm:$0xff]
        %v1494 = vld [vmem:[#allocation11 + $0xb8] sm:$0xff]
        %v1495 = vld [vmem:[#allocation11 + $0xc8] sm:$0xff]
        %v1496 = vld [vmem:[#allocation11 + $0xd8] sm:$0xff]
        %v1497 = vld [vmem:[#allocation11 + $0xe8] sm:$0xff]
        %v1498 = vld [vmem:[#allocation11 + $0xf8] sm:$0xff]
        %v1499 = vld [vmem:[%s13 + $0x2] sm:$0x3]
        %v1501 = vlaneseq
        %v1502 = vshrl.u32 %v1501, 7
        %v1503 = vsub.s32 0, %v1502
        %v1504 = vrot.slane %v1499, %v1503
        %v1505 = vlaneseq
        %v1506 = vshrl.u32 %v1505, 7
        %v1507 = vsub.s32 1, %v1506
        %v1508 = vrot.slane %v1499, %v1507
        %v1527 = vunpack.c.l.b16 %v1483
        %v1528 = vunpack.c.h.b16 %v1483
        %v1529 = vunpack.c.l.b16 %v1484
        %v1530 = vunpack.c.h.b16 %v1484
        %v1531 = vunpack.c.l.b16 %v1485
        %v1532 = vunpack.c.h.b16 %v1485
        %v1533 = vunpack.c.l.b16 %v1486
        %v1534 = vunpack.c.h.b16 %v1486
        %v1535 = vunpack.c.l.b16 %v1487
        %v1536 = vunpack.c.h.b16 %v1487
        %v1537 = vunpack.c.l.b16 %v1488
        %v1538 = vunpack.c.h.b16 %v1488
        %v1539 = vunpack.c.l.b16 %v1489
        %v1540 = vunpack.c.h.b16 %v1489
        %v1541 = vunpack.c.l.b16 %v1490
        %v1542 = vunpack.c.h.b16 %v1490
        %v1543 = vunpack.c.l.b16 %v1491
        %v1544 = vunpack.c.h.b16 %v1491
        %v1545 = vunpack.c.l.b16 %v1492
        %v1546 = vunpack.c.h.b16 %v1492
        %v1547 = vunpack.c.l.b16 %v1493
        %v1548 = vunpack.c.h.b16 %v1493
        %v1549 = vunpack.c.l.b16 %v1494
        %v1550 = vunpack.c.h.b16 %v1494
        %v1551 = vunpack.c.l.b16 %v1495
        %v1552 = vunpack.c.h.b16 %v1495
        %v1553 = vunpack.c.l.b16 %v1496
        %v1554 = vunpack.c.h.b16 %v1496
        %v1555 = vunpack.c.l.b16 %v1497
        %v1556 = vunpack.c.h.b16 %v1497
        %v1557 = vunpack.c.l.b16 %v1498
        %v1558 = vunpack.c.h.b16 %v1498
        %v1559 = vpack.c.b16 %v1529, %v1527
        %v1560 = vpack.c.b16 %v1530, %v1528
        %v1561 = vpack.c.b16 %v1533, %v1531
        %v1562 = vpack.c.b16 %v1534, %v1532
        %v1563 = vpack.c.b16 %v1537, %v1535
        %v1564 = vpack.c.b16 %v1538, %v1536
        %v1565 = vpack.c.b16 %v1541, %v1539
        %v1566 = vpack.c.b16 %v1542, %v1540
        %v1567 = vpack.c.b16 %v1545, %v1543
        %v1568 = vpack.c.b16 %v1546, %v1544
        %v1569 = vpack.c.b16 %v1549, %v1547
        %v1570 = vpack.c.b16 %v1550, %v1548
        %v1571 = vpack.c.b16 %v1553, %v1551
        %v1572 = vpack.c.b16 %v1554, %v1552
        %v1573 = vpack.c.b16 %v1557, %v1555
        %v1574 = vpack.c.b16 %v1558, %v1556
        %1591 = vmatprep.subr.bf16.mxu0 %v1560
        %1592 = vmatpush1.bf16.msra.mxu0 %v1559
        %1593 = vmatprep.subr.bf16.mxu0 %v1562
        %1594 = vmatpush1.bf16.msra.mxu0 %v1561
        %1595 = vmatprep.subr.bf16.mxu0 %v1564
        %1596 = vmatpush1.bf16.msra.mxu0 %v1563
        %1597 = vmatprep.subr.bf16.mxu0 %v1566
        %1598 = vmatpush1.bf16.msra.mxu0 %v1565
        %1599 = vmatprep.subr.bf16.mxu0 %v1568
        %1600 = vmatpush1.bf16.msra.mxu0 %v1567
        %1601 = vmatprep.subr.bf16.mxu0 %v1570
        %1602 = vmatpush1.bf16.msra.mxu0 %v1569
        %1603 = vmatprep.subr.bf16.mxu0 %v1572
        %1604 = vmatpush1.bf16.msra.mxu0 %v1571
        %1605 = vmatprep.subr.bf16.mxu0 %v1574
        %1606 = vmatpush1.bf16.msra.mxu0 %v1573
        %1607 = vmatprep.subr.bf16.mxu0 0
        %1608 = vmatpush1.bf16.msra.mxu0 0
        %1609 = vmatprep.subr.bf16.mxu0 0
        %1610 = vmatpush1.bf16.msra.mxu0 0
        %1611 = vmatprep.subr.bf16.mxu0 0
        %1612 = vmatpush1.bf16.msra.mxu0 0
        %1613 = vmatprep.subr.bf16.mxu0 0
        %1614 = vmatpush1.bf16.msra.mxu0 0
        %1615 = vmatprep.subr.bf16.mxu0 0
        %1616 = vmatpush1.bf16.msra.mxu0 0
        %1617 = vmatprep.subr.bf16.mxu0 0
        %1618 = vmatpush1.bf16.msra.mxu0 0
        %1619 = vmatprep.subr.bf16.mxu0 0
        %1620 = vmatpush1.bf16.msra.mxu0 0
        %1621 = vmatprep.subr.bf16.mxu0 0
        %1622 = vmatpush1.bf16.msra.mxu0 0
        %1623 = vmatprep.mubr.bf16.mxu0 0
        %1624 = vmatmul.mubr.bf16.gmra.mrb[0].mxu0 %v1289
        %v1625 = vpop.f32.mrb[0].mxu0
        %v1626 = vadd.f32 %v1504, %v1625
        %v1627 = vpop.f32.mrb[0].mxu0
        %v1628 = vadd.f32 %v1508, %v1627
        %v1629 = vpop.f32.mrb[0].mxu0
        %v1630 = vpop.f32.mrb[0].mxu0
        %1631 = vdwg.mxu0
        %v1632 = vmul.f32 %v1626, 0.5
        %v1633 = vmul.f32 %v1628, 0.5
        %v1634 = vmul.f32 %v1626, 0.70710677
        %v1635 = vmul.f32 %v1628, 0.70710677
        %v1636 = verf.f32.pop %v1634
        %v1637 = verf.f32.pop %v1635
        %v1638 = vadd.f32 %v1636, 1.0
        %v1639 = vadd.f32 %v1637, 1.0
        %v1640 = vmul.f32 %v1632, %v1638
        %v1641 = vmul.f32 %v1633, %v1639
        %v1642 = vpack.c.bf16 %v1640, %v1640
        %v1643 = vpack.c.bf16 %v1641, %v1641
        %v1644 = vld [vmem:[#allocation13 + $0x80] sm:$0xf]
        %v1645 = vld [vmem:[#allocation13 + $0x84] sm:$0xf]
        %v1646 = vld [vmem:[#allocation13 + $0x88] sm:$0xf]
        %v1647 = vld [vmem:[#allocation13 + $0x8c] sm:$0xf]
        %v1648 = vld [vmem:[#allocation13 + $0x90] sm:$0xf]
        %v1649 = vld [vmem:[#allocation13 + $0x94] sm:$0xf]
        %v1650 = vld [vmem:[#allocation13 + $0x98] sm:$0xf]
        %v1651 = vld [vmem:[#allocation13 + $0x9c] sm:$0xf]
        %v1652 = vld [vmem:[#allocation13 + $0xa0] sm:$0xf]
        %v1653 = vld [vmem:[#allocation13 + $0xa4] sm:$0xf]
        %v1654 = vld [vmem:[#allocation13 + $0xa8] sm:$0xf]
        %v1655 = vld [vmem:[#allocation13 + $0xac] sm:$0xf]
        %v1656 = vld [vmem:[#allocation13 + $0xb0] sm:$0xf]
        %v1657 = vld [vmem:[#allocation13 + $0xb4] sm:$0xf]
        %v1658 = vld [vmem:[#allocation13 + $0xb8] sm:$0xf]
        %v1659 = vld [vmem:[#allocation13 + $0xbc] sm:$0xf]
        %v1660 = vld [vmem:[#allocation13 + $0xc0] sm:$0xf]
        %v1661 = vld [vmem:[#allocation13 + $0xc4] sm:$0xf]
        %v1662 = vld [vmem:[#allocation13 + $0xc8] sm:$0xf]
        %v1663 = vld [vmem:[#allocation13 + $0xcc] sm:$0xf]
        %v1664 = vld [vmem:[#allocation13 + $0xd0] sm:$0xf]
        %v1665 = vld [vmem:[#allocation13 + $0xd4] sm:$0xf]
        %v1666 = vld [vmem:[#allocation13 + $0xd8] sm:$0xf]
        %v1667 = vld [vmem:[#allocation13 + $0xdc] sm:$0xf]
        %v1668 = vld [vmem:[#allocation13 + $0xe0] sm:$0xf]
        %v1669 = vld [vmem:[#allocation13 + $0xe4] sm:$0xf]
        %v1670 = vld [vmem:[#allocation13 + $0xe8] sm:$0xf]
        %v1671 = vld [vmem:[#allocation13 + $0xec] sm:$0xf]
        %v1672 = vld [vmem:[#allocation13 + $0xf0] sm:$0xf]
        %v1673 = vld [vmem:[#allocation13 + $0xf4] sm:$0xf]
        %v1674 = vld [vmem:[#allocation13 + $0xf8] sm:$0xf]
        %v1675 = vld [vmem:[#allocation13 + $0xfc] sm:$0xf]
        %v1708 = vunpack.c.l.b16 %v1644
        %v1709 = vunpack.c.l.b16 %v1645
        %v1710 = vunpack.c.l.b16 %v1646
        %v1711 = vunpack.c.l.b16 %v1647
        %v1712 = vunpack.c.l.b16 %v1648
        %v1713 = vunpack.c.l.b16 %v1649
        %v1714 = vunpack.c.l.b16 %v1650
        %v1715 = vunpack.c.l.b16 %v1651
        %v1716 = vunpack.c.l.b16 %v1652
        %v1717 = vunpack.c.l.b16 %v1653
        %v1718 = vunpack.c.l.b16 %v1654
        %v1719 = vunpack.c.l.b16 %v1655
        %v1720 = vunpack.c.l.b16 %v1656
        %v1721 = vunpack.c.l.b16 %v1657
        %v1722 = vunpack.c.l.b16 %v1658
        %v1723 = vunpack.c.l.b16 %v1659
        %v1724 = vunpack.c.l.b16 %v1660
        %v1725 = vunpack.c.l.b16 %v1661
        %v1726 = vunpack.c.l.b16 %v1662
        %v1727 = vunpack.c.l.b16 %v1663
        %v1728 = vunpack.c.l.b16 %v1664
        %v1729 = vunpack.c.l.b16 %v1665
        %v1730 = vunpack.c.l.b16 %v1666
        %v1731 = vunpack.c.l.b16 %v1667
        %v1732 = vunpack.c.l.b16 %v1668
        %v1733 = vunpack.c.l.b16 %v1669
        %v1734 = vunpack.c.l.b16 %v1670
        %v1735 = vunpack.c.l.b16 %v1671
        %v1736 = vunpack.c.l.b16 %v1672
        %v1737 = vunpack.c.l.b16 %v1673
        %v1738 = vunpack.c.l.b16 %v1674
        %v1739 = vunpack.c.l.b16 %v1675
        %v1740 = vpack.c.b16 %v1709, %v1708
        %v1741 = vpack.c.b16 %v1711, %v1710
        %v1742 = vpack.c.b16 %v1713, %v1712
        %v1743 = vpack.c.b16 %v1715, %v1714
        %v1744 = vpack.c.b16 %v1717, %v1716
        %v1745 = vpack.c.b16 %v1719, %v1718
        %v1746 = vpack.c.b16 %v1721, %v1720
        %v1747 = vpack.c.b16 %v1723, %v1722
        %v1748 = vpack.c.b16 %v1725, %v1724
        %v1749 = vpack.c.b16 %v1727, %v1726
        %v1750 = vpack.c.b16 %v1729, %v1728
        %v1751 = vpack.c.b16 %v1731, %v1730
        %v1752 = vpack.c.b16 %v1733, %v1732
        %v1753 = vpack.c.b16 %v1735, %v1734
        %v1754 = vpack.c.b16 %v1737, %v1736
        %v1755 = vpack.c.b16 %v1739, %v1738
        %1772 = vmatprep.subr.bf16.mxu0 0
        %1773 = vmatpush1.bf16.msra.mxu0 %v1740
        %1774 = vmatprep.subr.bf16.mxu0 0
        %1775 = vmatpush1.bf16.msra.mxu0 %v1741
        %1776 = vmatprep.subr.bf16.mxu0 0
        %1777 = vmatpush1.bf16.msra.mxu0 %v1742
        %1778 = vmatprep.subr.bf16.mxu0 0
        %1779 = vmatpush1.bf16.msra.mxu0 %v1743
        %1780 = vmatprep.subr.bf16.mxu0 0
        %1781 = vmatpush1.bf16.msra.mxu0 %v1744
        %1782 = vmatprep.subr.bf16.mxu0 0
        %1783 = vmatpush1.bf16.msra.mxu0 %v1745
        %1784 = vmatprep.subr.bf16.mxu0 0
        %1785 = vmatpush1.bf16.msra.mxu0 %v1746
        %1786 = vmatprep.subr.bf16.mxu0 0
        %1787 = vmatpush1.bf16.msra.mxu0 %v1747
        %1788 = vmatprep.subr.bf16.mxu0 0
        %1789 = vmatpush1.bf16.msra.mxu0 %v1748
        %1790 = vmatprep.subr.bf16.mxu0 0
        %1791 = vmatpush1.bf16.msra.mxu0 %v1749
        %1792 = vmatprep.subr.bf16.mxu0 0
        %1793 = vmatpush1.bf16.msra.mxu0 %v1750
        %1794 = vmatprep.subr.bf16.mxu0 0
        %1795 = vmatpush1.bf16.msra.mxu0 %v1751
        %1796 = vmatprep.subr.bf16.mxu0 0
        %1797 = vmatpush1.bf16.msra.mxu0 %v1752
        %1798 = vmatprep.subr.bf16.mxu0 0
        %1799 = vmatpush1.bf16.msra.mxu0 %v1753
        %1800 = vmatprep.subr.bf16.mxu0 0
        %1801 = vmatpush1.bf16.msra.mxu0 %v1754
        %1802 = vmatprep.subr.bf16.mxu0 0
        %1803 = vmatpush1.bf16.msra.mxu0 %v1755
        %1804 = vmatprep.mubr.bf16.mxu0 %v1643
        %1805 = vmatmul.mubr.bf16.gmra.mrb[0].mxu0 %v1642
        %v1806 = vpop.f32.mrb[0].mxu0
        %v1807 = vadd.f32 0.0, %v1806
        %v1808 = vpop.f32.mrb[0].mxu0
        %v1809 = vpop.f32.mrb[0].mxu0
        %v1810 = vpop.f32.mrb[0].mxu0
        %1811 = vdwg.mxu0
        %v1844 = vunpack.c.l.b16 %v1451
        %v1845 = vunpack.c.l.b16 %v1452
        %v1846 = vunpack.c.l.b16 %v1453
        %v1847 = vunpack.c.l.b16 %v1454
        %v1848 = vunpack.c.l.b16 %v1455
        %v1849 = vunpack.c.l.b16 %v1456
        %v1850 = vunpack.c.l.b16 %v1457
        %v1851 = vunpack.c.l.b16 %v1458
        %v1852 = vunpack.c.l.b16 %v1459
        %v1853 = vunpack.c.l.b16 %v1460
        %v1854 = vunpack.c.l.b16 %v1461
        %v1855 = vunpack.c.l.b16 %v1462
        %v1856 = vunpack.c.l.b16 %v1463
        %v1857 = vunpack.c.l.b16 %v1464
        %v1858 = vunpack.c.l.b16 %v1465
        %v1859 = vunpack.c.l.b16 %v1466
        %v1860 = vunpack.c.l.b16 %v1467
        %v1861 = vunpack.c.l.b16 %v1468
        %v1862 = vunpack.c.l.b16 %v1469
        %v1863 = vunpack.c.l.b16 %v1470
        %v1864 = vunpack.c.l.b16 %v1471
        %v1865 = vunpack.c.l.b16 %v1472
        %v1866 = vunpack.c.l.b16 %v1473
        %v1867 = vunpack.c.l.b16 %v1474
        %v1868 = vunpack.c.l.b16 %v1475
        %v1869 = vunpack.c.l.b16 %v1476
        %v1870 = vunpack.c.l.b16 %v1477
        %v1871 = vunpack.c.l.b16 %v1478
        %v1872 = vunpack.c.l.b16 %v1479
        %v1873 = vunpack.c.l.b16 %v1480
        %v1874 = vunpack.c.l.b16 %v1481
        %v1875 = vunpack.c.l.b16 %v1482
        %v1876 = vpack.c.b16 %v1845, %v1844
        %v1877 = vpack.c.b16 %v1847, %v1846
        %v1878 = vpack.c.b16 %v1849, %v1848
        %v1879 = vpack.c.b16 %v1851, %v1850
        %v1880 = vpack.c.b16 %v1853, %v1852
        %v1881 = vpack.c.b16 %v1855, %v1854
        %v1882 = vpack.c.b16 %v1857, %v1856
        %v1883 = vpack.c.b16 %v1859, %v1858
        %v1884 = vpack.c.b16 %v1861, %v1860
        %v1885 = vpack.c.b16 %v1863, %v1862
        %v1886 = vpack.c.b16 %v1865, %v1864
        %v1887 = vpack.c.b16 %v1867, %v1866
        %v1888 = vpack.c.b16 %v1869, %v1868
        %v1889 = vpack.c.b16 %v1871, %v1870
        %v1890 = vpack.c.b16 %v1873, %v1872
        %v1891 = vpack.c.b16 %v1875, %v1874
        %1908 = vmatprep.subr.bf16.mxu0 0
        %1909 = vmatpush1.bf16.msra.mxu0 %v1876
        %1910 = vmatprep.subr.bf16.mxu0 0
        %1911 = vmatpush1.bf16.msra.mxu0 %v1877
        %1912 = vmatprep.subr.bf16.mxu0 0
        %1913 = vmatpush1.bf16.msra.mxu0 %v1878
        %1914 = vmatprep.subr.bf16.mxu0 0
        %1915 = vmatpush1.bf16.msra.mxu0 %v1879
        %1916 = vmatprep.subr.bf16.mxu0 0
        %1917 = vmatpush1.bf16.msra.mxu0 %v1880
        %1918 = vmatprep.subr.bf16.mxu0 0
        %1919 = vmatpush1.bf16.msra.mxu0 %v1881
        %1920 = vmatprep.subr.bf16.mxu0 0
        %1921 = vmatpush1.bf16.msra.mxu0 %v1882
        %1922 = vmatprep.subr.bf16.mxu0 0
        %1923 = vmatpush1.bf16.msra.mxu0 %v1883
        %1924 = vmatprep.subr.bf16.mxu0 0
        %1925 = vmatpush1.bf16.msra.mxu0 %v1884
        %1926 = vmatprep.subr.bf16.mxu0 0
        %1927 = vmatpush1.bf16.msra.mxu0 %v1885
        %1928 = vmatprep.subr.bf16.mxu0 0
        %1929 = vmatpush1.bf16.msra.mxu0 %v1886
        %1930 = vmatprep.subr.bf16.mxu0 0
        %1931 = vmatpush1.bf16.msra.mxu0 %v1887
        %1932 = vmatprep.subr.bf16.mxu0 0
        %1933 = vmatpush1.bf16.msra.mxu0 %v1888
        %1934 = vmatprep.subr.bf16.mxu0 0
        %1935 = vmatpush1.bf16.msra.mxu0 %v1889
        %1936 = vmatprep.subr.bf16.mxu0 0
        %1937 = vmatpush1.bf16.msra.mxu0 %v1890
        %1938 = vmatprep.subr.bf16.mxu0 0
        %1939 = vmatpush1.bf16.msra.mxu0 %v1891
        %1940 = vmatprep.mubr.bf16.mxu0 %v1450
        %1941 = vmatmul.mubr.bf16.gmra.mrb[0].mxu0 %v1449
        %v1942 = vpop.f32.mrb[0].mxu0
        %v1943 = vadd.f32 %v1807, %v1942
        %v1944 = vpop.f32.mrb[0].mxu0
        %v1945 = vpop.f32.mrb[0].mxu0
        %v1946 = vpop.f32.mrb[0].mxu0
        %1947 = vdwg.mxu0
        %v1948 = vld [vmem:[%s15] sm:$0x1]
        %v1950 = vlaneseq
        %v1951 = vshrl.u32 %v1950, 7
        %v1952 = vsub.s32 0, %v1951
        %v1953 = vrot.slane %v1948, %v1952
        %v1955 = vadd.f32 %v1943, %v1953
        %v1956 = vadd.f32 %v1288, %v1955
        %v1957 = vld [vmem:[%s16] sm:$0x1]
        %v1958 = vld [vmem:[%s17] sm:$0x1]
        %1959 = vadd.xlane.f32.xlu0 %v1956
        %v1960 = vpop.xlane.xlu0 %1959
        %v1961 = vmul.f32 %v1960, %v1265
        %v1962 = vsub.f32 %v1956, %v1961
        %v1963 = vmul.f32 %v1962, %v1962
        %1964 = vadd.xlane.f32.xlu0 %v1963
        %v1965 = vpop.xlane.xlu0 %1964
        %v1966 = vmul.f32 %v1965, %v1265
        %v1967 = vadd.f32 %v1966, 1e-12
        %v1968 = vrsqrt.pop %v1967
        %v1969 = vmul.f32 %v1962, %v1968
        %v1971 = vlaneseq
        %v1972 = vshrl.u32 %v1971, 7
        %v1973 = vsub.s32 0, %v1972
        %v1974 = vrot.slane %v1957, %v1973
        %v1976 = vmul.f32 %v1969, %v1974
        %v1978 = vlaneseq
        %v1979 = vshrl.u32 %v1978, 7
        %v1980 = vsub.s32 0, %v1979
        %v1981 = vrot.slane %v1958, %v1980
        %v1983 = vadd.f32 %v1976, %v1981
        %1984 = vst [vmem:[%s688] sm:$0xff] %v1983
        %s1985 = sand.u32 %s434, 1
        %s1986 = scalar_lea.sflag [#allocation4], %s1985
        %s1987 = sand.u32 %s434, 1
        %s1988 = smul.addr %s1987, 8
        %s1989 = scalar_lea.vmem [#allocation14], %s1988
        // Predicated region
        $region121: #{tpu_custom_call.1} parent=91 // pred_check
          %p1990 = pneg %p444
        $region122: #{tpu_custom_call.1} parent=91 // pred_check_branch
          %1992 = sbr.rel (%p1990) target = $region124
        $region123: #{tpu_custom_call.1} parent=91 // pred_region
          %s1994 = ssub.s32 128, 128
          %1995 = vsyncadd %s1986, %s1994
          %s1996 = smul.addr %s38, 128
          %s1997 = scalar_lea.hbm %s18, %s1996
          %s1999 = sshll.u32 %s1989, 4
          %s2000 = int_to_ptr.vmem [resolvable:$true] %s1999
          %2002 = dma.vmem_to_hbm [thread:$0]  %s2000, 128, %s1997, %s1986
        $region124: #{tpu_custom_call.1} parent=91 // pred_fallthru
          _
      $region92: #{tpu_custom_call.1} parent=5 // pred_fallthru
        _
      %p2003 = scmp.le.s32.totalorder 2, %s33
      // Predicated region
      $region125: #{tpu_custom_call.1} parent=5 // pred_check
        %p2004 = pneg %p2003
      $region126: #{tpu_custom_call.1} parent=5 // pred_check_branch
        %2006 = sbr.rel (%p2004) target = $region128
      $region127: #{tpu_custom_call.1} parent=5 // pred_region
        %s2007 = ssub.s32 %s33, 2
        // Predicated region
        $region129: #{tpu_custom_call.1} parent=127 // pred_check
          %p2008 = pneg %p450
        $region130: #{tpu_custom_call.1} parent=127 // pred_check_branch
          %2010 = sbr.rel (%p2008) target = $region132
        $region131: #{tpu_custom_call.1} parent=127 // pred_region
          %s2011 = sand.u32 %s435, 1
          %s2012 = scalar_lea.sflag [#allocation4], %s2011
          %s2013 = sand.u32 %s435, 1
          %s2014 = smul.addr %s2013, 8
          %s2015 = scalar_lea.vmem [#allocation14], %s2014
          %2016 = dma.done %s2012, 128
        $region132: #{tpu_custom_call.1} parent=127 // pred_fallthru
          _
      $region128: #{tpu_custom_call.1} parent=5 // pred_fallthru
        _
    $region6: #{tpu_custom_call.1} parent=1 // loop_footer
      %s37 = sadd.s32 1, %s33
    $region7: #{tpu_custom_call.1} parent=1 // loop_footer_branch
      %32 = sbr.rel target = $region3
    $region8: #{tpu_custom_call.1} parent=1 // loop_exit
      _
    %2017 = vsyncpa [#allocation3], 1
    %s2018 = scalar_lea.sflag [#allocation3], 1
    %2019 = vsyncpa %s2018, 1
    %2020 = vsyncpa [#allocation6], 1
    %2021 = vsyncpa [#allocation9], 1
    %2022 = vsyncpa [#allocation12], 1
    %2023 = vsyncpa [#allocation4], 1
    %s2024 = scalar_lea.sflag [#allocation4], 1
    %2025 = vsyncpa %s2024, 1

// kernel: tpu_custom_call.1
$region0: #{tpu_custom_call.1}
  #allocation0 [shape = 'u32[]', space=smem, size = 0x4, offset = 0x4, fixed_abs, tag = 'smem constant byte address 0x4 - core index']
  #allocation1 [shape = 'u32[144,128]{1,0:T(1,128)}', space=vmem, size = 0x12000, scoped, tag = 'internal scratch']
  %s0 = inlined_call_operand.hbm [shape: f32[2,8,128], index: 0, kind: input, shape index: {}]
  %s1 = inlined_call_operand.vmem [shape: f32[2,1,8], index: 1, kind: input, shape index: {}]
  %s2 = inlined_call_operand.hbm [shape: bf16[128,128], index: 2, kind: input, shape index: {}]
  %s3 = inlined_call_operand.vmem [shape: f32[1,128], index: 3, kind: input, shape index: {}]
  %s4 = inlined_call_operand.hbm [shape: bf16[128,128], index: 4, kind: input, shape index: {}]
  %s5 = inlined_call_operand.vmem [shape: f32[1,128], index: 5, kind: input, shape index: {}]
  %s6 = inlined_call_operand.hbm [shape: bf16[128,128], index: 6, kind: input, shape index: {}]
  %s7 = inlined_call_operand.vmem [shape: f32[1,128], index: 7, kind: input, shape index: {}]
  %s8 = inlined_call_operand.hbm [shape: bf16[128,128], index: 8, kind: input, shape index: {}]
  %s9 = inlined_call_operand.vmem [shape: f32[1,128], index: 9, kind: input, shape index: {}]
  %s10 = inlined_call_operand.vmem [shape: f32[1,128], index: 10, kind: input, shape index: {}]
  %s11 = inlined_call_operand.vmem [shape: f32[1,128], index: 11, kind: input, shape index: {}]
  %s12 = inlined_call_operand.hbm [shape: bf16[128,512], index: 12, kind: input, shape index: {}]
  %s13 = inlined_call_operand.vmem [shape: f32[1,512], index: 13, kind: input, shape index: {}]
  %s14 = inlined_call_operand.hbm [shape: bf16[512,128], index: 14, kind: input, shape index: {}]
  %s15 = inlined_call_operand.vmem [shape: f32[1,128], index: 15, kind: input, shape index: {}]
  %s16 = inlined_call_operand.vmem [shape: f32[1,128], index: 16, kind: input, shape index: {}]
  %s17 = inlined_call_operand.vmem [shape: f32[1,128], index: 17, kind: input, shape index: {}]
  %s18 = inlined_call_operand.hbm [shape: f32[2,8,128], index: 18, kind: output, shape index: {}]
  %s19 = sld [smem:[#allocation0]]
  $region133: #{tpu_custom_call.1} parent=0
    _
  %s21 = ssub.s32 1, %s19
  %s22 = scalar_select 0, %s21, %s19
  $region1: #{tpu_custom_call.1} parent=0
    #allocation2 [shape = 'u8[8192]{0}', space=vmem, size = 0x2000, scoped, tag = 'input window, operand 0']
    #allocation3 [shape = 's32[2]{0}', space=sflag, size = 0x8, scoped, tag = 'scoped memory for tpu_custom_call.1']
    #allocation4 [shape = 's32[2]{0}', space=sflag, size = 0x8, scoped, tag = 'scoped memory for tpu_custom_call.1']
    #allocation5 [shape = 'u8[32768]{0}', space=vmem, size = 0x8000, scoped, tag = 'input window, operand 2, single buffered']
    #allocation6 [shape = 's32[1]{0}', space=sflag, size = 0x4, scoped, tag = 'scoped memory for tpu_custom_call.1']
    #allocation7 [shape = 'u8[32768]{0}', space=vmem, size = 0x8000, scoped, tag = 'input window, operand 4, single buffered']
    #allocation8 [shape = 'u8[32768]{0}', space=vmem, size = 0x8000, scoped, tag = 'input window, operand 6, single buffered']
    #allocation9 [shape = 's32[1]{0}', space=sflag, size = 0x4, scoped, tag = 'scoped memory for tpu_custom_call.1']
    #allocation10 [shape = 'u8[32768]{0}', space=vmem, size = 0x8000, scoped, tag = 'input window, operand 8, single buffered']
    #allocation11 [shape = 'u8[131072]{0}', space=vmem, size = 0x20000, scoped, tag = 'input window, operand 12, single buffered']
    #allocation12 [shape = 's32[1]{0}', space=sflag, size = 0x4, scoped, tag = 'scoped memory for tpu_custom_call.1']
    #allocation13 [shape = 'u8[131072]{0}', space=vmem, size = 0x20000, scoped, tag = 'input window, operand 14, single buffered']
    #allocation14 [shape = 'u8[8192]{0}', space=vmem, size = 0x2000, scoped, tag = 'output window, operand 0']
    %23 = vsyncpa [#allocation3], 0
    %s24 = scalar_lea.sflag [#allocation3], 1
    %25 = vsyncpa %s24, 0
    %26 = vsyncpa [#allocation6], 0
    %27 = vsyncpa [#allocation9], 0
    %28 = vsyncpa [#allocation12], 0
    %29 = vsyncpa [#allocation4], 0
    %s30 = scalar_lea.sflag [#allocation4], 1
    %31 = vsyncpa %s30, 0
    loop: start=0, step=1, limit=4
    $region2: #{tpu_custom_call.1} parent=1 // loop_pre_header
      _
    $region3: #{tpu_custom_call.1} parent=1 // loop_header
      %s33 = sphi 0, %s37
      %p34 = scmp.ge.s32.totalorder %s33, 4
      %s43 = sphi 0, %s45
      %s46 = sphi 0, %s43
      %s47 = sphi 0, %s46
      %s63 = sphi 0, %s47
      %s69 = sphi 0, %s71
      %s72 = sphi 0, %s69
      %s73 = sphi 0, %s72
      %s89 = sphi 0, %s73
      %s93 = sphi 0, %s93
      %s95 = sphi 0, %s93
      %s96 = sphi 0, %s95
      %s110 = sphi 0, %s96
      %s114 = sphi 0, %s114
      %s116 = sphi 0, %s114
      %s117 = sphi 0, %s116
      %s131 = sphi 0, %s117
      %s135 = sphi 0, %s135
      %s137 = sphi 0, %s135
      %s138 = sphi 0, %s137
      %s152 = sphi 0, %s138
      %s156 = sphi 0, %s156
      %s158 = sphi 0, %s156
      %s159 = sphi 0, %s158
      %s173 = sphi 0, %s159
      %s177 = sphi 0, %s177
      %s179 = sphi 0, %s177
      %s180 = sphi 0, %s179
      %s194 = sphi 0, %s180
      %s198 = sphi 0, %s198
      %s200 = sphi 0, %s198
      %s201 = sphi 0, %s200
      %s215 = sphi 0, %s201
      %s219 = sphi 0, %s219
      %s221 = sphi 0, %s219
      %s222 = sphi 0, %s221
      %s236 = sphi 0, %s222
      %s240 = sphi 0, %s240
      %s242 = sphi 0, %s240
      %s243 = sphi 0, %s242
      %s257 = sphi 0, %s243
      %s261 = sphi 0, %s261
      %s263 = sphi 0, %s261
      %s264 = sphi 0, %s263
      %s278 = sphi 0, %s264
      %s282 = sphi 0, %s282
      %s284 = sphi 0, %s282
      %s285 = sphi 0, %s284
      %s299 = sphi 0, %s285
      %s303 = sphi 0, %s303
      %s305 = sphi 0, %s303
      %s306 = sphi 0, %s305
      %s320 = sphi 0, %s306
      %s324 = sphi 0, %s324
      %s326 = sphi 0, %s324
      %s327 = sphi 0, %s326
      %s341 = sphi 0, %s327
      %s345 = sphi 0, %s345
      %s347 = sphi 0, %s345
      %s348 = sphi 0, %s347
      %s362 = sphi 0, %s348
      %s366 = sphi 0, %s366
      %s368 = sphi 0, %s366
      %s369 = sphi 0, %s368
      %s383 = sphi 0, %s369
      %s387 = sphi 0, %s387
      %s389 = sphi 0, %s387
      %s390 = sphi 0, %s389
      %s404 = sphi 0, %s390
      %s408 = sphi 0, %s408
      %s410 = sphi 0, %s408
      %s411 = sphi 0, %s410
      %s425 = sphi 0, %s411
      %s431 = sphi 0, %s433
      %s434 = sphi 0, %s431
      %s435 = sphi 0, %s434
      %s451 = sphi 0, %s435
    $region4: #{tpu_custom_call.1} parent=1 // loop_header_branch
      %36 = sbr.rel (%p34) target = $region8
    $region5: #{tpu_custom_call.1} parent=1 // loop_body
      %s38 = ssub.s32 %s33, 1
      %s39 = ssub.s32 %s33, 2
      %s40 = sadd.s32 %s33, 1
      %s41 = ssub.s32 %s33, %s40
      %p42 = scmp.eq.s32.totalorder %s41, 0
      %s44 = sadd.s32 %s43, 1
      %s45 = scalar_select %p42, %s43, %s44
      %p48 = pneg %p42
      %p49 = scmp.eq.s32.totalorder %s33, 1
      %p50 = por %p48, %p49
      %p51 = scmp.ne.s32.totalorder %s43, %s46
      %p52 = scmp.eq.s32.totalorder %s33, 0
      %p53 = por %p51, %p52
      %p54 = scmp.ne.s32.totalorder %s43, %s46
      %p55 = scmp.eq.s32.totalorder %s38, 1
      %p56 = por %p54, %p55
      %p57 = scmp.ne.s32.totalorder %s46, %s47
      %p58 = scmp.eq.s32.totalorder %s38, 0
      %p59 = por %p57, %p58
      %p60 = scmp.ne.s32.totalorder %s46, %s47
      %p61 = scmp.eq.s32.totalorder %s39, 1
      %p62 = por %p60, %p61
      %p64 = scmp.ne.s32.totalorder %s47, %s63
      %p65 = scmp.eq.s32.totalorder %s39, 0
      %p66 = por %p64, %p65
      %s67 = ssub.s32 %s33, %s40
      %p68 = scmp.eq.s32.totalorder %s67, 0
      %s70 = sadd.s32 %s69, 1
      %s71 = scalar_select %p68, %s69, %s70
      %p74 = pneg %p68
      %p75 = scmp.eq.s32.totalorder %s33, 1
      %p76 = por %p74, %p75
      %p77 = scmp.ne.s32.totalorder %s69, %s72
      %p78 = scmp.eq.s32.totalorder %s33, 0
      %p79 = por %p77, %p78
      %p80 = scmp.ne.s32.totalorder %s69, %s72
      %p81 = scmp.eq.s32.totalorder %s38, 1
      %p82 = por %p80, %p81
      %p83 = scmp.ne.s32.totalorder %s72, %s73
      %p84 = scmp.eq.s32.totalorder %s38, 0
      %p85 = por %p83, %p84
      %p86 = scmp.ne.s32.totalorder %s72, %s73
      %p87 = scmp.eq.s32.totalorder %s39, 1
      %p88 = por %p86, %p87
      %p90 = scmp.ne.s32.totalorder %s73, %s89
      %p91 = scmp.eq.s32.totalorder %s39, 0
      %p92 = por %p90, %p91
      %s94 = sadd.s32 %s93, 1
      %p97 = scmp.eq.s32.totalorder %s33, 1
      %p98 = scmp.ne.s32.totalorder %s93, %s95
      %p99 = scmp.eq.s32.totalorder %s33, 0
      %p100 = por %p98, %p99
      %p101 = scmp.ne.s32.totalorder %s93, %s95
      %p102 = scmp.eq.s32.totalorder %s38, 1
      %p103 = por %p101, %p102
      %p104 = scmp.ne.s32.totalorder %s95, %s96
      %p105 = scmp.eq.s32.totalorder %s38, 0
      %p106 = por %p104, %p105
      %p107 = scmp.ne.s32.totalorder %s95, %s96
      %p108 = scmp.eq.s32.totalorder %s39, 1
      %p109 = por %p107, %p108
      %p111 = scmp.ne.s32.totalorder %s96, %s110
      %p112 = scmp.eq.s32.totalorder %s39, 0
      %p113 = por %p111, %p112
      %s115 = sadd.s32 %s114, 1
      %p118 = scmp.eq.s32.totalorder %s33, 1
      %p119 = scmp.ne.s32.totalorder %s114, %s116
      %p120 = scmp.eq.s32.totalorder %s33, 0
      %p121 = por %p119, %p120
      %p122 = scmp.ne.s32.totalorder %s114, %s116
      %p123 = scmp.eq.s32.totalorder %s38, 1
      %p124 = por %p122, %p123
      %p125 = scmp.ne.s32.totalorder %s116, %s117
      %p126 = scmp.eq.s32.totalorder %s38, 0
      %p127 = por %p125, %p126
      %p128 = scmp.ne.s32.totalorder %s116, %s117
      %p129 = scmp.eq.s32.totalorder %s39, 1
      %p130 = por %p128, %p129
      %p132 = scmp.ne.s32.totalorder %s117, %s131
      %p133 = scmp.eq.s32.totalorder %s39, 0
      %p134 = por %p132, %p133
      %s136 = sadd.s32 %s135, 1
      %p139 = scmp.eq.s32.totalorder %s33, 1
      %p140 = scmp.ne.s32.totalorder %s135, %s137
      %p141 = scmp.eq.s32.totalorder %s33, 0
      %p142 = por %p140, %p141
      %p143 = scmp.ne.s32.totalorder %s135, %s137
      %p144 = scmp.eq.s32.totalorder %s38, 1
      %p145 = por %p143, %p144
      %p146 = scmp.ne.s32.totalorder %s137, %s138
      %p147 = scmp.eq.s32.totalorder %s38, 0
      %p148 = por %p146, %p147
      %p149 = scmp.ne.s32.totalorder %s137, %s138
      %p150 = scmp.eq.s32.totalorder %s39, 1
      %p151 = por %p149, %p150
      %p153 = scmp.ne.s32.totalorder %s138, %s152
      %p154 = scmp.eq.s32.totalorder %s39, 0
      %p155 = por %p153, %p154
      %s157 = sadd.s32 %s156, 1
      %p160 = scmp.eq.s32.totalorder %s33, 1
      %p161 = scmp.ne.s32.totalorder %s156, %s158
      %p162 = scmp.eq.s32.totalorder %s33, 0
      %p163 = por %p161, %p162
      %p164 = scmp.ne.s32.totalorder %s156, %s158
      %p165 = scmp.eq.s32.totalorder %s38, 1
      %p166 = por %p164, %p165
      %p167 = scmp.ne.s32.totalorder %s158, %s159
      %p168 = scmp.eq.s32.totalorder %s38, 0
      %p169 = por %p167, %p168
      %p170 = scmp.ne.s32.totalorder %s158, %s159
      %p171 = scmp.eq.s32.totalorder %s39, 1
      %p172 = por %p170, %p171
      %p174 = scmp.ne.s32.totalorder %s159, %s173
      %p175 = scmp.eq.s32.totalorder %s39, 0
      %p176 = por %p174, %p175
      %s178 = sadd.s32 %s177, 1
      %p181 = scmp.eq.s32.totalorder %s33, 1
      %p182 = scmp.ne.s32.totalorder %s177, %s179
      %p183 = scmp.eq.s32.totalorder %s33, 0
      %p184 = por %p182, %p183
      %p185 = scmp.ne.s32.totalorder %s177, %s179
      %p186 = scmp.eq.s32.totalorder %s38, 1
      %p187 = por %p185, %p186
      %p188 = scmp.ne.s32.totalorder %s179, %s180
      %p189 = scmp.eq.s32.totalorder %s38, 0
      %p190 = por %p188, %p189
      %p191 = scmp.ne.s32.totalorder %s179, %s180
      %p192 = scmp.eq.s32.totalorder %s39, 1
      %p193 = por %p191, %p192
      %p195 = scmp.ne.s32.totalorder %s180, %s194
      %p196 = scmp.eq.s32.totalorder %s39, 0
      %p197 = por %p195, %p196
      %s199 = sadd.s32 %s198, 1
      %p202 = scmp.eq.s32.totalorder %s33, 1
      %p203 = scmp.ne.s32.totalorder %s198, %s200
      %p204 = scmp.eq.s32.totalorder %s33, 0
      %p205 = por %p203, %p204
      %p206 = scmp.ne.s32.totalorder %s198, %s200
      %p207 = scmp.eq.s32.totalorder %s38, 1
      %p208 = por %p206, %p207
      %p209 = scmp.ne.s32.totalorder %s200, %s201
      %p210 = scmp.eq.s32.totalorder %s38, 0
      %p211 = por %p209, %p210
      %p212 = scmp.ne.s32.totalorder %s200, %s201
      %p213 = scmp.eq.s32.totalorder %s39, 1
      %p214 = por %p212, %p213
      %p216 = scmp.ne.s32.totalorder %s201, %s215
      %p217 = scmp.eq.s32.totalorder %s39, 0
      %p218 = por %p216, %p217
      %s220 = sadd.s32 %s219, 1
      %p223 = scmp.eq.s32.totalorder %s33, 1
      %p224 = scmp.ne.s32.totalorder %s219, %s221
      %p225 = scmp.eq.s32.totalorder %s33, 0
      %p226 = por %p224, %p225
      %p227 = scmp.ne.s32.totalorder %s219, %s221
      %p228 = scmp.eq.s32.totalorder %s38, 1
      %p229 = por %p227, %p228
      %p230 = scmp.ne.s32.totalorder %s221, %s222
      %p231 = scmp.eq.s32.totalorder %s38, 0
      %p232 = por %p230, %p231
      %p233 = scmp.ne.s32.totalorder %s221, %s222
      %p234 = scmp.eq.s32.totalorder %s39, 1
      %p235 = por %p233, %p234
      %p237 = scmp.ne.s32.totalorder %s222, %s236
      %p238 = scmp.eq.s32.totalorder %s39, 0
      %p239 = por %p237, %p238
      %s241 = sadd.s32 %s240, 1
      %p244 = scmp.eq.s32.totalorder %s33, 1
      %p245 = scmp.ne.s32.totalorder %s240, %s242
      %p246 = scmp.eq.s32.totalorder %s33, 0
      %p247 = por %p245, %p246
      %p248 = scmp.ne.s32.totalorder %s240, %s242
      %p249 = scmp.eq.s32.totalorder %s38, 1
      %p250 = por %p248, %p249
      %p251 = scmp.ne.s32.totalorder %s242, %s243
      %p252 = scmp.eq.s32.totalorder %s38, 0
      %p253 = por %p251, %p252
      %p254 = scmp.ne.s32.totalorder %s242, %s243
      %p255 = scmp.eq.s32.totalorder %s39, 1
      %p256 = por %p254, %p255
      %p258 = scmp.ne.s32.totalorder %s243, %s257
      %p259 = scmp.eq.s32.totalorder %s39, 0
      %p260 = por %p258, %p259
      %s262 = sadd.s32 %s261, 1
      %p265 = scmp.eq.s32.totalorder %s33, 1
      %p266 = scmp.ne.s32.totalorder %s261, %s263
      %p267 = scmp.eq.s32.totalorder %s33, 0
      %p268 = por %p266, %p267
      %p269 = scmp.ne.s32.totalorder %s261, %s263
      %p270 = scmp.eq.s32.totalorder %s38, 1
      %p271 = por %p269, %p270
      %p272 = scmp.ne.s32.totalorder %s263, %s264
      %p273 = scmp.eq.s32.totalorder %s38, 0
      %p274 = por %p272, %p273
      %p275 = scmp.ne.s32.totalorder %s263, %s264
      %p276 = scmp.eq.s32.totalorder %s39, 1
      %p277 = por %p275, %p276
      %p279 = scmp.ne.s32.totalorder %s264, %s278
      %p280 = scmp.eq.s32.totalorder %s39, 0
      %p281 = por %p279, %p280
      %s283 = sadd.s32 %s282, 1
      %p286 = scmp.eq.s32.totalorder %s33, 1
      %p287 = scmp.ne.s32.totalorder %s282, %s284
      %p288 = scmp.eq.s32.totalorder %s33, 0
      %p289 = por %p287, %p288
      %p290 = scmp.ne.s32.totalorder %s282, %s284
      %p291 = scmp.eq.s32.totalorder %s38, 1
      %p292 = por %p290, %p291
      %p293 = scmp.ne.s32.totalorder %s284, %s285
      %p294 = scmp.eq.s32.totalorder %s38, 0
      %p295 = por %p293, %p294
      %p296 = scmp.ne.s32.totalorder %s284, %s285
      %p297 = scmp.eq.s32.totalorder %s39, 1
      %p298 = por %p296, %p297
      %p300 = scmp.ne.s32.totalorder %s285, %s299
      %p301 = scmp.eq.s32.totalorder %s39, 0
      %p302 = por %p300, %p301
      %s304 = sadd.s32 %s303, 1
      %p307 = scmp.eq.s32.totalorder %s33, 1
      %p308 = scmp.ne.s32.totalorder %s303, %s305
      %p309 = scmp.eq.s32.totalorder %s33, 0
      %p310 = por %p308, %p309
      %p311 = scmp.ne.s32.totalorder %s303, %s305
      %p312 = scmp.eq.s32.totalorder %s38, 1
      %p313 = por %p311, %p312
      %p314 = scmp.ne.s32.totalorder %s305, %s306
      %p315 = scmp.eq.s32.totalorder %s38, 0
      %p316 = por %p314, %p315
      %p317 = scmp.ne.s32.totalorder %s305, %s306
      %p318 = scmp.eq.s32.totalorder %s39, 1
      %p319 = por %p317, %p318
      %p321 = scmp.ne.s32.totalorder %s306, %s320
      %p322 = scmp.eq.s32.totalorder %s39, 0
      %p323 = por %p321, %p322
      %s325 = sadd.s32 %s324, 1
      %p328 = scmp.eq.s32.totalorder %s33, 1
      %p329 = scmp.ne.s32.totalorder %s324, %s326
      %p330 = scmp.eq.s32.totalorder %s33, 0
      %p331 = por %p329, %p330
      %p332 = scmp.ne.s32.totalorder %s324, %s326
      %p333 = scmp.eq.s32.totalorder %s38, 1
      %p334 = por %p332, %p333
      %p335 = scmp.ne.s32.totalorder %s326, %s327
      %p336 = scmp.eq.s32.totalorder %s38, 0
      %p337 = por %p335, %p336
      %p338 = scmp.ne.s32.totalorder %s326, %s327
      %p339 = scmp.eq.s32.totalorder %s39, 1
      %p340 = por %p338, %p339
      %p342 = scmp.ne.s32.totalorder %s327, %s341
      %p343 = scmp.eq.s32.totalorder %s39, 0
      %p344 = por %p342, %p343
      %s346 = sadd.s32 %s345, 1
      %p349 = scmp.eq.s32.totalorder %s33, 1
      %p350 = scmp.ne.s32.totalorder %s345, %s347
      %p351 = scmp.eq.s32.totalorder %s33, 0
      %p352 = por %p350, %p351
      %p353 = scmp.ne.s32.totalorder %s345, %s347
      %p354 = scmp.eq.s32.totalorder %s38, 1
      %p355 = por %p353, %p354
      %p356 = scmp.ne.s32.totalorder %s347, %s348
      %p357 = scmp.eq.s32.totalorder %s38, 0
      %p358 = por %p356, %p357
      %p359 = scmp.ne.s32.totalorder %s347, %s348
      %p360 = scmp.eq.s32.totalorder %s39, 1
      %p361 = por %p359, %p360
      %p363 = scmp.ne.s32.totalorder %s348, %s362
      %p364 = scmp.eq.s32.totalorder %s39, 0
      %p365 = por %p363, %p364
      %s367 = sadd.s32 %s366, 1
      %p370 = scmp.eq.s32.totalorder %s33, 1
      %p371 = scmp.ne.s32.totalorder %s366, %s368
      %p372 = scmp.eq.s32.totalorder %s33, 0
      %p373 = por %p371, %p372
      %p374 = scmp.ne.s32.totalorder %s366, %s368
      %p375 = scmp.eq.s32.totalorder %s38, 1
      %p376 = por %p374, %p375
      %p377 = scmp.ne.s32.totalorder %s368, %s369
      %p378 = scmp.eq.s32.totalorder %s38, 0
      %p379 = por %p377, %p378
      %p380 = scmp.ne.s32.totalorder %s368, %s369
      %p381 = scmp.eq.s32.totalorder %s39, 1
      %p382 = por %p380, %p381
      %p384 = scmp.ne.s32.totalorder %s369, %s383
      %p385 = scmp.eq.s32.totalorder %s39, 0
      %p386 = por %p384, %p385
      %s388 = sadd.s32 %s387, 1
      %p391 = scmp.eq.s32.totalorder %s33, 1
      %p392 = scmp.ne.s32.totalorder %s387, %s389
      %p393 = scmp.eq.s32.totalorder %s33, 0
      %p394 = por %p392, %p393
      %p395 = scmp.ne.s32.totalorder %s387, %s389
      %p396 = scmp.eq.s32.totalorder %s38, 1
      %p397 = por %p395, %p396
      %p398 = scmp.ne.s32.totalorder %s389, %s390
      %p399 = scmp.eq.s32.totalorder %s38, 0
      %p400 = por %p398, %p399
      %p401 = scmp.ne.s32.totalorder %s389, %s390
      %p402 = scmp.eq.s32.totalorder %s39, 1
      %p403 = por %p401, %p402
      %p405 = scmp.ne.s32.totalorder %s390, %s404
      %p406 = scmp.eq.s32.totalorder %s39, 0
      %p407 = por %p405, %p406
      %s409 = sadd.s32 %s408, 1
      %p412 = scmp.eq.s32.totalorder %s33, 1
      %p413 = scmp.ne.s32.totalorder %s408, %s410
      %p414 = scmp.eq.s32.totalorder %s33, 0
      %p415 = por %p413, %p414
      %p416 = scmp.ne.s32.totalorder %s408, %s410
      %p417 = scmp.eq.s32.totalorder %s38, 1
      %p418 = por %p416, %p417
      %p419 = scmp.ne.s32.totalorder %s410, %s411
      %p420 = scmp.eq.s32.totalorder %s38, 0
      %p421 = por %p419, %p420
      %p422 = scmp.ne.s32.totalorder %s410, %s411
      %p423 = scmp.eq.s32.totalorder %s39, 1
      %p424 = por %p422, %p423
      %p426 = scmp.ne.s32.totalorder %s411, %s425
      %p427 = scmp.eq.s32.totalorder %s39, 0
      %p428 = por %p426, %p427
      %s429 = ssub.s32 %s33, %s40
      %p430 = scmp.eq.s32.totalorder %s429, 0
      %s432 = sadd.s32 %s431, 1
      %s433 = scalar_select %p430, %s431, %s432
      %p436 = pneg %p430
      %p437 = scmp.eq.s32.totalorder %s33, 1
      %p438 = por %p436, %p437
      %p439 = scmp.ne.s32.totalorder %s431, %s434
      %p440 = scmp.eq.s32.totalorder %s33, 0
      %p441 = por %p439, %p440
      %p442 = scmp.ne.s32.totalorder %s431, %s434
      %p443 = scmp.eq.s32.totalorder %s38, 1
      %p444 = por %p442, %p443
      %p445 = scmp.ne.s32.totalorder %s434, %s435
      %p446 = scmp.eq.s32.totalorder %s38, 0
      %p447 = por %p445, %p446
      %p448 = scmp.ne.s32.totalorder %s434, %s435
      %p449 = scmp.eq.s32.totalorder %s39, 1
      %p450 = por %p448, %p449
      %p452 = scmp.ne.s32.totalorder %s435, %s451
      %p453 = scmp.eq.s32.totalorder %s39, 0
      %p454 = por %p452, %p453
      %p455 = scmp.le.s32.totalorder 1, %s33
      %p456 = scmp.lt.s32.totalorder %s33, 3
      %p457 = pnand %p455, %p456
      %p458 = pneg %p457
      // Predicated region
      $region9: #{tpu_custom_call.1} parent=5 // pred_check
        _
      $region10: #{tpu_custom_call.1} parent=5 // pred_check_branch
        %460 = sbr.rel (%p457) target = $region12
      $region11: #{tpu_custom_call.1} parent=5 // pred_region
        %s461 = ssub.s32 %s33, 1
        // Predicated region
        $region13: #{tpu_custom_call.1} parent=11 // pred_check
          %p462 = pneg %p106
        $region14: #{tpu_custom_call.1} parent=11 // pred_check_branch
          %464 = sbr.rel (%p462) target = $region16
        $region15: #{tpu_custom_call.1} parent=11 // pred_region
          %s466 = ssub.s32 1024, 1024
          %467 = vsyncadd [#allocation6], %s466
          %s468 = sshll.u32 [#allocation5], 4
          %s469 = int_to_ptr.vmem [resolvable:$true] %s468
          %474 = dma.hbm_to_vmem [thread:$0]  %s2, 1024, %s469, [#allocation6], 64, 64, 4
        $region16: #{tpu_custom_call.1} parent=11 // pred_fallthru
          _
        // Predicated region
        $region17: #{tpu_custom_call.1} parent=11 // pred_check
          %p475 = pneg %p127
        $region18: #{tpu_custom_call.1} parent=11 // pred_check_branch
          %477 = sbr.rel (%p475) target = $region20
        $region19: #{tpu_custom_call.1} parent=11 // pred_region
          _
        $region20: #{tpu_custom_call.1} parent=11 // pred_fallthru
          _
        // Predicated region
        $region21: #{tpu_custom_call.1} parent=11 // pred_check
          %p478 = pneg %p148
        $region22: #{tpu_custom_call.1} parent=11 // pred_check_branch
          %480 = sbr.rel (%p478) target = $region24
        $region23: #{tpu_custom_call.1} parent=11 // pred_region
          %s482 = ssub.s32 1024, 1024
          %483 = vsyncadd [#allocation6], %s482
          %s484 = sshll.u32 [#allocation7], 4
          %s485 = int_to_ptr.vmem [resolvable:$true] %s484
          %490 = dma.hbm_to_vmem [thread:$0]  %s4, 1024, %s485, [#allocation6], 64, 64, 4
        $region24: #{tpu_custom_call.1} parent=11 // pred_fallthru
          _
        // Predicated region
        $region25: #{tpu_custom_call.1} parent=11 // pred_check
          %p491 = pneg %p169
        $region26: #{tpu_custom_call.1} parent=11 // pred_check_branch
          %493 = sbr.rel (%p491) target = $region28
        $region27: #{tpu_custom_call.1} parent=11 // pred_region
          _
        $region28: #{tpu_custom_call.1} parent=11 // pred_fallthru
          _
        // Predicated region
        $region29: #{tpu_custom_call.1} parent=11 // pred_check
          %p494 = pneg %p190
        $region30: #{tpu_custom_call.1} parent=11 // pred_check_branch
          %496 = sbr.rel (%p494) target = $region32
        $region31: #{tpu_custom_call.1} parent=11 // pred_region
          %s498 = ssub.s32 1024, 1024
          %499 = vsyncadd [#allocation9], %s498
          %s500 = sshll.u32 [#allocation8], 4
          %s501 = int_to_ptr.vmem [resolvable:$true] %s500
          %506 = dma.hbm_to_vmem [thread:$0]  %s6, 1024, %s501, [#allocation9], 64, 64, 4
        $region32: #{tpu_custom_call.1} parent=11 // pred_fallthru
          _
        // Predicated region
        $region33: #{tpu_custom_call.1} parent=11 // pred_check
          %p507 = pneg %p211
        $region34: #{tpu_custom_call.1} parent=11 // pred_check_branch
          %509 = sbr.rel (%p507) target = $region36
        $region35: #{tpu_custom_call.1} parent=11 // pred_region
          _
        $region36: #{tpu_custom_call.1} parent=11 // pred_fallthru
          _
        // Predicated region
        $region37: #{tpu_custom_call.1} parent=11 // pred_check
          %p510 = pneg %p232
        $region38: #{tpu_custom_call.1} parent=11 // pred_check_branch
          %512 = sbr.rel (%p510) target = $region40
        $region39: #{tpu_custom_call.1} parent=11 // pred_region
          %s514 = ssub.s32 1024, 1024
          %515 = vsyncadd [#allocation9], %s514
          %s516 = sshll.u32 [#allocation10], 4
          %s517 = int_to_ptr.vmem [resolvable:$true] %s516
          %522 = dma.hbm_to_vmem [thread:$0]  %s8, 1024, %s517, [#allocation9], 64, 64, 4
        $region40: #{tpu_custom_call.1} parent=11 // pred_fallthru
          _
        // Predicated region
        $region41: #{tpu_custom_call.1} parent=11 // pred_check
          %p523 = pneg %p253
        $region42: #{tpu_custom_call.1} parent=11 // pred_check_branch
          %525 = sbr.rel (%p523) target = $region44
        $region43: #{tpu_custom_call.1} parent=11 // pred_region
          _
        $region44: #{tpu_custom_call.1} parent=11 // pred_fallthru
          _
        // Predicated region
        $region45: #{tpu_custom_call.1} parent=11 // pred_check
          %p526 = pneg %p274
        $region46: #{tpu_custom_call.1} parent=11 // pred_check_branch
          %528 = sbr.rel (%p526) target = $region48
        $region47: #{tpu_custom_call.1} parent=11 // pred_region
          _
        $region48: #{tpu_custom_call.1} parent=11 // pred_fallthru
          _
        // Predicated region
        $region49: #{tpu_custom_call.1} parent=11 // pred_check
          %p529 = pneg %p295
        $region50: #{tpu_custom_call.1} parent=11 // pred_check_branch
          %531 = sbr.rel (%p529) target = $region52
        $region51: #{tpu_custom_call.1} parent=11 // pred_region
          _
        $region52: #{tpu_custom_call.1} parent=11 // pred_fallthru
          _
        // Predicated region
        $region53: #{tpu_custom_call.1} parent=11 // pred_check
          %p532 = pneg %p316
        $region54: #{tpu_custom_call.1} parent=11 // pred_check_branch
          %534 = sbr.rel (%p532) target = $region56
        $region55: #{tpu_custom_call.1} parent=11 // pred_region
          %s536 = ssub.s32 4096, 4096
          %537 = vsyncadd [#allocation12], %s536
          %s538 = sshll.u32 [#allocation11], 4
          %s539 = int_to_ptr.vmem [resolvable:$true] %s538
          %544 = dma.hbm_to_vmem [thread:$0]  %s12, 4096, %s539, [#allocation12], 256, 256, 16
        $region56: #{tpu_custom_call.1} parent=11 // pred_fallthru
          _
        // Predicated region
        $region57: #{tpu_custom_call.1} parent=11 // pred_check
          %p545 = pneg %p337
        $region58: #{tpu_custom_call.1} parent=11 // pred_check_branch
          %547 = sbr.rel (%p545) target = $region60
        $region59: #{tpu_custom_call.1} parent=11 // pred_region
          _
        $region60: #{tpu_custom_call.1} parent=11 // pred_fallthru
          _
        // Predicated region
        $region61: #{tpu_custom_call.1} parent=11 // pred_check
          %p548 = pneg %p358
        $region62: #{tpu_custom_call.1} parent=11 // pred_check_branch
          %550 = sbr.rel (%p548) target = $region64
        $region63: #{tpu_custom_call.1} parent=11 // pred_region
          %s552 = ssub.s32 4096, 4096
          %553 = vsyncadd [#allocation12], %s552
          %s554 = sshll.u32 [#allocation13], 4
          %s555 = int_to_ptr.vmem [resolvable:$true] %s554
          %560 = dma.hbm_to_vmem [thread:$0]  %s14, 4096, %s555, [#allocation12], 64, 64, 4
        $region64: #{tpu_custom_call.1} parent=11 // pred_fallthru
          _
        // Predicated region
        $region65: #{tpu_custom_call.1} parent=11 // pred_check
          %p561 = pneg %p379
        $region66: #{tpu_custom_call.1} parent=11 // pred_check_branch
          %563 = sbr.rel (%p561) target = $region68
        $region67: #{tpu_custom_call.1} parent=11 // pred_region
          _
        $region68: #{tpu_custom_call.1} parent=11 // pred_fallthru
          _
        // Predicated region
        $region69: #{tpu_custom_call.1} parent=11 // pred_check
          %p564 = pneg %p400
        $region70: #{tpu_custom_call.1} parent=11 // pred_check_branch
          %566 = sbr.rel (%p564) target = $region72
        $region71: #{tpu_custom_call.1} parent=11 // pred_region
          _
        $region72: #{tpu_custom_call.1} parent=11 // pred_fallthru
          _
        // Predicated region
        $region73: #{tpu_custom_call.1} parent=11 // pred_check
          %p567 = pneg %p421
        $region74: #{tpu_custom_call.1} parent=11 // pred_check_branch
          %569 = sbr.rel (%p567) target = $region76
        $region75: #{tpu_custom_call.1} parent=11 // pred_region
          _
        $region76: #{tpu_custom_call.1} parent=11 // pred_fallthru
          _
      $region12: #{tpu_custom_call.1} parent=5 // pred_fallthru
        _
      %p570 = scmp.lt.s32.totalorder %s33, 2
      // Predicated region
      $region77: #{tpu_custom_call.1} parent=5 // pred_check
        %p571 = pneg %p570
      $region78: #{tpu_custom_call.1} parent=5 // pred_check_branch
        %573 = sbr.rel (%p571) target = $region80
      $region79: #{tpu_custom_call.1} parent=5 // pred_region
        // Predicated region
        $region81: #{tpu_custom_call.1} parent=79 // pred_check
          %p574 = pneg %p53
        $region82: #{tpu_custom_call.1} parent=79 // pred_check_branch
          %576 = sbr.rel (%p574) target = $region84
        $region83: #{tpu_custom_call.1} parent=79 // pred_region
          %s577 = sand.u32 %s43, 1
          %s578 = scalar_lea.sflag [#allocation3], %s577
          %s579 = sand.u32 %s43, 1
          %s580 = smul.addr %s579, 8
          %s581 = scalar_lea.vmem [#allocation2], %s580
          %s583 = ssub.s32 128, 128
          %584 = vsyncadd %s578, %s583
          %s585 = smul.addr %s33, 128
          %s586 = scalar_lea.hbm %s0, %s585
          %s588 = sshll.u32 %s581, 4
          %s589 = int_to_ptr.vmem [resolvable:$true] %s588
          %591 = dma.hbm_to_vmem [thread:$0]  %s586, 128, %s589, %s578
        $region84: #{tpu_custom_call.1} parent=79 // pred_fallthru
          _
        // Predicated region
        $region85: #{tpu_custom_call.1} parent=79 // pred_check
          %p592 = pneg %p79
        $region86: #{tpu_custom_call.1} parent=79 // pred_check_branch
          %594 = sbr.rel (%p592) target = $region88
        $region87: #{tpu_custom_call.1} parent=79 // pred_region
          %p595 = scmp.lt.s32.totalorder %s33, 1
          %s596 = scalar_select %p595, %s33, 1
          %s597 = scalar_lea.vmem %s1, %s596
        $region88: #{tpu_custom_call.1} parent=79 // pred_fallthru
          _
      $region80: #{tpu_custom_call.1} parent=5 // pred_fallthru
        _
      %p598 = scmp.le.s32.totalorder 1, %s33
      %p599 = scmp.lt.s32.totalorder %s33, 3
      %p600 = pnand %p598, %p599
      %p601 = pneg %p600
      // Predicated region
      $region89: #{tpu_custom_call.1} parent=5 // pred_check
        _
      $region90: #{tpu_custom_call.1} parent=5 // pred_check_branch
        %603 = sbr.rel (%p600) target = $region92
      $region91: #{tpu_custom_call.1} parent=5 // pred_region
        %s604 = ssub.s32 %s33, 1
        %s605 = sand.u32 %s46, 1
        %s606 = scalar_lea.sflag [#allocation3], %s605
        %s607 = sand.u32 %s46, 1
        %s608 = smul.addr %s607, 8
        %s609 = scalar_lea.vmem [#allocation2], %s608
        // Predicated region
        $region93: #{tpu_custom_call.1} parent=91 // pred_check
          %p610 = pneg %p59
        $region94: #{tpu_custom_call.1} parent=91 // pred_check_branch
          %612 = sbr.rel (%p610) target = $region96
        $region95: #{tpu_custom_call.1} parent=91 // pred_region
          %613 = dma.done %s606, 128
        $region96: #{tpu_custom_call.1} parent=91 // pred_fallthru
          _
        // Predicated region
        $region97: #{tpu_custom_call.1} parent=91 // pred_check
          %p614 = pneg %p106
        $region98: #{tpu_custom_call.1} parent=91 // pred_check_branch
          %616 = sbr.rel (%p614) target = $region100
        $region99: #{tpu_custom_call.1} parent=91 // pred_region
          %617 = dma.done [#allocation6], 1024
        $region100: #{tpu_custom_call.1} parent=91 // pred_fallthru
          _
        // Predicated region
        $region101: #{tpu_custom_call.1} parent=91 // pred_check
          %p618 = pneg %p148
        $region102: #{tpu_custom_call.1} parent=91 // pred_check_branch
          %620 = sbr.rel (%p618) target = $region104
        $region103: #{tpu_custom_call.1} parent=91 // pred_region
          %621 = dma.done [#allocation6], 1024
        $region104: #{tpu_custom_call.1} parent=91 // pred_fallthru
          _
        // Predicated region
        $region105: #{tpu_custom_call.1} parent=91 // pred_check
          %p622 = pneg %p190
        $region106: #{tpu_custom_call.1} parent=91 // pred_check_branch
          %624 = sbr.rel (%p622) target = $region108
        $region107: #{tpu_custom_call.1} parent=91 // pred_region
          %625 = dma.done [#allocation9], 1024
        $region108: #{tpu_custom_call.1} parent=91 // pred_fallthru
          _
        // Predicated region
        $region109: #{tpu_custom_call.1} parent=91 // pred_check
          %p626 = pneg %p232
        $region110: #{tpu_custom_call.1} parent=91 // pred_check_branch
          %628 = sbr.rel (%p626) target = $region112
        $region111: #{tpu_custom_call.1} parent=91 // pred_region
          %629 = dma.done [#allocation9], 1024
        $region112: #{tpu_custom_call.1} parent=91 // pred_fallthru
          _
        // Predicated region
        $region113: #{tpu_custom_call.1} parent=91 // pred_check
          %p630 = pneg %p316
        $region114: #{tpu_custom_call.1} parent=91 // pred_check_branch
          %632 = sbr.rel (%p630) target = $region116
        $region115: #{tpu_custom_call.1} parent=91 // pred_region
          %633 = dma.done [#allocation12], 4096
        $region116: #{tpu_custom_call.1} parent=91 // pred_fallthru
          _
        // Predicated region
        $region117: #{tpu_custom_call.1} parent=91 // pred_check
          %p634 = pneg %p358
        $region118: #{tpu_custom_call.1} parent=91 // pred_check_branch
          %636 = sbr.rel (%p634) target = $region120
        $region119: #{tpu_custom_call.1} parent=91 // pred_region
          %637 = dma.done [#allocation12], 4096
        $region120: #{tpu_custom_call.1} parent=91 // pred_fallthru
          _
        %s638 = sand.u32 %s46, 1
        %s639 = scalar_lea.sflag [#allocation3], %s638
        %s640 = sand.u32 %s46, 1
        %s641 = smul.addr %s640, 8
        %s642 = scalar_lea.vmem [#allocation2], %s641
        %p643 = pneg %p59
        %p644 = pneg %p56
        %p645 = scmp.lt.s32.totalorder %s38, 1
        %s646 = scalar_select %p645, %s38, 1
        %s647 = scalar_lea.vmem %s1, %s646
        %p648 = pneg %p85
        %p649 = pneg %p82
        %p650 = pneg %p106
        %p651 = pneg %p103
        %p652 = pneg %p127
        %p653 = pneg %p124
        %p654 = pneg %p148
        %p655 = pneg %p145
        %p656 = pneg %p169
        %p657 = pneg %p166
        %p658 = pneg %p190
        %p659 = pneg %p187
        %p660 = pneg %p211
        %p661 = pneg %p208
        %p662 = pneg %p232
        %p663 = pneg %p229
        %p664 = pneg %p253
        %p665 = pneg %p250
        %p666 = pneg %p274
        %p667 = pneg %p271
        %p668 = pneg %p295
        %p669 = pneg %p292
        %p670 = pneg %p316
        %p671 = pneg %p313
        %p672 = pneg %p337
        %p673 = pneg %p334
        %p674 = pneg %p358
        %p675 = pneg %p355
        %p676 = pneg %p379
        %p677 = pneg %p376
        %p678 = pneg %p400
        %p679 = pneg %p397
        %p680 = pneg %p421
        %p681 = pneg %p418
        %p682 = pneg %p447
        %p683 = pneg %p444
        %s684 = sand.u32 %s434, 1
        %s685 = scalar_lea.sflag [#allocation4], %s684
        %s686 = sand.u32 %s434, 1
        %s687 = smul.addr %s686, 8
        %s688 = scalar_lea.vmem [#allocation14], %s687
        %p689 = scmp.lt.s32.totalorder %s38, 1
        %s690 = scalar_select %p689, %s38, 1
        %s691 = scalar_lea.vmem %s1, %s690
        %v693 = vld [vmem:[%s609] sm:$0xff]
        %v694 = vld [vmem:[%s691] sm:$0x1]
        %v695 = vpack.c.bf16 %v693, %v693
        %v696 = vld [vmem:[#allocation5] sm:$0xf]
        %v697 = vld [vmem:[#allocation5 + $0x4] sm:$0xf]
        %v698 = vld [vmem:[#allocation5 + $0x8] sm:$0xf]
        %v699 = vld [vmem:[#allocation5 + $0xc] sm:$0xf]
        %v700 = vld [vmem:[#allocation5 + $0x10] sm:$0xf]
        %v701 = vld [vmem:[#allocation5 + $0x14] sm:$0xf]
        %v702 = vld [vmem:[#allocation5 + $0x18] sm:$0xf]
        %v703 = vld [vmem:[#allocation5 + $0x1c] sm:$0xf]
        %v704 = vld [vmem:[#allocation5 + $0x20] sm:$0xf]
        %v705 = vld [vmem:[#allocation5 + $0x24] sm:$0xf]
        %v706 = vld [vmem:[#allocation5 + $0x28] sm:$0xf]
        %v707 = vld [vmem:[#allocation5 + $0x2c] sm:$0xf]
        %v708 = vld [vmem:[#allocation5 + $0x30] sm:$0xf]
        %v709 = vld [vmem:[#allocation5 + $0x34] sm:$0xf]
        %v710 = vld [vmem:[#allocation5 + $0x38] sm:$0xf]
        %v711 = vld [vmem:[#allocation5 + $0x3c] sm:$0xf]
        %v712 = vld [vmem:[%s3] sm:$0x1]
        %v714 = vlaneseq
        %v715 = vshrl.u32 %v714, 7
        %v716 = vsub.s32 0, %v715
        %v717 = vrot.slane %v712, %v716
        %v735 = vunpack.c.l.b16 %v696
        %v736 = vunpack.c.l.b16 %v697
        %v737 = vunpack.c.l.b16 %v698
        %v738 = vunpack.c.l.b16 %v699
        %v739 = vunpack.c.l.b16 %v700
        %v740 = vunpack.c.l.b16 %v701
        %v741 = vunpack.c.l.b16 %v702
        %v742 = vunpack.c.l.b16 %v703
        %v743 = vunpack.c.l.b16 %v704
        %v744 = vunpack.c.l.b16 %v705
        %v745 = vunpack.c.l.b16 %v706
        %v746 = vunpack.c.l.b16 %v707
        %v747 = vunpack.c.l.b16 %v708
        %v748 = vunpack.c.l.b16 %v709
        %v749 = vunpack.c.l.b16 %v710
        %v750 = vunpack.c.l.b16 %v711
        %v751 = vpack.c.b16 %v736, %v735
        %v752 = vpack.c.b16 %v738, %v737
        %v753 = vpack.c.b16 %v740, %v739
        %v754 = vpack.c.b16 %v742, %v741
        %v755 = vpack.c.b16 %v744, %v743
        %v756 = vpack.c.b16 %v746, %v745
        %v757 = vpack.c.b16 %v748, %v747
        %v758 = vpack.c.b16 %v750, %v749
        %767 = vmatprep.subr.bf16.mxu0 0
        %768 = vmatpush1.bf16.msra.mxu0 %v751
        %769 = vmatprep.subr.bf16.mxu0 0
        %770 = vmatpush1.bf16.msra.mxu0 %v752
        %771 = vmatprep.subr.bf16.mxu0 0
        %772 = vmatpush1.bf16.msra.mxu0 %v753
        %773 = vmatprep.subr.bf16.mxu0 0
        %774 = vmatpush1.bf16.msra.mxu0 %v754
        %775 = vmatprep.subr.bf16.mxu0 0
        %776 = vmatpush1.bf16.msra.mxu0 %v755
        %777 = vmatprep.subr.bf16.mxu0 0
        %778 = vmatpush1.bf16.msra.mxu0 %v756
        %779 = vmatprep.subr.bf16.mxu0 0
        %780 = vmatpush1.bf16.msra.mxu0 %v757
        %781 = vmatprep.subr.bf16.mxu0 0
        %782 = vmatpush1.bf16.msra.mxu0 %v758
        %783 = vmatprep.subr.bf16.mxu0 0
        %784 = vmatpush1.bf16.msra.mxu0 0
        %785 = vmatprep.subr.bf16.mxu0 0
        %786 = vmatpush1.bf16.msra.mxu0 0
        %787 = vmatprep.subr.bf16.mxu0 0
        %788 = vmatpush1.bf16.msra.mxu0 0
        %789 = vmatprep.subr.bf16.mxu0 0
        %790 = vmatpush1.bf16.msra.mxu0 0
        %791 = vmatprep.subr.bf16.mxu0 0
        %792 = vmatpush1.bf16.msra.mxu0 0
        %793 = vmatprep.subr.bf16.mxu0 0
        %794 = vmatpush1.bf16.msra.mxu0 0
        %795 = vmatprep.subr.bf16.mxu0 0
        %796 = vmatpush1.bf16.msra.mxu0 0
        %797 = vmatprep.subr.bf16.mxu0 0
        %798 = vmatpush1.bf16.msra.mxu0 0
        %799 = vmatprep.mubr.bf16.mxu0 0
        %800 = vmatmul.mubr.bf16.gmra.mrb[0].mxu0 %v695
        %v801 = vpop.f32.mrb[0].mxu0
        %v802 = vadd.f32 %v717, %v801
        %v803 = vpop.f32.mrb[0].mxu0
        %v804 = vpop.f32.mrb[0].mxu0
        %v805 = vpop.f32.mrb[0].mxu0
        %806 = vdwg.mxu0
        %v807 = vld [vmem:[#allocation7] sm:$0xf]
        %v808 = vld [vmem:[#allocation7 + $0x4] sm:$0xf]
        %v809 = vld [vmem:[#allocation7 + $0x8] sm:$0xf]
        %v810 = vld [vmem:[#allocation7 + $0xc] sm:$0xf]
        %v811 = vld [vmem:[#allocation7 + $0x10] sm:$0xf]
        %v812 = vld [vmem:[#allocation7 + $0x14] sm:$0xf]
        %v813 = vld [vmem:[#allocation7 + $0x18] sm:$0xf]
        %v814 = vld [vmem:[#allocation7 + $0x1c] sm:$0xf]
        %v815 = vld [vmem:[#allocation7 + $0x20] sm:$0xf]
        %v816 = vld [vmem:[#allocation7 + $0x24] sm:$0xf]
        %v817 = vld [vmem:[#allocation7 + $0x28] sm:$0xf]
        %v818 = vld [vmem:[#allocation7 + $0x2c] sm:$0xf]
        %v819 = vld [vmem:[#allocation7 + $0x30] sm:$0xf]
        %v820 = vld [vmem:[#allocation7 + $0x34] sm:$0xf]
        %v821 = vld [vmem:[#allocation7 + $0x38] sm:$0xf]
        %v822 = vld [vmem:[#allocation7 + $0x3c] sm:$0xf]
        %v823 = vld [vmem:[%s5] sm:$0x1]
        %v825 = vlaneseq
        %v826 = vshrl.u32 %v825, 7
        %v827 = vsub.s32 0, %v826
        %v828 = vrot.slane %v823, %v827
        %v846 = vunpack.c.l.b16 %v807
        %v847 = vunpack.c.l.b16 %v808
        %v848 = vunpack.c.l.b16 %v809
        %v849 = vunpack.c.l.b16 %v810
        %v850 = vunpack.c.l.b16 %v811
        %v851 = vunpack.c.l.b16 %v812
        %v852 = vunpack.c.l.b16 %v813
        %v853 = vunpack.c.l.b16 %v814
        %v854 = vunpack.c.l.b16 %v815
        %v855 = vunpack.c.l.b16 %v816
        %v856 = vunpack.c.l.b16 %v817
        %v857 = vunpack.c.l.b16 %v818
        %v858 = vunpack.c.l.b16 %v819
        %v859 = vunpack.c.l.b16 %v820
        %v860 = vunpack.c.l.b16 %v821
        %v861 = vunpack.c.l.b16 %v822
        %v862 = vpack.c.b16 %v847, %v846
        %v863 = vpack.c.b16 %v849, %v848
        %v864 = vpack.c.b16 %v851, %v850
        %v865 = vpack.c.b16 %v853, %v852
        %v866 = vpack.c.b16 %v855, %v854
        %v867 = vpack.c.b16 %v857, %v856
        %v868 = vpack.c.b16 %v859, %v858
        %v869 = vpack.c.b16 %v861, %v860
        %878 = vmatprep.subr.bf16.mxu0 0
        %879 = vmatpush1.bf16.msra.mxu0 %v862
        %880 = vmatprep.subr.bf16.mxu0 0
        %881 = vmatpush1.bf16.msra.mxu0 %v863
        %882 = vmatprep.subr.bf16.mxu0 0
        %883 = vmatpush1.bf16.msra.mxu0 %v864
        %884 = vmatprep.subr.bf16.mxu0 0
        %885 = vmatpush1.bf16.msra.mxu0 %v865
        %886 = vmatprep.subr.bf16.mxu0 0
        %887 = vmatpush1.bf16.msra.mxu0 %v866
        %888 = vmatprep.subr.bf16.mxu0 0
        %889 = vmatpush1.bf16.msra.mxu0 %v867
        %890 = vmatprep.subr.bf16.mxu0 0
        %891 = vmatpush1.bf16.msra.mxu0 %v868
        %892 = vmatprep.subr.bf16.mxu0 0
        %893 = vmatpush1.bf16.msra.mxu0 %v869
        %894 = vmatprep.subr.bf16.mxu0 0
        %895 = vmatpush1.bf16.msra.mxu0 0
        %896 = vmatprep.subr.bf16.mxu0 0
        %897 = vmatpush1.bf16.msra.mxu0 0
        %898 = vmatprep.subr.bf16.mxu0 0
        %899 = vmatpush1.bf16.msra.mxu0 0
        %900 = vmatprep.subr.bf16.mxu0 0
        %901 = vmatpush1.bf16.msra.mxu0 0
        %902 = vmatprep.subr.bf16.mxu0 0
        %903 = vmatpush1.bf16.msra.mxu0 0
        %904 = vmatprep.subr.bf16.mxu0 0
        %905 = vmatpush1.bf16.msra.mxu0 0
        %906 = vmatprep.subr.bf16.mxu0 0
        %907 = vmatpush1.bf16.msra.mxu0 0
        %908 = vmatprep.subr.bf16.mxu0 0
        %909 = vmatpush1.bf16.msra.mxu0 0
        %910 = vmatprep.mubr.bf16.mxu0 0
        %911 = vmatmul.mubr.bf16.gmra.mrb[0].mxu0 %v695
        %v912 = vpop.f32.mrb[0].mxu0
        %v913 = vadd.f32 %v828, %v912
        %v914 = vpop.f32.mrb[0].mxu0
        %v915 = vpop.f32.mrb[0].mxu0
        %v916 = vpop.f32.mrb[0].mxu0
        %917 = vdwg.mxu0
        %v918 = vld [vmem:[#allocation8] sm:$0xf]
        %v919 = vld [vmem:[#allocation8 + $0x4] sm:$0xf]
        %v920 = vld [vmem:[#allocation8 + $0x8] sm:$0xf]
        %v921 = vld [vmem:[#allocation8 + $0xc] sm:$0xf]
        %v922 = vld [vmem:[#allocation8 + $0x10] sm:$0xf]
        %v923 = vld [vmem:[#allocation8 + $0x14] sm:$0xf]
        %v924 = vld [vmem:[#allocation8 + $0x18] sm:$0xf]
        %v925 = vld [vmem:[#allocation8 + $0x1c] sm:$0xf]
        %v926 = vld [vmem:[#allocation8 + $0x20] sm:$0xf]
        %v927 = vld [vmem:[#allocation8 + $0x24] sm:$0xf]
        %v928 = vld [vmem:[#allocation8 + $0x28] sm:$0xf]
        %v929 = vld [vmem:[#allocation8 + $0x2c] sm:$0xf]
        %v930 = vld [vmem:[#allocation8 + $0x30] sm:$0xf]
        %v931 = vld [vmem:[#allocation8 + $0x34] sm:$0xf]
        %v932 = vld [vmem:[#allocation8 + $0x38] sm:$0xf]
        %v933 = vld [vmem:[#allocation8 + $0x3c] sm:$0xf]
        %v934 = vld [vmem:[%s7] sm:$0x1]
        %v936 = vlaneseq
        %v937 = vshrl.u32 %v936, 7
        %v938 = vsub.s32 0, %v937
        %v939 = vrot.slane %v934, %v938
        %v957 = vunpack.c.l.b16 %v918
        %v958 = vunpack.c.l.b16 %v919
        %v959 = vunpack.c.l.b16 %v920
        %v960 = vunpack.c.l.b16 %v921
        %v961 = vunpack.c.l.b16 %v922
        %v962 = vunpack.c.l.b16 %v923
        %v963 = vunpack.c.l.b16 %v924
        %v964 = vunpack.c.l.b16 %v925
        %v965 = vunpack.c.l.b16 %v926
        %v966 = vunpack.c.l.b16 %v927
        %v967 = vunpack.c.l.b16 %v928
        %v968 = vunpack.c.l.b16 %v929
        %v969 = vunpack.c.l.b16 %v930
        %v970 = vunpack.c.l.b16 %v931
        %v971 = vunpack.c.l.b16 %v932
        %v972 = vunpack.c.l.b16 %v933
        %v973 = vpack.c.b16 %v958, %v957
        %v974 = vpack.c.b16 %v960, %v959
        %v975 = vpack.c.b16 %v962, %v961
        %v976 = vpack.c.b16 %v964, %v963
        %v977 = vpack.c.b16 %v966, %v965
        %v978 = vpack.c.b16 %v968, %v967
        %v979 = vpack.c.b16 %v970, %v969
        %v980 = vpack.c.b16 %v972, %v971
        %989 = vmatprep.subr.bf16.mxu0 0
        %990 = vmatpush1.bf16.msra.mxu0 %v973
        %991 = vmatprep.subr.bf16.mxu0 0
        %992 = vmatpush1.bf16.msra.mxu0 %v974
        %993 = vmatprep.subr.bf16.mxu0 0
        %994 = vmatpush1.bf16.msra.mxu0 %v975
        %995 = vmatprep.subr.bf16.mxu0 0
        %996 = vmatpush1.bf16.msra.mxu0 %v976
        %997 = vmatprep.subr.bf16.mxu0 0
        %998 = vmatpush1.bf16.msra.mxu0 %v977
        %999 = vmatprep.subr.bf16.mxu0 0
        %1000 = vmatpush1.bf16.msra.mxu0 %v978
        %1001 = vmatprep.subr.bf16.mxu0 0
        %1002 = vmatpush1.bf16.msra.mxu0 %v979
        %1003 = vmatprep.subr.bf16.mxu0 0
        %1004 = vmatpush1.bf16.msra.mxu0 %v980
        %1005 = vmatprep.subr.bf16.mxu0 0
        %1006 = vmatpush1.bf16.msra.mxu0 0
        %1007 = vmatprep.subr.bf16.mxu0 0
        %1008 = vmatpush1.bf16.msra.mxu0 0
        %1009 = vmatprep.subr.bf16.mxu0 0
        %1010 = vmatpush1.bf16.msra.mxu0 0
        %1011 = vmatprep.subr.bf16.mxu0 0
        %1012 = vmatpush1.bf16.msra.mxu0 0
        %1013 = vmatprep.subr.bf16.mxu0 0
        %1014 = vmatpush1.bf16.msra.mxu0 0
        %1015 = vmatprep.subr.bf16.mxu0 0
        %1016 = vmatpush1.bf16.msra.mxu0 0
        %1017 = vmatprep.subr.bf16.mxu0 0
        %1018 = vmatpush1.bf16.msra.mxu0 0
        %1019 = vmatprep.subr.bf16.mxu0 0
        %1020 = vmatpush1.bf16.msra.mxu0 0
        %1021 = vmatprep.mubr.bf16.mxu0 0
        %1022 = vmatmul.mubr.bf16.gmra.mrb[0].mxu0 %v695
        %v1023 = vpop.f32.mrb[0].mxu0
        %v1024 = vadd.f32 %v939, %v1023
        %v1025 = vpop.f32.mrb[0].mxu0
        %v1026 = vpop.f32.mrb[0].mxu0
        %v1027 = vpop.f32.mrb[0].mxu0
        %1028 = vdwg.mxu0
        %v1029 = vpack.c.bf16 %v802, %v802
        %v1030 = vpack.c.bf16 %v913, %v913
        %v1031 = vpack.c.bf16 %v1024, %v1024
        %1032 = vmatprep.subr.bf16.mxu0 0
        %1033 = vmatpush1.bf16.xpose.msra.mxu0 %v1030
        %1034 = vmatprep.subr.bf16.mxu0 0
        %1035 = vmatpush1.bf16.xpose.msra.mxu0 0
        %1036 = vmatprep.subr.bf16.mxu0 0
        %1037 = vmatpush1.bf16.xpose.msra.mxu0 0
        %1038 = vmatprep.subr.bf16.mxu0 0
        %1039 = vmatpush1.bf16.xpose.msra.mxu0 0
        %1040 = vmatprep.subr.bf16.mxu0 0
        %1041 = vmatpush1.bf16.xpose.msra.mxu0 0
        %1042 = vmatprep.subr.bf16.mxu0 0
        %1043 = vmatpush1.bf16.xpose.msra.mxu0 0
        %1044 = vmatprep.subr.bf16.mxu0 0
        %1045 = vmatpush1.bf16.xpose.msra.mxu0 0
        %1046 = vmatprep.subr.bf16.mxu0 0
        %1047 = vmatpush1.bf16.xpose.msra.mxu0 0
        %1048 = vmatprep.subr.bf16.mxu0 0
        %1049 = vmatpush1.bf16.xpose.msra.mxu0 0
        %1050 = vmatprep.subr.bf16.mxu0 0
        %1051 = vmatpush1.bf16.xpose.msra.mxu0 0
        %1052 = vmatprep.subr.bf16.mxu0 0
        %1053 = vmatpush1.bf16.xpose.msra.mxu0 0
        %1054 = vmatprep.subr.bf16.mxu0 0
        %1055 = vmatpush1.bf16.xpose.msra.mxu0 0
        %1056 = vmatprep.subr.bf16.mxu0 0
        %1057 = vmatpush1.bf16.xpose.msra.mxu0 0
        %1058 = vmatprep.subr.bf16.mxu0 0
        %1059 = vmatpush1.bf16.xpose.msra.mxu0 0
        %1060 = vmatprep.subr.bf16.mxu0 0
        %1061 = vmatpush1.bf16.xpose.msra.mxu0 0
        %1062 = vmatprep.subr.bf16.mxu0 0
        %1063 = vmatpush1.bf16.xpose.msra.mxu0 0
        %1064 = vmatprep.mubr.bf16.mxu0 0
        %1065 = vmatmul.mubr.bf16.gmra.mrb[0].mxu0 %v1029
        %v1066 = vpop.f32.mrb[0].mxu0
        %v1067 = vadd.f32 0.0, %v1066
        %v1068 = vpop.f32.mrb[0].mxu0
        %v1069 = vpop.f32.mrb[0].mxu0
        %v1070 = vpop.f32.mrb[0].mxu0
        %1071 = vdwg.mxu0
        %v1072 = vmul.f32 %v1067, 0.088388346
        %v1073 = vsub.f32 %v694, 1.0
        %v1074 = vmul.f32 %v1073, 10000.0
        %v1076 = vlaneseq
        %v1077 = vshrl.u32 %v1076, 7
        %v1078 = vsub.s32 0, %v1077
        %v1079 = vrot.slane %v1074, %v1078
        %v1081 = vadd.f32 %v1072, %v1079
        %vm1082 = vcmask 64512
        %v1083 = vsel %vm1082, %v1081, -inf
        %1084 = vmax.xlane.f32.xlu0 %v1083
        %v1085 = vpop.xlane.xlu0 %1084
        %v1086 = vsub.f32 -inf, %v1085
        %v1087 = vmul.f32 %v1086, 1.442695
        %v1088 = vpow.pop %v1087
        %v1089 = vsub.f32 %v1081, %v1085
        %v1090 = vmul.f32 %v1089, 1.442695
        %v1091 = vpow.pop %v1090
        %v1092 = vmul.f32 %v1088, 0.0
        %v1093 = vsel %vm1082, %v1091, 0.0
        %1094 = vadd.xlane.f32.xlu0 %v1093
        %v1095 = vpop.xlane.xlu0 %1094
        %v1096 = vadd.f32 %v1092, %v1095
        %v1097 = vpack.c.bf16 %v1091, %v1091
        %v1099 = vsel %vm1082, %v1097, 0
        %vm1101 = vcmask 1043456
        %v1103 = vsel %vm1101, %v1031, 0
        %1105 = vmatprep.subr.bf16.mxu0 0
        %1106 = vmatpush1.bf16.msra.mxu0 %v1103
        %1107 = vmatprep.subr.bf16.mxu0 0
        %1108 = vmatpush1.bf16.msra.mxu0 0
        %1109 = vmatprep.subr.bf16.mxu0 0
        %1110 = vmatpush1.bf16.msra.mxu0 0
        %1111 = vmatprep.subr.bf16.mxu0 0
        %1112 = vmatpush1.bf16.msra.mxu0 0
        %1113 = vmatprep.subr.bf16.mxu0 0
        %1114 = vmatpush1.bf16.msra.mxu0 0
        %1115 = vmatprep.subr.bf16.mxu0 0
        %1116 = vmatpush1.bf16.msra.mxu0 0
        %1117 = vmatprep.subr.bf16.mxu0 0
        %1118 = vmatpush1.bf16.msra.mxu0 0
        %1119 = vmatprep.subr.bf16.mxu0 0
        %1120 = vmatpush1.bf16.msra.mxu0 0
        %1121 = vmatprep.subr.bf16.mxu0 0
        %1122 = vmatpush1.bf16.msra.mxu0 0
        %1123 = vmatprep.subr.bf16.mxu0 0
        %1124 = vmatpush1.bf16.msra.mxu0 0
        %1125 = vmatprep.subr.bf16.mxu0 0
        %1126 = vmatpush1.bf16.msra.mxu0 0
        %1127 = vmatprep.subr.bf16.mxu0 0
        %1128 = vmatpush1.bf16.msra.mxu0 0
        %1129 = vmatprep.subr.bf16.mxu0 0
        %1130 = vmatpush1.bf16.msra.mxu0 0
        %1131 = vmatprep.subr.bf16.mxu0 0
        %1132 = vmatpush1.bf16.msra.mxu0 0
        %1133 = vmatprep.subr.bf16.mxu0 0
        %1134 = vmatpush1.bf16.msra.mxu0 0
        %1135 = vmatprep.subr.bf16.mxu0 0
        %1136 = vmatpush1.bf16.msra.mxu0 0
        %1137 = vmatprep.mubr.bf16.mxu0 0
        %1138 = vmatmul.mubr.bf16.gmra.mrb[0].mxu0 %v1099
        %v1139 = vpop.f32.mrb[0].mxu0
        %v1140 = vadd.f32 0.0, %v1139
        %v1141 = vpop.f32.mrb[0].mxu0
        %v1142 = vpop.f32.mrb[0].mxu0
        %v1143 = vpop.f32.mrb[0].mxu0
        %1144 = vdwg.mxu0
        %v1145 = vadd.f32 %v1092, %v1140
        %v1146 = vrcp.pop %v1096
        %v1147 = vmul.f32 %v1145, %v1146
        %v1148 = vpack.c.bf16 %v1147, %v1147
        %v1149 = vld [vmem:[#allocation10] sm:$0xf]
        %v1150 = vld [vmem:[#allocation10 + $0x4] sm:$0xf]
        %v1151 = vld [vmem:[#allocation10 + $0x8] sm:$0xf]
        %v1152 = vld [vmem:[#allocation10 + $0xc] sm:$0xf]
        %v1153 = vld [vmem:[#allocation10 + $0x10] sm:$0xf]
        %v1154 = vld [vmem:[#allocation10 + $0x14] sm:$0xf]
        %v1155 = vld [vmem:[#allocation10 + $0x18] sm:$0xf]
        %v1156 = vld [vmem:[#allocation10 + $0x1c] sm:$0xf]
        %v1157 = vld [vmem:[#allocation10 + $0x20] sm:$0xf]
        %v1158 = vld [vmem:[#allocation10 + $0x24] sm:$0xf]
        %v1159 = vld [vmem:[#allocation10 + $0x28] sm:$0xf]
        %v1160 = vld [vmem:[#allocation10 + $0x2c] sm:$0xf]
        %v1161 = vld [vmem:[#allocation10 + $0x30] sm:$0xf]
        %v1162 = vld [vmem:[#allocation10 + $0x34] sm:$0xf]
        %v1163 = vld [vmem:[#allocation10 + $0x38] sm:$0xf]
        %v1164 = vld [vmem:[#allocation10 + $0x3c] sm:$0xf]
        %v1165 = vld [vmem:[%s9] sm:$0x1]
        %v1167 = vlaneseq
        %v1168 = vshrl.u32 %v1167, 7
        %v1169 = vsub.s32 0, %v1168
        %v1170 = vrot.slane %v1165, %v1169
        %v1188 = vunpack.c.l.b16 %v1149
        %v1189 = vunpack.c.l.b16 %v1150
        %v1190 = vunpack.c.l.b16 %v1151
        %v1191 = vunpack.c.l.b16 %v1152
        %v1192 = vunpack.c.l.b16 %v1153
        %v1193 = vunpack.c.l.b16 %v1154
        %v1194 = vunpack.c.l.b16 %v1155
        %v1195 = vunpack.c.l.b16 %v1156
        %v1196 = vunpack.c.l.b16 %v1157
        %v1197 = vunpack.c.l.b16 %v1158
        %v1198 = vunpack.c.l.b16 %v1159
        %v1199 = vunpack.c.l.b16 %v1160
        %v1200 = vunpack.c.l.b16 %v1161
        %v1201 = vunpack.c.l.b16 %v1162
        %v1202 = vunpack.c.l.b16 %v1163
        %v1203 = vunpack.c.l.b16 %v1164
        %v1204 = vpack.c.b16 %v1189, %v1188
        %v1205 = vpack.c.b16 %v1191, %v1190
        %v1206 = vpack.c.b16 %v1193, %v1192
        %v1207 = vpack.c.b16 %v1195, %v1194
        %v1208 = vpack.c.b16 %v1197, %v1196
        %v1209 = vpack.c.b16 %v1199, %v1198
        %v1210 = vpack.c.b16 %v1201, %v1200
        %v1211 = vpack.c.b16 %v1203, %v1202
        %1220 = vmatprep.subr.bf16.mxu0 0
        %1221 = vmatpush1.bf16.msra.mxu0 %v1204
        %1222 = vmatprep.subr.bf16.mxu0 0
        %1223 = vmatpush1.bf16.msra.mxu0 %v1205
        %1224 = vmatprep.subr.bf16.mxu0 0
        %1225 = vmatpush1.bf16.msra.mxu0 %v1206
        %1226 = vmatprep.subr.bf16.mxu0 0
        %1227 = vmatpush1.bf16.msra.mxu0 %v1207
        %1228 = vmatprep.subr.bf16.mxu0 0
        %1229 = vmatpush1.bf16.msra.mxu0 %v1208
        %1230 = vmatprep.subr.bf16.mxu0 0
        %1231 = vmatpush1.bf16.msra.mxu0 %v1209
        %1232 = vmatprep.subr.bf16.mxu0 0
        %1233 = vmatpush1.bf16.msra.mxu0 %v1210
        %1234 = vmatprep.subr.bf16.mxu0 0
        %1235 = vmatpush1.bf16.msra.mxu0 %v1211
        %1236 = vmatprep.subr.bf16.mxu0 0
        %1237 = vmatpush1.bf16.msra.mxu0 0
        %1238 = vmatprep.subr.bf16.mxu0 0
        %1239 = vmatpush1.bf16.msra.mxu0 0
        %1240 = vmatprep.subr.bf16.mxu0 0
        %1241 = vmatpush1.bf16.msra.mxu0 0
        %1242 = vmatprep.subr.bf16.mxu0 0
        %1243 = vmatpush1.bf16.msra.mxu0 0
        %1244 = vmatprep.subr.bf16.mxu0 0
        %1245 = vmatpush1.bf16.msra.mxu0 0
        %1246 = vmatprep.subr.bf16.mxu0 0
        %1247 = vmatpush1.bf16.msra.mxu0 0
        %1248 = vmatprep.subr.bf16.mxu0 0
        %1249 = vmatpush1.bf16.msra.mxu0 0
        %1250 = vmatprep.subr.bf16.mxu0 0
        %1251 = vmatpush1.bf16.msra.mxu0 0
        %1252 = vmatprep.mubr.bf16.mxu0 0
        %1253 = vmatmul.mubr.bf16.gmra.mrb[0].mxu0 %v1148
        %v1254 = vpop.f32.mrb[0].mxu0
        %v1255 = vadd.f32 %v1170, %v1254
        %v1256 = vpop.f32.mrb[0].mxu0
        %v1257 = vpop.f32.mrb[0].mxu0
        %v1258 = vpop.f32.mrb[0].mxu0
        %1259 = vdwg.mxu0
        %v1260 = vadd.f32 %v693, %v1255
        %v1261 = vld [vmem:[%s10] sm:$0x1]
        %v1262 = vld [vmem:[%s11] sm:$0x1]
        %1263 = vadd.xlane.f32.xlu0 %v1260
        %v1264 = vpop.xlane.xlu0 %1263
        %v1265 = vrcp.pop 128.0
        %v1266 = vmul.f32 %v1264, %v1265
        %v1267 = vsub.f32 %v1260, %v1266
        %v1268 = vmul.f32 %v1267, %v1267
        %1269 = vadd.xlane.f32.xlu0 %v1268
        %v1270 = vpop.xlane.xlu0 %1269
        %v1271 = vmul.f32 %v1270, %v1265
        %v1272 = vadd.f32 %v1271, 1e-12
        %v1273 = vrsqrt.pop %v1272
        %v1274 = vmul.f32 %v1267, %v1273
        %v1276 = vlaneseq
        %v1277 = vshrl.u32 %v1276, 7
        %v1278 = vsub.s32 0, %v1277
        %v1279 = vrot.slane %v1261, %v1278
        %v1281 = vmul.f32 %v1274, %v1279
        %v1283 = vlaneseq
        %v1284 = vshrl.u32 %v1283, 7
        %v1285 = vsub.s32 0, %v1284
        %v1286 = vrot.slane %v1262, %v1285
        %v1288 = vadd.f32 %v1281, %v1286
        %v1289 = vpack.c.bf16 %v1288, %v1288
        %v1290 = vld [vmem:[#allocation11] sm:$0xff]
        %v1291 = vld [vmem:[#allocation11 + $0x10] sm:$0xff]
        %v1292 = vld [vmem:[#allocation11 + $0x20] sm:$0xff]
        %v1293 = vld [vmem:[#allocation11 + $0x30] sm:$0xff]
        %v1294 = vld [vmem:[#allocation11 + $0x40] sm:$0xff]
        %v1295 = vld [vmem:[#allocation11 + $0x50] sm:$0xff]
        %v1296 = vld [vmem:[#allocation11 + $0x60] sm:$0xff]
        %v1297 = vld [vmem:[#allocation11 + $0x70] sm:$0xff]
        %v1298 = vld [vmem:[#allocation11 + $0x80] sm:$0xff]
        %v1299 = vld [vmem:[#allocation11 + $0x90] sm:$0xff]
        %v1300 = vld [vmem:[#allocation11 + $0xa0] sm:$0xff]
        %v1301 = vld [vmem:[#allocation11 + $0xb0] sm:$0xff]
        %v1302 = vld [vmem:[#allocation11 + $0xc0] sm:$0xff]
        %v1303 = vld [vmem:[#allocation11 + $0xd0] sm:$0xff]
        %v1304 = vld [vmem:[#allocation11 + $0xe0] sm:$0xff]
        %v1305 = vld [vmem:[#allocation11 + $0xf0] sm:$0xff]
        %v1306 = vld [vmem:[%s13] sm:$0x3]
        %v1308 = vlaneseq
        %v1309 = vshrl.u32 %v1308, 7
        %v1310 = vsub.s32 0, %v1309
        %v1311 = vrot.slane %v1306, %v1310
        %v1312 = vlaneseq
        %v1313 = vshrl.u32 %v1312, 7
        %v1314 = vsub.s32 1, %v1313
        %v1315 = vrot.slane %v1306, %v1314
        %v1334 = vunpack.c.l.b16 %v1290
        %v1335 = vunpack.c.h.b16 %v1290
        %v1336 = vunpack.c.l.b16 %v1291
        %v1337 = vunpack.c.h.b16 %v1291
        %v1338 = vunpack.c.l.b16 %v1292
        %v1339 = vunpack.c.h.b16 %v1292
        %v1340 = vunpack.c.l.b16 %v1293
        %v1341 = vunpack.c.h.b16 %v1293
        %v1342 = vunpack.c.l.b16 %v1294
        %v1343 = vunpack.c.h.b16 %v1294
        %v1344 = vunpack.c.l.b16 %v1295
        %v1345 = vunpack.c.h.b16 %v1295
        %v1346 = vunpack.c.l.b16 %v1296
        %v1347 = vunpack.c.h.b16 %v1296
        %v1348 = vunpack.c.l.b16 %v1297
        %v1349 = vunpack.c.h.b16 %v1297
        %v1350 = vunpack.c.l.b16 %v1298
        %v1351 = vunpack.c.h.b16 %v1298
        %v1352 = vunpack.c.l.b16 %v1299
        %v1353 = vunpack.c.h.b16 %v1299
        %v1354 = vunpack.c.l.b16 %v1300
        %v1355 = vunpack.c.h.b16 %v1300
        %v1356 = vunpack.c.l.b16 %v1301
        %v1357 = vunpack.c.h.b16 %v1301
        %v1358 = vunpack.c.l.b16 %v1302
        %v1359 = vunpack.c.h.b16 %v1302
        %v1360 = vunpack.c.l.b16 %v1303
        %v1361 = vunpack.c.h.b16 %v1303
        %v1362 = vunpack.c.l.b16 %v1304
        %v1363 = vunpack.c.h.b16 %v1304
        %v1364 = vunpack.c.l.b16 %v1305
        %v1365 = vunpack.c.h.b16 %v1305
        %v1366 = vpack.c.b16 %v1336, %v1334
        %v1367 = vpack.c.b16 %v1337, %v1335
        %v1368 = vpack.c.b16 %v1340, %v1338
        %v1369 = vpack.c.b16 %v1341, %v1339
        %v1370 = vpack.c.b16 %v1344, %v1342
        %v1371 = vpack.c.b16 %v1345, %v1343
        %v1372 = vpack.c.b16 %v1348, %v1346
        %v1373 = vpack.c.b16 %v1349, %v1347
        %v1374 = vpack.c.b16 %v1352, %v1350
        %v1375 = vpack.c.b16 %v1353, %v1351
        %v1376 = vpack.c.b16 %v1356, %v1354
        %v1377 = vpack.c.b16 %v1357, %v1355
        %v1378 = vpack.c.b16 %v1360, %v1358
        %v1379 = vpack.c.b16 %v1361, %v1359
        %v1380 = vpack.c.b16 %v1364, %v1362
        %v1381 = vpack.c.b16 %v1365, %v1363
        %1398 = vmatprep.subr.bf16.mxu0 %v1367
        %1399 = vmatpush1.bf16.msra.mxu0 %v1366
        %1400 = vmatprep.subr.bf16.mxu0 %v1369
        %1401 = vmatpush1.bf16.msra.mxu0 %v1368
        %1402 = vmatprep.subr.bf16.mxu0 %v1371
        %1403 = vmatpush1.bf16.msra.mxu0 %v1370
        %1404 = vmatprep.subr.bf16.mxu0 %v1373
        %1405 = vmatpush1.bf16.msra.mxu0 %v1372
        %1406 = vmatprep.subr.bf16.mxu0 %v1375
        %1407 = vmatpush1.bf16.msra.mxu0 %v1374
        %1408 = vmatprep.subr.bf16.mxu0 %v1377
        %1409 = vmatpush1.bf16.msra.mxu0 %v1376
        %1410 = vmatprep.subr.bf16.mxu0 %v1379
        %1411 = vmatpush1.bf16.msra.mxu0 %v1378
        %1412 = vmatprep.subr.bf16.mxu0 %v1381
        %1413 = vmatpush1.bf16.msra.mxu0 %v1380
        %1414 = vmatprep.subr.bf16.mxu0 0
        %1415 = vmatpush1.bf16.msra.mxu0 0
        %1416 = vmatprep.subr.bf16.mxu0 0
        %1417 = vmatpush1.bf16.msra.mxu0 0
        %1418 = vmatprep.subr.bf16.mxu0 0
        %1419 = vmatpush1.bf16.msra.mxu0 0
        %1420 = vmatprep.subr.bf16.mxu0 0
        %1421 = vmatpush1.bf16.msra.mxu0 0
        %1422 = vmatprep.subr.bf16.mxu0 0
        %1423 = vmatpush1.bf16.msra.mxu0 0
        %1424 = vmatprep.subr.bf16.mxu0 0
        %1425 = vmatpush1.bf16.msra.mxu0 0
        %1426 = vmatprep.subr.bf16.mxu0 0
        %1427 = vmatpush1.bf16.msra.mxu0 0
        %1428 = vmatprep.subr.bf16.mxu0 0
        %1429 = vmatpush1.bf16.msra.mxu0 0
        %1430 = vmatprep.mubr.bf16.mxu0 0
        %1431 = vmatmul.mubr.bf16.gmra.mrb[0].mxu0 %v1289
        %v1432 = vpop.f32.mrb[0].mxu0
        %v1433 = vadd.f32 %v1311, %v1432
        %v1434 = vpop.f32.mrb[0].mxu0
        %v1435 = vadd.f32 %v1315, %v1434
        %v1436 = vpop.f32.mrb[0].mxu0
        %v1437 = vpop.f32.mrb[0].mxu0
        %1438 = vdwg.mxu0
        %v1439 = vmul.f32 %v1433, 0.5
        %v1440 = vmul.f32 %v1435, 0.5
        %v1441 = vmul.f32 %v1433, 0.70710677
        %v1442 = vmul.f32 %v1435, 0.70710677
        %v1443 = verf.f32.pop %v1441
        %v1444 = verf.f32.pop %v1442
        %v1445 = vadd.f32 %v1443, 1.0
        %v1446 = vadd.f32 %v1444, 1.0
        %v1447 = vmul.f32 %v1439, %v1445
        %v1448 = vmul.f32 %v1440, %v1446
        %v1449 = vpack.c.bf16 %v1447, %v1447
        %v1450 = vpack.c.bf16 %v1448, %v1448
        %v1451 = vld [vmem:[#allocation13] sm:$0xf]
        %v1452 = vld [vmem:[#allocation13 + $0x4] sm:$0xf]
        %v1453 = vld [vmem:[#allocation13 + $0x8] sm:$0xf]
        %v1454 = vld [vmem:[#allocation13 + $0xc] sm:$0xf]
        %v1455 = vld [vmem:[#allocation13 + $0x10] sm:$0xf]
        %v1456 = vld [vmem:[#allocation13 + $0x14] sm:$0xf]
        %v1457 = vld [vmem:[#allocation13 + $0x18] sm:$0xf]
        %v1458 = vld [vmem:[#allocation13 + $0x1c] sm:$0xf]
        %v1459 = vld [vmem:[#allocation13 + $0x20] sm:$0xf]
        %v1460 = vld [vmem:[#allocation13 + $0x24] sm:$0xf]
        %v1461 = vld [vmem:[#allocation13 + $0x28] sm:$0xf]
        %v1462 = vld [vmem:[#allocation13 + $0x2c] sm:$0xf]
        %v1463 = vld [vmem:[#allocation13 + $0x30] sm:$0xf]
        %v1464 = vld [vmem:[#allocation13 + $0x34] sm:$0xf]
        %v1465 = vld [vmem:[#allocation13 + $0x38] sm:$0xf]
        %v1466 = vld [vmem:[#allocation13 + $0x3c] sm:$0xf]
        %v1467 = vld [vmem:[#allocation13 + $0x40] sm:$0xf]
        %v1468 = vld [vmem:[#allocation13 + $0x44] sm:$0xf]
        %v1469 = vld [vmem:[#allocation13 + $0x48] sm:$0xf]
        %v1470 = vld [vmem:[#allocation13 + $0x4c] sm:$0xf]
        %v1471 = vld [vmem:[#allocation13 + $0x50] sm:$0xf]
        %v1472 = vld [vmem:[#allocation13 + $0x54] sm:$0xf]
        %v1473 = vld [vmem:[#allocation13 + $0x58] sm:$0xf]
        %v1474 = vld [vmem:[#allocation13 + $0x5c] sm:$0xf]
        %v1475 = vld [vmem:[#allocation13 + $0x60] sm:$0xf]
        %v1476 = vld [vmem:[#allocation13 + $0x64] sm:$0xf]
        %v1477 = vld [vmem:[#allocation13 + $0x68] sm:$0xf]
        %v1478 = vld [vmem:[#allocation13 + $0x6c] sm:$0xf]
        %v1479 = vld [vmem:[#allocation13 + $0x70] sm:$0xf]
        %v1480 = vld [vmem:[#allocation13 + $0x74] sm:$0xf]
        %v1481 = vld [vmem:[#allocation13 + $0x78] sm:$0xf]
        %v1482 = vld [vmem:[#allocation13 + $0x7c] sm:$0xf]
        %v1483 = vld [vmem:[#allocation11 + $0x8] sm:$0xff]
        %v1484 = vld [vmem:[#allocation11 + $0x18] sm:$0xff]
        %v1485 = vld [vmem:[#allocation11 + $0x28] sm:$0xff]
        %v1486 = vld [vmem:[#allocation11 + $0x38] sm:$0xff]
        %v1487 = vld [vmem:[#allocation11 + $0x48] sm:$0xff]
        %v1488 = vld [vmem:[#allocation11 + $0x58] sm:$0xff]
        %v1489 = vld [vmem:[#allocation11 + $0x68] sm:$0xff]
        %v1490 = vld [vmem:[#allocation11 + $0x78] sm:$0xff]
        %v1491 = vld [vmem:[#allocation11 + $0x88] sm:$0xff]
        %v1492 = vld [vmem:[#allocation11 + $0x98] sm:$0xff]
        %v1493 = vld [vmem:[#allocation11 + $0xa8] sm:$0xff]
        %v1494 = vld [vmem:[#allocation11 + $0xb8] sm:$0xff]
        %v1495 = vld [vmem:[#allocation11 + $0xc8] sm:$0xff]
        %v1496 = vld [vmem:[#allocation11 + $0xd8] sm:$0xff]
        %v1497 = vld [vmem:[#allocation11 + $0xe8] sm:$0xff]
        %v1498 = vld [vmem:[#allocation11 + $0xf8] sm:$0xff]
        %v1499 = vld [vmem:[%s13 + $0x2] sm:$0x3]
        %v1501 = vlaneseq
        %v1502 = vshrl.u32 %v1501, 7
        %v1503 = vsub.s32 0, %v1502
        %v1504 = vrot.slane %v1499, %v1503
        %v1505 = vlaneseq
        %v1506 = vshrl.u32 %v1505, 7
        %v1507 = vsub.s32 1, %v1506
        %v1508 = vrot.slane %v1499, %v1507
        %v1527 = vunpack.c.l.b16 %v1483
        %v1528 = vunpack.c.h.b16 %v1483
        %v1529 = vunpack.c.l.b16 %v1484
        %v1530 = vunpack.c.h.b16 %v1484
        %v1531 = vunpack.c.l.b16 %v1485
        %v1532 = vunpack.c.h.b16 %v1485
        %v1533 = vunpack.c.l.b16 %v1486
        %v1534 = vunpack.c.h.b16 %v1486
        %v1535 = vunpack.c.l.b16 %v1487
        %v1536 = vunpack.c.h.b16 %v1487
        %v1537 = vunpack.c.l.b16 %v1488
        %v1538 = vunpack.c.h.b16 %v1488
        %v1539 = vunpack.c.l.b16 %v1489
        %v1540 = vunpack.c.h.b16 %v1489
        %v1541 = vunpack.c.l.b16 %v1490
        %v1542 = vunpack.c.h.b16 %v1490
        %v1543 = vunpack.c.l.b16 %v1491
        %v1544 = vunpack.c.h.b16 %v1491
        %v1545 = vunpack.c.l.b16 %v1492
        %v1546 = vunpack.c.h.b16 %v1492
        %v1547 = vunpack.c.l.b16 %v1493
        %v1548 = vunpack.c.h.b16 %v1493
        %v1549 = vunpack.c.l.b16 %v1494
        %v1550 = vunpack.c.h.b16 %v1494
        %v1551 = vunpack.c.l.b16 %v1495
        %v1552 = vunpack.c.h.b16 %v1495
        %v1553 = vunpack.c.l.b16 %v1496
        %v1554 = vunpack.c.h.b16 %v1496
        %v1555 = vunpack.c.l.b16 %v1497
        %v1556 = vunpack.c.h.b16 %v1497
        %v1557 = vunpack.c.l.b16 %v1498
        %v1558 = vunpack.c.h.b16 %v1498
        %v1559 = vpack.c.b16 %v1529, %v1527
        %v1560 = vpack.c.b16 %v1530, %v1528
        %v1561 = vpack.c.b16 %v1533, %v1531
        %v1562 = vpack.c.b16 %v1534, %v1532
        %v1563 = vpack.c.b16 %v1537, %v1535
        %v1564 = vpack.c.b16 %v1538, %v1536
        %v1565 = vpack.c.b16 %v1541, %v1539
        %v1566 = vpack.c.b16 %v1542, %v1540
        %v1567 = vpack.c.b16 %v1545, %v1543
        %v1568 = vpack.c.b16 %v1546, %v1544
        %v1569 = vpack.c.b16 %v1549, %v1547
        %v1570 = vpack.c.b16 %v1550, %v1548
        %v1571 = vpack.c.b16 %v1553, %v1551
        %v1572 = vpack.c.b16 %v1554, %v1552
        %v1573 = vpack.c.b16 %v1557, %v1555
        %v1574 = vpack.c.b16 %v1558, %v1556
        %1591 = vmatprep.subr.bf16.mxu0 %v1560
        %1592 = vmatpush1.bf16.msra.mxu0 %v1559
        %1593 = vmatprep.subr.bf16.mxu0 %v1562
        %1594 = vmatpush1.bf16.msra.mxu0 %v1561
        %1595 = vmatprep.subr.bf16.mxu0 %v1564
        %1596 = vmatpush1.bf16.msra.mxu0 %v1563
        %1597 = vmatprep.subr.bf16.mxu0 %v1566
        %1598 = vmatpush1.bf16.msra.mxu0 %v1565
        %1599 = vmatprep.subr.bf16.mxu0 %v1568
        %1600 = vmatpush1.bf16.msra.mxu0 %v1567
        %1601 = vmatprep.subr.bf16.mxu0 %v1570
        %1602 = vmatpush1.bf16.msra.mxu0 %v1569
        %1603 = vmatprep.subr.bf16.mxu0 %v1572
        %1604 = vmatpush1.bf16.msra.mxu0 %v1571
        %1605 = vmatprep.subr.bf16.mxu0 %v1574
        %1606 = vmatpush1.bf16.msra.mxu0 %v1573
        %1607 = vmatprep.subr.bf16.mxu0 0
        %1608 = vmatpush1.bf16.msra.mxu0 0
        %1609 = vmatprep.subr.bf16.mxu0 0
        %1610 = vmatpush1.bf16.msra.mxu0 0
        %1611 = vmatprep.subr.bf16.mxu0 0
        %1612 = vmatpush1.bf16.msra.mxu0 0
        %1613 = vmatprep.subr.bf16.mxu0 0
        %1614 = vmatpush1.bf16.msra.mxu0 0
        %1615 = vmatprep.subr.bf16.mxu0 0
        %1616 = vmatpush1.bf16.msra.mxu0 0
        %1617 = vmatprep.subr.bf16.mxu0 0
        %1618 = vmatpush1.bf16.msra.mxu0 0
        %1619 = vmatprep.subr.bf16.mxu0 0
        %1620 = vmatpush1.bf16.msra.mxu0 0
        %1621 = vmatprep.subr.bf16.mxu0 0
        %1622 = vmatpush1.bf16.msra.mxu0 0
        %1623 = vmatprep.mubr.bf16.mxu0 0
        %1624 = vmatmul.mubr.bf16.gmra.mrb[0].mxu0 %v1289
        %v1625 = vpop.f32.mrb[0].mxu0
        %v1626 = vadd.f32 %v1504, %v1625
        %v1627 = vpop.f32.mrb[0].mxu0
        %v1628 = vadd.f32 %v1508, %v1627
        %v1629 = vpop.f32.mrb[0].mxu0
        %v1630 = vpop.f32.mrb[0].mxu0
        %1631 = vdwg.mxu0
        %v1632 = vmul.f32 %v1626, 0.5
        %v1633 = vmul.f32 %v1628, 0.5
        %v1634 = vmul.f32 %v1626, 0.70710677
        %v1635 = vmul.f32 %v1628, 0.70710677
        %v1636 = verf.f32.pop %v1634
        %v1637 = verf.f32.pop %v1635
        %v1638 = vadd.f32 %v1636, 1.0
        %v1639 = vadd.f32 %v1637, 1.0
        %v1640 = vmul.f32 %v1632, %v1638
        %v1641 = vmul.f32 %v1633, %v1639
        %v1642 = vpack.c.bf16 %v1640, %v1640
        %v1643 = vpack.c.bf16 %v1641, %v1641
        %v1644 = vld [vmem:[#allocation13 + $0x80] sm:$0xf]
        %v1645 = vld [vmem:[#allocation13 + $0x84] sm:$0xf]
        %v1646 = vld [vmem:[#allocation13 + $0x88] sm:$0xf]
        %v1647 = vld [vmem:[#allocation13 + $0x8c] sm:$0xf]
        %v1648 = vld [vmem:[#allocation13 + $0x90] sm:$0xf]
        %v1649 = vld [vmem:[#allocation13 + $0x94] sm:$0xf]
        %v1650 = vld [vmem:[#allocation13 + $0x98] sm:$0xf]
        %v1651 = vld [vmem:[#allocation13 + $0x9c] sm:$0xf]
        %v1652 = vld [vmem:[#allocation13 + $0xa0] sm:$0xf]
        %v1653 = vld [vmem:[#allocation13 + $0xa4] sm:$0xf]
        %v1654 = vld [vmem:[#allocation13 + $0xa8] sm:$0xf]
        %v1655 = vld [vmem:[#allocation13 + $0xac] sm:$0xf]
        %v1656 = vld [vmem:[#allocation13 + $0xb0] sm:$0xf]
        %v1657 = vld [vmem:[#allocation13 + $0xb4] sm:$0xf]
        %v1658 = vld [vmem:[#allocation13 + $0xb8] sm:$0xf]
        %v1659 = vld [vmem:[#allocation13 + $0xbc] sm:$0xf]
        %v1660 = vld [vmem:[#allocation13 + $0xc0] sm:$0xf]
        %v1661 = vld [vmem:[#allocation13 + $0xc4] sm:$0xf]
        %v1662 = vld [vmem:[#allocation13 + $0xc8] sm:$0xf]
        %v1663 = vld [vmem:[#allocation13 + $0xcc] sm:$0xf]
        %v1664 = vld [vmem:[#allocation13 + $0xd0] sm:$0xf]
        %v1665 = vld [vmem:[#allocation13 + $0xd4] sm:$0xf]
        %v1666 = vld [vmem:[#allocation13 + $0xd8] sm:$0xf]
        %v1667 = vld [vmem:[#allocation13 + $0xdc] sm:$0xf]
        %v1668 = vld [vmem:[#allocation13 + $0xe0] sm:$0xf]
        %v1669 = vld [vmem:[#allocation13 + $0xe4] sm:$0xf]
        %v1670 = vld [vmem:[#allocation13 + $0xe8] sm:$0xf]
        %v1671 = vld [vmem:[#allocation13 + $0xec] sm:$0xf]
        %v1672 = vld [vmem:[#allocation13 + $0xf0] sm:$0xf]
        %v1673 = vld [vmem:[#allocation13 + $0xf4] sm:$0xf]
        %v1674 = vld [vmem:[#allocation13 + $0xf8] sm:$0xf]
        %v1675 = vld [vmem:[#allocation13 + $0xfc] sm:$0xf]
        %v1708 = vunpack.c.l.b16 %v1644
        %v1709 = vunpack.c.l.b16 %v1645
        %v1710 = vunpack.c.l.b16 %v1646
        %v1711 = vunpack.c.l.b16 %v1647
        %v1712 = vunpack.c.l.b16 %v1648
        %v1713 = vunpack.c.l.b16 %v1649
        %v1714 = vunpack.c.l.b16 %v1650
        %v1715 = vunpack.c.l.b16 %v1651
        %v1716 = vunpack.c.l.b16 %v1652
        %v1717 = vunpack.c.l.b16 %v1653
        %v1718 = vunpack.c.l.b16 %v1654
        %v1719 = vunpack.c.l.b16 %v1655
        %v1720 = vunpack.c.l.b16 %v1656
        %v1721 = vunpack.c.l.b16 %v1657
        %v1722 = vunpack.c.l.b16 %v1658
        %v1723 = vunpack.c.l.b16 %v1659
        %v1724 = vunpack.c.l.b16 %v1660
        %v1725 = vunpack.c.l.b16 %v1661
        %v1726 = vunpack.c.l.b16 %v1662
        %v1727 = vunpack.c.l.b16 %v1663
        %v1728 = vunpack.c.l.b16 %v1664
        %v1729 = vunpack.c.l.b16 %v1665
        %v1730 = vunpack.c.l.b16 %v1666
        %v1731 = vunpack.c.l.b16 %v1667
        %v1732 = vunpack.c.l.b16 %v1668
        %v1733 = vunpack.c.l.b16 %v1669
        %v1734 = vunpack.c.l.b16 %v1670
        %v1735 = vunpack.c.l.b16 %v1671
        %v1736 = vunpack.c.l.b16 %v1672
        %v1737 = vunpack.c.l.b16 %v1673
        %v1738 = vunpack.c.l.b16 %v1674
        %v1739 = vunpack.c.l.b16 %v1675
        %v1740 = vpack.c.b16 %v1709, %v1708
        %v1741 = vpack.c.b16 %v1711, %v1710
        %v1742 = vpack.c.b16 %v1713, %v1712
        %v1743 = vpack.c.b16 %v1715, %v1714
        %v1744 = vpack.c.b16 %v1717, %v1716
        %v1745 = vpack.c.b16 %v1719, %v1718
        %v1746 = vpack.c.b16 %v1721, %v1720
        %v1747 = vpack.c.b16 %v1723, %v1722
        %v1748 = vpack.c.b16 %v1725, %v1724
        %v1749 = vpack.c.b16 %v1727, %v1726
        %v1750 = vpack.c.b16 %v1729, %v1728
        %v1751 = vpack.c.b16 %v1731, %v1730
        %v1752 = vpack.c.b16 %v1733, %v1732
        %v1753 = vpack.c.b16 %v1735, %v1734
        %v1754 = vpack.c.b16 %v1737, %v1736
        %v1755 = vpack.c.b16 %v1739, %v1738
        %1772 = vmatprep.subr.bf16.mxu0 0
        %1773 = vmatpush1.bf16.msra.mxu0 %v1740
        %1774 = vmatprep.subr.bf16.mxu0 0
        %1775 = vmatpush1.bf16.msra.mxu0 %v1741
        %1776 = vmatprep.subr.bf16.mxu0 0
        %1777 = vmatpush1.bf16.msra.mxu0 %v1742
        %1778 = vmatprep.subr.bf16.mxu0 0
        %1779 = vmatpush1.bf16.msra.mxu0 %v1743
        %1780 = vmatprep.subr.bf16.mxu0 0
        %1781 = vmatpush1.bf16.msra.mxu0 %v1744
        %1782 = vmatprep.subr.bf16.mxu0 0
        %1783 = vmatpush1.bf16.msra.mxu0 %v1745
        %1784 = vmatprep.subr.bf16.mxu0 0
        %1785 = vmatpush1.bf16.msra.mxu0 %v1746
        %1786 = vmatprep.subr.bf16.mxu0 0
        %1787 = vmatpush1.bf16.msra.mxu0 %v1747
        %1788 = vmatprep.subr.bf16.mxu0 0
        %1789 = vmatpush1.bf16.msra.mxu0 %v1748
        %1790 = vmatprep.subr.bf16.mxu0 0
        %1791 = vmatpush1.bf16.msra.mxu0 %v1749
        %1792 = vmatprep.subr.bf16.mxu0 0
        %1793 = vmatpush1.bf16.msra.mxu0 %v1750
        %1794 = vmatprep.subr.bf16.mxu0 0
        %1795 = vmatpush1.bf16.msra.mxu0 %v1751
        %1796 = vmatprep.subr.bf16.mxu0 0
        %1797 = vmatpush1.bf16.msra.mxu0 %v1752
        %1798 = vmatprep.subr.bf16.mxu0 0
        %1799 = vmatpush1.bf16.msra.mxu0 %v1753
        %1800 = vmatprep.subr.bf16.mxu0 0
        %1801 = vmatpush1.bf16.msra.mxu0 %v1754
        %1802 = vmatprep.subr.bf16.mxu0 0
        %1803 = vmatpush1.bf16.msra.mxu0 %v1755
        %1804 = vmatprep.mubr.bf16.mxu0 %v1643
        %1805 = vmatmul.mubr.bf16.gmra.mrb[0].mxu0 %v1642
        %v1806 = vpop.f32.mrb[0].mxu0
        %v1807 = vadd.f32 0.0, %v1806
        %v1808 = vpop.f32.mrb[0].mxu0
        %v1809 = vpop.f32.mrb[0].mxu0
        %v1810 = vpop.f32.mrb[0].mxu0
        %1811 = vdwg.mxu0
        %v1844 = vunpack.c.l.b16 %v1451
        %v1845 = vunpack.c.l.b16 %v1452
        %v1846 = vunpack.c.l.b16 %v1453
        %v1847 = vunpack.c.l.b16 %v1454
        %v1848 = vunpack.c.l.b16 %v1455
        %v1849 = vunpack.c.l.b16 %v1456
        %v1850 = vunpack.c.l.b16 %v1457
        %v1851 = vunpack.c.l.b16 %v1458
        %v1852 = vunpack.c.l.b16 %v1459
        %v1853 = vunpack.c.l.b16 %v1460
        %v1854 = vunpack.c.l.b16 %v1461
        %v1855 = vunpack.c.l.b16 %v1462
        %v1856 = vunpack.c.l.b16 %v1463
        %v1857 = vunpack.c.l.b16 %v1464
        %v1858 = vunpack.c.l.b16 %v1465
        %v1859 = vunpack.c.l.b16 %v1466
        %v1860 = vunpack.c.l.b16 %v1467
        %v1861 = vunpack.c.l.b16 %v1468
        %v1862 = vunpack.c.l.b16 %v1469
        %v1863 = vunpack.c.l.b16 %v1470
        %v1864 = vunpack.c.l.b16 %v1471
        %v1865 = vunpack.c.l.b16 %v1472
        %v1866 = vunpack.c.l.b16 %v1473
        %v1867 = vunpack.c.l.b16 %v1474
        %v1868 = vunpack.c.l.b16 %v1475
        %v1869 = vunpack.c.l.b16 %v1476
        %v1870 = vunpack.c.l.b16 %v1477
        %v1871 = vunpack.c.l.b16 %v1478
        %v1872 = vunpack.c.l.b16 %v1479
        %v1873 = vunpack.c.l.b16 %v1480
        %v1874 = vunpack.c.l.b16 %v1481
        %v1875 = vunpack.c.l.b16 %v1482
        %v1876 = vpack.c.b16 %v1845, %v1844
        %v1877 = vpack.c.b16 %v1847, %v1846
        %v1878 = vpack.c.b16 %v1849, %v1848
        %v1879 = vpack.c.b16 %v1851, %v1850
        %v1880 = vpack.c.b16 %v1853, %v1852
        %v1881 = vpack.c.b16 %v1855, %v1854
        %v1882 = vpack.c.b16 %v1857, %v1856
        %v1883 = vpack.c.b16 %v1859, %v1858
        %v1884 = vpack.c.b16 %v1861, %v1860
        %v1885 = vpack.c.b16 %v1863, %v1862
        %v1886 = vpack.c.b16 %v1865, %v1864
        %v1887 = vpack.c.b16 %v1867, %v1866
        %v1888 = vpack.c.b16 %v1869, %v1868
        %v1889 = vpack.c.b16 %v1871, %v1870
        %v1890 = vpack.c.b16 %v1873, %v1872
        %v1891 = vpack.c.b16 %v1875, %v1874
        %1908 = vmatprep.subr.bf16.mxu0 0
        %1909 = vmatpush1.bf16.msra.mxu0 %v1876
        %1910 = vmatprep.subr.bf16.mxu0 0
        %1911 = vmatpush1.bf16.msra.mxu0 %v1877
        %1912 = vmatprep.subr.bf16.mxu0 0
        %1913 = vmatpush1.bf16.msra.mxu0 %v1878
        %1914 = vmatprep.subr.bf16.mxu0 0
        %1915 = vmatpush1.bf16.msra.mxu0 %v1879
        %1916 = vmatprep.subr.bf16.mxu0 0
        %1917 = vmatpush1.bf16.msra.mxu0 %v1880
        %1918 = vmatprep.subr.bf16.mxu0 0
        %1919 = vmatpush1.bf16.msra.mxu0 %v1881
        %1920 = vmatprep.subr.bf16.mxu0 0
        %1921 = vmatpush1.bf16.msra.mxu0 %v1882
        %1922 = vmatprep.subr.bf16.mxu0 0
        %1923 = vmatpush1.bf16.msra.mxu0 %v1883
        %1924 = vmatprep.subr.bf16.mxu0 0
        %1925 = vmatpush1.bf16.msra.mxu0 %v1884
        %1926 = vmatprep.subr.bf16.mxu0 0
        %1927 = vmatpush1.bf16.msra.mxu0 %v1885
        %1928 = vmatprep.subr.bf16.mxu0 0
        %1929 = vmatpush1.bf16.msra.mxu0 %v1886
        %1930 = vmatprep.subr.bf16.mxu0 0
        %1931 = vmatpush1.bf16.msra.mxu0 %v1887
        %1932 = vmatprep.subr.bf16.mxu0 0
        %1933 = vmatpush1.bf16.msra.mxu0 %v1888
        %1934 = vmatprep.subr.bf16.mxu0 0
        %1935 = vmatpush1.bf16.msra.mxu0 %v1889
        %1936 = vmatprep.subr.bf16.mxu0 0
        %1937 = vmatpush1.bf16.msra.mxu0 %v1890
        %1938 = vmatprep.subr.bf16.mxu0 0
        %1939 = vmatpush1.bf16.msra.mxu0 %v1891
        %1940 = vmatprep.mubr.bf16.mxu0 %v1450
        %1941 = vmatmul.mubr.bf16.gmra.mrb[0].mxu0 %v1449
        %v1942 = vpop.f32.mrb[0].mxu0
        %v1943 = vadd.f32 %v1807, %v1942
        %v1944 = vpop.f32.mrb[0].mxu0
        %v1945 = vpop.f32.mrb[0].mxu0
        %v1946 = vpop.f32.mrb[0].mxu0
        %1947 = vdwg.mxu0
        %v1948 = vld [vmem:[%s15] sm:$0x1]
        %v1950 = vlaneseq
        %v1951 = vshrl.u32 %v1950, 7
        %v1952 = vsub.s32 0, %v1951
        %v1953 = vrot.slane %v1948, %v1952
        %v1955 = vadd.f32 %v1943, %v1953
        %v1956 = vadd.f32 %v1288, %v1955
        %v1957 = vld [vmem:[%s16] sm:$0x1]
        %v1958 = vld [vmem:[%s17] sm:$0x1]
        %1959 = vadd.xlane.f32.xlu0 %v1956
        %v1960 = vpop.xlane.xlu0 %1959
        %v1961 = vmul.f32 %v1960, %v1265
        %v1962 = vsub.f32 %v1956, %v1961
        %v1963 = vmul.f32 %v1962, %v1962
        %1964 = vadd.xlane.f32.xlu0 %v1963
        %v1965 = vpop.xlane.xlu0 %1964
        %v1966 = vmul.f32 %v1965, %v1265
        %v1967 = vadd.f32 %v1966, 1e-12
        %v1968 = vrsqrt.pop %v1967
        %v1969 = vmul.f32 %v1962, %v1968
        %v1971 = vlaneseq
        %v1972 = vshrl.u32 %v1971, 7
        %v1973 = vsub.s32 0, %v1972
        %v1974 = vrot.slane %v1957, %v1973
        %v1976 = vmul.f32 %v1969, %v1974
        %v1978 = vlaneseq
        %v1979 = vshrl.u32 %v1978, 7
        %v1980 = vsub.s32 0, %v1979
        %v1981 = vrot.slane %v1958, %v1980
        %v1983 = vadd.f32 %v1976, %v1981
        %1984 = vst [vmem:[%s688] sm:$0xff] %v1983
        %s1985 = sand.u32 %s434, 1
        %s1986 = scalar_lea.sflag [#allocation4], %s1985
        %s1987 = sand.u32 %s434, 1
        %s1988 = smul.addr %s1987, 8
        %s1989 = scalar_lea.vmem [#allocation14], %s1988
        // Predicated region
        $region121: #{tpu_custom_call.1} parent=91 // pred_check
          %p1990 = pneg %p444
        $region122: #{tpu_custom_call.1} parent=91 // pred_check_branch
          %1992 = sbr.rel (%p1990) target = $region124
        $region123: #{tpu_custom_call.1} parent=91 // pred_region
          %s1994 = ssub.s32 128, 128
          %1995 = vsyncadd %s1986, %s1994
          %s1996 = smul.addr %s38, 128
          %s1997 = scalar_lea.hbm %s18, %s1996
          %s1999 = sshll.u32 %s1989, 4
          %s2000 = int_to_ptr.vmem [resolvable:$true] %s1999
          %2002 = dma.vmem_to_hbm [thread:$0]  %s2000, 128, %s1997, %s1986
        $region124: #{tpu_custom_call.1} parent=91 // pred_fallthru
          _
      $region92: #{tpu_custom_call.1} parent=5 // pred_fallthru
        _
      %p2003 = scmp.le.s32.totalorder 2, %s33
      // Predicated region
      $region125: #{tpu_custom_call.1} parent=5 // pred_check
        %p2004 = pneg %p2003
      $region126: #{tpu_custom_call.1} parent=5 // pred_check_branch
        %2006 = sbr.rel (%p2004) target = $region128
      $region127: #{tpu_custom_call.1} parent=5 // pred_region
        %s2007 = ssub.s32 %s33, 2
        // Predicated region
        $region129: #{tpu_custom_call.1} parent=127 // pred_check
          %p2008 = pneg %p450
        $region130: #{tpu_custom_call.1} parent=127 // pred_check_branch
          %2010 = sbr.rel (%p2008) target = $region132
        $region131: #{tpu_custom_call.1} parent=127 // pred_region
          %s2011 = sand.u32 %s435, 1
          %s2012 = scalar_lea.sflag [#allocation4], %s2011
          %s2013 = sand.u32 %s435, 1
          %s2014 = smul.addr %s2013, 8
          %s2015 = scalar_lea.vmem [#allocation14], %s2014
          %2016 = dma.done %s2012, 128
        $region132: #{tpu_custom_call.1} parent=127 // pred_fallthru
          _
      $region128: #{tpu_custom_call.1} parent=5 // pred_fallthru
        _
    $region6: #{tpu_custom_call.1} parent=1 // loop_footer
      %s37 = sadd.s32 1, %s33
    $region7: #{tpu_custom_call.1} parent=1 // loop_footer_branch
      %32 = sbr.rel target = $region3
    $region8: #{tpu_custom_call.1} parent=1 // loop_exit
      _
    %2017 = vsyncpa [#allocation3], 1
    %s2018 = scalar_lea.sflag [#allocation3], 1
    %2019 = vsyncpa %s2018, 1
    %2020 = vsyncpa [#allocation6], 1
    %2021 = vsyncpa [#allocation9], 1
    %2022 = vsyncpa [#allocation12], 1
    %2023 = vsyncpa [#allocation4], 1
    %s2024 = scalar_lea.sflag [#allocation4], 1
    %2025 = vsyncpa %s2024, 1

</llo_original>
